<compile_context>
chip_gen: v7x
topology: tpu7x:2x2x1
jax: 0.10.0
libtpu: 0.0.40
codegen_flags: <defaults>
</compile_context>

<pallas_src>
import math

import jax
import jax.numpy as jnp
from jax.experimental import pallas as pl
from jax.experimental.pallas import tpu as pltpu

# ---------------- tiny synthetic BERT config ----------------
VOCAB = 100
HIDDEN = 32
N_HEADS = 2
HEAD_DIM = HIDDEN // N_HEADS
N_LAYERS = 2
INTERMEDIATE = 64
MAX_POS = 16
TYPE_VOCAB = 2
NUM_LABELS = 3
LN_EPS = 1e-12
NEG_INF = -1e9                 # additive attention-mask value (finite -> no NaNs)
PAD = 128                      # lane-dense padded feature width
MAX_ROWS_PER_STEP = 256        # fills a 256-row MXU pass on v6e/v7x (128 saturates v5e)

# ---------------- vector-table row indices (shared by pack + kernel) ----------------
V_EMB_G, V_EMB_B, V_CLS_B = 0, 1, 2
V_N_GLOBAL = 3
V_PER_LAYER = 3 * N_HEADS + 7  # 6 qkv-bias chunks + bao + ln1(g,b) + bff1 + bff2 + ln2(g,b)


def v_base(layer):
    return V_N_GLOBAL + layer * V_PER_LAYER


# ---------------- fused Pallas kernel (whole encoder + classifier, per row-tile) ----------------
def _bert_stack_kernel(emb_ref, bias_ref, wqkv_ref, wao_ref, wsq_ref, vec_ref, out_ref):
    P = PAD
    NH = N_HEADS
    inv_h = 1.0 / HIDDEN

    def vrow(i):                       # [1, P] f32, static slice of the vector table
        return vec_ref[i:i + 1, :]

    # lane mask: 1.0 in the first HIDDEN lanes, 0.0 in padding lanes
    hid_mask = (jax.lax.broadcasted_iota(jnp.int32, (1, P), 1) < HIDDEN).astype(jnp.float32)

    def layernorm(x, gi, bi):
        # two-pass (x - mu) variance; padding lanes masked so 128-lane sums are exact.
        mu = jnp.sum(x, axis=-1, keepdims=True) * inv_h
        d = (x - mu) * hid_mask
        var = jnp.sum(d * d, axis=-1, keepdims=True) * inv_h
        inv = jax.lax.rsqrt(var + LN_EPS)
        # gamma/beta are zero in padding lanes -> padding stays exactly zero.
        return d * inv * vrow(gi) + vrow(bi)

    def mm(x_f32, w_bf16):             # bf16 MXU operands, f32 accumulation
        return jnp.dot(x_f32.astype(jnp.bfloat16), w_bf16,
                       preferred_element_type=jnp.float32)

    x = emb_ref[...]                   # [M, P] f32, padding lanes zero
    key_bias = bias_ref[0]             # [M, M] additive mask (block-diag + key padding)

    h = layernorm(x, V_EMB_G, V_EMB_B)

    scale = 1.0 / math.sqrt(HEAD_DIM)
    for l in range(N_LAYERS):
        base = v_base(l)

        # ---- self-attention: one fused QKV matmul; heads are 128-lane-aligned slices
        qkv = mm(h, wqkv_ref[l])                               # [M, 3*NH*P]
        ctxs = []
        for hd in range(NH):
            q = qkv[:, hd * P:(hd + 1) * P] + vrow(base + hd)
            k = qkv[:, (NH + hd) * P:(NH + hd + 1) * P] + vrow(base + NH + hd)
            v = qkv[:, (2 * NH + hd) * P:(2 * NH + hd + 1) * P] + vrow(base + 2 * NH + hd)
            s = jax.lax.dot_general(
                q.astype(jnp.bfloat16), k.astype(jnp.bfloat16),
                (((1,), (1,)), ((), ())),
                preferred_element_type=jnp.float32)            # [M, M]
            s = s * scale + key_bias
            s = s - jnp.max(s, axis=-1, keepdims=True)
            p = jnp.exp(s)
            p = p / jnp.sum(p, axis=-1, keepdims=True)         # exact softmax denom
            ctxs.append(jnp.dot(p.astype(jnp.bfloat16), v.astype(jnp.bfloat16),
                                preferred_element_type=jnp.float32))   # [M, P]
        ctx_all = jnp.concatenate(ctxs, axis=-1)               # [M, NH*P]
        ao = mm(ctx_all, wao_ref[l]) + vrow(base + 3 * NH)     # single attn-out matmul
        h = layernorm(ao + h, base + 3 * NH + 1, base + 3 * NH + 2)

        # ---- feed-forward: bias + GELU + residual + LN epilogue
        ff = mm(h, wsq_ref[2 * l]) + vrow(base + 3 * NH + 3)
        # TODO(synk): HF BERT uses exact erf-GELU; tanh approximation used in-kernel.
        c = math.sqrt(2.0 / math.pi)
        ff = 0.5 * ff * (1.0 + jnp.tanh(c * (ff + 0.044715 * ff * ff * ff)))
        ff = mm(ff, wsq_ref[2 * l + 1]) + vrow(base + 3 * NH + 4)
        h = layernorm(ff + h, base + 3 * NH + 5, base + 3 * NH + 6)

    # ---- token classifier: lane-dense [M, 128] logits slab
    out_ref[...] = mm(h, wsq_ref[2 * N_LAYERS]) + vrow(V_CLS_B)


# ---------------- parameters (synthetic, BERT-shaped) ----------------
def init_params(key):
    def nrm(k, shape):
        return 0.02 * jax.random.normal(k, shape, dtype=jnp.float32)

    keys = jax.random.split(key, 4 + N_LAYERS)
    params = {
        "word_emb": nrm(keys[0], (VOCAB, HIDDEN)),
        "pos_emb": nrm(keys[1], (MAX_POS, HIDDEN)),
        "type_emb": nrm(keys[2], (TYPE_VOCAB, HIDDEN)),
        "emb_ln_g": jnp.ones((HIDDEN,), jnp.float32),
        "emb_ln_b": jnp.zeros((HIDDEN,), jnp.float32),
        "cls_w": nrm(keys[3], (HIDDEN, NUM_LABELS)),
        "cls_b": jnp.zeros((NUM_LABELS,), jnp.float32),
        "layers": [],
    }
    for l in range(N_LAYERS):
        lk = jax.random.split(keys[4 + l], 6)
        params["layers"].append({
            "q_w": nrm(lk[0], (HIDDEN, HIDDEN)), "q_b": jnp.zeros((HIDDEN,), jnp.float32),
            "k_w": nrm(lk[1], (HIDDEN, HIDDEN)), "k_b": jnp.zeros((HIDDEN,), jnp.float32),
            "v_w": nrm(lk[2], (HIDDEN, HIDDEN)), "v_b": jnp.zeros((HIDDEN,), jnp.float32),
            "ao_w": nrm(lk[3], (HIDDEN, HIDDEN)), "ao_b": jnp.zeros((HIDDEN,), jnp.float32),
            "ao_ln_g": jnp.ones((HIDDEN,), jnp.float32), "ao_ln_b": jnp.zeros((HIDDEN,), jnp.float32),
            "ff1_w": nrm(lk[4], (HIDDEN, INTERMEDIATE)), "ff1_b": jnp.zeros((INTERMEDIATE,), jnp.float32),
            "ff2_w": nrm(lk[5], (INTERMEDIATE, HIDDEN)), "ff2_b": jnp.zeros((HIDDEN,), jnp.float32),
            "ff_ln_g": jnp.ones((HIDDEN,), jnp.float32), "ff_ln_b": jnp.zeros((HIDDEN,), jnp.float32),
        })
    return params


def _pad_mat(w, rows, cols, dtype=jnp.bfloat16):
    out = jnp.zeros((rows, cols), dtype)
    return out.at[:w.shape[0], :w.shape[1]].set(w.astype(dtype))


def _pad_row(v, cols=PAD):
    out = jnp.zeros((cols,), jnp.float32)
    return out.at[:v.shape[0]].set(v.astype(jnp.float32))


def pack_params(params):
    """One-time lane-dense packing: 128-lane-aligned per-head QKV / Wao, and all
    weights coalesced into 3 bf16 matrix stacks + 1 f32 vector table."""
    P, NH, HD = PAD, N_HEADS, HEAD_DIM
    packed = {
        # embedding tables padded on lanes so the XLA gather yields [B,S,128]
        # slabs whose padding lanes are exactly zero.
        "word_emb": _pad_mat(params["word_emb"], VOCAB, P, jnp.float32),
        "pos_emb": _pad_mat(params["pos_emb"], MAX_POS, P, jnp.float32),
        "type_emb": _pad_mat(params["type_emb"], TYPE_VOCAB, P, jnp.float32),
    }
    wqkv, wao, wsq = [], [], []
    vec_rows = [_pad_row(params["emb_ln_g"]), _pad_row(params["emb_ln_b"]),
                _pad_row(params["cls_b"])]
    for lp in params["layers"]:
        # fused QKV, each head zero-padded to 128 output lanes: q0|q1|k0|k1|v0|v1
        wq = jnp.zeros((P, 3 * NH * P), jnp.bfloat16)
        for hd in range(NH):
            wq = wq.at[:HIDDEN, hd * P:hd * P + HD].set(
                lp["q_w"][:, hd * HD:(hd + 1) * HD].astype(jnp.bfloat16))
            wq = wq.at[:HIDDEN, (NH + hd) * P:(NH + hd) * P + HD].set(
                lp["k_w"][:, hd * HD:(hd + 1) * HD].astype(jnp.bfloat16))
            wq = wq.at[:HIDDEN, (2 * NH + hd) * P:(2 * NH + hd) * P + HD].set(
                lp["v_w"][:, hd * HD:(hd + 1) * HD].astype(jnp.bfloat16))
        wqkv.append(wq)
        # attention-output weight, rows grouped per head and padded to 128
        wo = jnp.zeros((NH * P, P), jnp.bfloat16)
        for hd in range(NH):
            wo = wo.at[hd * P:hd * P + HD, :HIDDEN].set(
                lp["ao_w"][hd * HD:(hd + 1) * HD, :].astype(jnp.bfloat16))
        wao.append(wo)
        wsq.append(_pad_mat(lp["ff1_w"], P, P))
        wsq.append(_pad_mat(lp["ff2_w"], P, P))
        for hd in range(NH):
            vec_rows.append(_pad_row(lp["q_b"][hd * HD:(hd + 1) * HD]))
        for hd in range(NH):
            vec_rows.append(_pad_row(lp["k_b"][hd * HD:(hd + 1) * HD]))
        for hd in range(NH):
            vec_rows.append(_pad_row(lp["v_b"][hd * HD:(hd + 1) * HD]))
        vec_rows += [_pad_row(lp["ao_b"]),
                     _pad_row(lp["ao_ln_g"]), _pad_row(lp["ao_ln_b"]),
                     _pad_row(lp["ff1_b"]), _pad_row(lp["ff2_b"]),
                     _pad_row(lp["ff_ln_g"]), _pad_row(lp["ff_ln_b"])]
    wsq.append(_pad_mat(params["cls_w"], P, P))         # classifier matrix last

    packed["wqkv"] = jnp.stack(wqkv, axis=0)            # [L, 128, 6*128] bf16
    packed["wao"] = jnp.stack(wao, axis=0)              # [L, 2*128, 128]  bf16
    packed["wsq"] = jnp.stack(wsq, axis=0)              # [2L+1, 128, 128] bf16
    packed["vecs"] = jnp.stack(vec_rows, axis=0)        # [3+13L, 128]     f32
    return packed


def _pick_batch_tile(B, S):
    """Largest divisor of B whose row count fits one MXU pass and sublane tiling."""
    bt = 1
    for cand in range(1, B + 1):
        if B % cand == 0 and cand * S <= MAX_ROWS_PER_STEP and (cand * S) % 8 == 0:
            bt = cand
    if (bt * S) % 8:
        # TODO(synk): row-pad tiles when S is not a multiple of 8.
        raise NotImplementedError("BATCH_TILE * S must be a multiple of 8")
    return bt


# ---------------- forward (returns (loss, logits), like return_dict=False) ----------------
def bert_forward(packed, input_id, mask, label):
    B, S = input_id.shape
    bt = _pick_batch_tile(B, S)         # sequences folded into the matmul M dimension
    n_tiles = B // bt
    m_tile = bt * S

    # Embeddings (XLA glue): lane-padded tables -> lane-dense [B*S, 128] slab.
    # TODO(synk): fuse the word-embedding gather into the kernel (scalar prefetch)
    # once B*S is large enough that this HBM round trip matters.
    word = jnp.take(packed["word_emb"], input_id, axis=0)           # [B,S,P]
    pos = packed["pos_emb"][:S][None, :, :]                         # [1,S,P]
    tok = packed["type_emb"][0][None, None, :]                      # token_type_ids = 0
    emb = (word + pos + tok).reshape(B * S, PAD)                    # [B*S, P]

    # Per-tile additive attention mask: block-diagonal (no cross-sequence
    # attention inside a folded tile) + HF-style key padding mask.
    key_valid = mask.astype(jnp.float32).reshape(n_tiles, m_tile)
    seq_ids = jnp.repeat(jnp.arange(bt), S)                         # [m_tile]
    same_seq = (seq_ids[:, None] == seq_ids[None, :]).astype(jnp.float32)
    allowed = same_seq[None, :, :] * key_valid[:, None, :]          # [T, m, m]
    attn_bias = (1.0 - allowed) * NEG_INF

    def full(a):   # whole-array resident block, same tile at every grid step
        nd = a.ndim
        return pl.BlockSpec(a.shape, lambda i, _nd=nd: (0,) * _nd)

    logits_flat = pl.pallas_call(
        _bert_stack_kernel,
        out_shape=jax.ShapeDtypeStruct((B * S, PAD), jnp.float32),
        grid=(n_tiles,),
        in_specs=[
            pl.BlockSpec((m_tile, PAD), lambda i: (i, 0)),           # activations
            pl.BlockSpec((1, m_tile, m_tile), lambda i: (i, 0, 0)),  # additive mask
            full(packed["wqkv"]),
            full(packed["wao"]),
            full(packed["wsq"]),
            full(packed["vecs"]),
        ],
        out_specs=pl.BlockSpec((m_tile, PAD), lambda i: (i, 0)),     # lane-dense logits slab
        compiler_params=pltpu.CompilerParams(
            dimension_semantics=("parallel",)),
    )(emb, attn_bias, packed["wqkv"], packed["wao"], packed["wsq"], packed["vecs"])

    logits = logits_flat.reshape(B, S, PAD)[..., :NUM_LABELS]       # [B,S,NUM_LABELS]

    # Token-classification cross-entropy with ignore_index=-100 (XLA glue)
    lf = logits.reshape(-1, NUM_LABELS)
    yf = label.reshape(-1)
    valid = yf != -100
    safe_y = jnp.where(valid, yf, 0)
    logp = jax.nn.log_softmax(lf, axis=-1)
    nll = -jnp.take_along_axis(logp, safe_y[:, None], axis=-1)[:, 0]
    loss = jnp.sum(jnp.where(valid, nll, 0.0)) / jnp.maximum(jnp.sum(valid), 1)
    return loss, logits


if __name__ == "__main__":
    key = jax.random.PRNGKey(0)
    pkey, ikey, lkey = jax.random.split(key, 3)
    params = init_params(pkey)
    packed = pack_params(params)     # one-time lane-dense packing, outside jit

    B, S = 2, 8
    input_id = jax.random.randint(ikey, (B, S), 0, VOCAB, dtype=jnp.int32)
    mask = jnp.array([[1] * S, [1] * (S - 2) + [0, 0]], dtype=jnp.int32)
    label = jax.random.randint(lkey, (B, S), 0, NUM_LABELS, dtype=jnp.int32)
    label = jnp.where(mask == 1, label, -100)   # padded tokens ignored in the loss

    fwd = jax.jit(bert_forward)
    loss, logits = fwd(packed, input_id, mask, label)
    jax.block_until_ready((loss, logits))
    assert logits.shape == (B, S, NUM_LABELS)
    assert bool(jnp.isfinite(loss))
    print("KERNEL_OK")
</pallas_src>

<mosaic_0001>
module attributes {stable_mosaic.version = 11 : i64} {
  func.func @_bert_stack_kernel(%arg0: i32, %arg1: memref<16x128xf32, #tpu.memory_space<vmem>>, %arg2: memref<1x16x16xf32, #tpu.memory_space<vmem>>, %arg3: memref<2x128x768xbf16, #tpu.memory_space<vmem>>, %arg4: memref<2x256x128xbf16, #tpu.memory_space<vmem>>, %arg5: memref<5x128x128xbf16, #tpu.memory_space<vmem>>, %arg6: memref<29x128xf32, #tpu.memory_space<vmem>>, %arg7: memref<16x128xf32, #tpu.memory_space<vmem>>) attributes {dimension_semantics = [#tpu.dimension_semantics<parallel>], iteration_bounds = array<i64: 1>, scalar_prefetch = 0 : i64, scratch_operands = 0 : i64, tpu.core_type = #tpu.core_type<tc>, window_params = [{transform_indices = @transform_0, window_bounds = array<i64: 16, 128>}, {transform_indices = @transform_1, window_bounds = array<i64: 1, 16, 16>}, {pipeline_mode = #tpu.pipeline_mode<synchronous>, transform_indices = @transform_2, window_bounds = array<i64: 2, 128, 768>}, {pipeline_mode = #tpu.pipeline_mode<synchronous>, transform_indices = @transform_3, window_bounds = array<i64: 2, 256, 128>}, {pipeline_mode = #tpu.pipeline_mode<synchronous>, transform_indices = @transform_4, window_bounds = array<i64: 5, 128, 128>}, {pipeline_mode = #tpu.pipeline_mode<synchronous>, transform_indices = @transform_5, window_bounds = array<i64: 29, 128>}, {transform_indices = @transform_6, window_bounds = array<i64: 16, 128>}]} {
    %0 = tpu.iota {dimensions = array<i32: 1>} : vector<1x128xi32>
    %c32_i32 = arith.constant 32 : i32
    %1 = vector.broadcast %c32_i32 : i32 to vector<1x128xi32>
    %2 = arith.cmpi slt, %0, %1 : vector<1x128xi32>
    %3 = arith.extui %2 : vector<1x128xi1> to vector<1x128xi32>
    %4 = arith.sitofp %3 : vector<1x128xi32> to vector<1x128xf32>
    %c0 = arith.constant 0 : index
    %c0_0 = arith.constant 0 : index
    %5 = vector.load %arg1[%c0, %c0_0] : memref<16x128xf32, #tpu.memory_space<vmem>>, vector<16x128xf32>
    %c0_1 = arith.constant 0 : index
    %c0_2 = arith.constant 0 : index
    %c0_3 = arith.constant 0 : index
    %6 = vector.load %arg2[%c0_1, %c0_2, %c0_3] : memref<1x16x16xf32, #tpu.memory_space<vmem>>, vector<1x16x16xf32>
    %7 = vector.shape_cast %6 : vector<1x16x16xf32> to vector<16x16xf32>
    %cst = arith.constant dense<0.000000e+00> : vector<16xf32>
    %8 = vector.multi_reduction <add>, %5, %cst [1] : vector<16x128xf32> to vector<16xf32>
    %9 = vector.shape_cast %8 : vector<16xf32> to vector<16x1xf32>
    %cst_4 = arith.constant 3.125000e-02 : f32
    %10 = vector.broadcast %cst_4 : f32 to vector<16x1xf32>
    %11 = arith.mulf %9, %10 : vector<16x1xf32>
    %12 = vector.broadcast %11 : vector<16x1xf32> to vector<16x128xf32>
    %13 = arith.subf %5, %12 : vector<16x128xf32>
    %14 = vector.broadcast %4 : vector<1x128xf32> to vector<16x128xf32>
    %15 = arith.mulf %13, %14 : vector<16x128xf32>
    %16 = arith.mulf %15, %15 : vector<16x128xf32>
    %cst_5 = arith.constant dense<0.000000e+00> : vector<16xf32>
    %17 = vector.multi_reduction <add>, %16, %cst_5 [1] : vector<16x128xf32> to vector<16xf32>
    %18 = vector.shape_cast %17 : vector<16xf32> to vector<16x1xf32>
    %cst_6 = arith.constant 3.125000e-02 : f32
    %19 = vector.broadcast %cst_6 : f32 to vector<16x1xf32>
    %20 = arith.mulf %18, %19 : vector<16x1xf32>
    %cst_7 = arith.constant 9.99999996E-13 : f32
    %21 = vector.broadcast %cst_7 : f32 to vector<16x1xf32>
    %22 = arith.addf %20, %21 : vector<16x1xf32>
    %23 = math.rsqrt %22 : vector<16x1xf32>
    %24 = vector.broadcast %23 : vector<16x1xf32> to vector<16x128xf32>
    %25 = arith.mulf %15, %24 : vector<16x128xf32>
    %c0_8 = arith.constant 0 : index
    %c0_9 = arith.constant 0 : index
    %26 = vector.load %arg6[%c0_8, %c0_9] : memref<29x128xf32, #tpu.memory_space<vmem>>, vector<1x128xf32>
    %27 = vector.broadcast %26 : vector<1x128xf32> to vector<16x128xf32>
    %28 = arith.mulf %25, %27 : vector<16x128xf32>
    %c1 = arith.constant 1 : index
    %c0_10 = arith.constant 0 : index
    %29 = vector.load %arg6[%c1, %c0_10] : memref<29x128xf32, #tpu.memory_space<vmem>>, vector<1x128xf32>
    %30 = vector.broadcast %29 : vector<1x128xf32> to vector<16x128xf32>
    %31 = arith.addf %28, %30 : vector<16x128xf32>
    %c0_11 = arith.constant 0 : index
    %c0_12 = arith.constant 0 : index
    %c0_13 = arith.constant 0 : index
    %32 = vector.load %arg3[%c0_11, %c0_12, %c0_13] : memref<2x128x768xbf16, #tpu.memory_space<vmem>>, vector<1x128x768xbf16>
    %33 = vector.shape_cast %32 : vector<1x128x768xbf16> to vector<128x768xbf16>
    %34 = arith.truncf %31 : vector<16x128xf32> to vector<16x128xbf16>
    %cst_14 = arith.constant dense<0.000000e+00> : vector<16x768xf32>
    %35 = tpu.matmul %34, %33, %cst_14 {dimension_numbers = #tpu.dot_dimension_numbers<[1], [0], [0], [1], [0, 0, 1, 1], [], []>} : vector<16x128xbf16>, vector<128x768xbf16>, vector<16x768xf32> -> vector<16x768xf32>
    %36 = vector.extract_strided_slice %35 {offsets = [0, 0], sizes = [16, 128], strides = [1, 1]} : vector<16x768xf32> to vector<16x128xf32>
    %c3 = arith.constant 3 : index
    %c0_15 = arith.constant 0 : index
    %37 = vector.load %arg6[%c3, %c0_15] : memref<29x128xf32, #tpu.memory_space<vmem>>, vector<1x128xf32>
    %38 = vector.broadcast %37 : vector<1x128xf32> to vector<16x128xf32>
    %39 = arith.addf %36, %38 : vector<16x128xf32>
    %40 = vector.extract_strided_slice %35 {offsets = [0, 256], sizes = [16, 128], strides = [1, 1]} : vector<16x768xf32> to vector<16x128xf32>
    %c5 = arith.constant 5 : index
    %c0_16 = arith.constant 0 : index
    %41 = vector.load %arg6[%c5, %c0_16] : memref<29x128xf32, #tpu.memory_space<vmem>>, vector<1x128xf32>
    %42 = vector.broadcast %41 : vector<1x128xf32> to vector<16x128xf32>
    %43 = arith.addf %40, %42 : vector<16x128xf32>
    %44 = vector.extract_strided_slice %35 {offsets = [0, 512], sizes = [16, 128], strides = [1, 1]} : vector<16x768xf32> to vector<16x128xf32>
    %c7 = arith.constant 7 : index
    %c0_17 = arith.constant 0 : index
    %45 = vector.load %arg6[%c7, %c0_17] : memref<29x128xf32, #tpu.memory_space<vmem>>, vector<1x128xf32>
    %46 = vector.broadcast %45 : vector<1x128xf32> to vector<16x128xf32>
    %47 = arith.addf %44, %46 : vector<16x128xf32>
    %48 = arith.truncf %39 : vector<16x128xf32> to vector<16x128xbf16>
    %49 = arith.truncf %43 : vector<16x128xf32> to vector<16x128xbf16>
    %cst_18 = arith.constant dense<0.000000e+00> : vector<16x16xf32>
    %50 = tpu.matmul %48, %49, %cst_18 {dimension_numbers = #tpu.dot_dimension_numbers<[1], [1], [0], [0], [0, 0, 1, 0], [], []>} : vector<16x128xbf16>, vector<16x128xbf16>, vector<16x16xf32> -> vector<16x16xf32>
    %cst_19 = arith.constant 2.500000e-01 : f32
    %51 = vector.broadcast %cst_19 : f32 to vector<16x16xf32>
    %52 = arith.mulf %50, %51 : vector<16x16xf32>
    %53 = arith.addf %52, %7 : vector<16x16xf32>
    %cst_20 = arith.constant dense<0xFF800000> : vector<16xf32>
    %54 = vector.multi_reduction <maximumf>, %53, %cst_20 [1] : vector<16x16xf32> to vector<16xf32>
    %55 = vector.shape_cast %54 : vector<16xf32> to vector<16x1xf32>
    %56 = vector.broadcast %55 : vector<16x1xf32> to vector<16x16xf32>
    %57 = arith.subf %53, %56 : vector<16x16xf32>
    %58 = math.exp %57 : vector<16x16xf32>
    %cst_21 = arith.constant dense<0.000000e+00> : vector<16xf32>
    %59 = vector.multi_reduction <add>, %58, %cst_21 [1] : vector<16x16xf32> to vector<16xf32>
    %60 = vector.shape_cast %59 : vector<16xf32> to vector<16x1xf32>
    %61 = vector.broadcast %60 : vector<16x1xf32> to vector<16x16xf32>
    %62 = arith.divf %58, %61 : vector<16x16xf32>
    %63 = arith.truncf %62 : vector<16x16xf32> to vector<16x16xbf16>
    %64 = arith.truncf %47 : vector<16x128xf32> to vector<16x128xbf16>
    %cst_22 = arith.constant dense<0.000000e+00> : vector<16x128xf32>
    %65 = tpu.matmul %63, %64, %cst_22 {dimension_numbers = #tpu.dot_dimension_numbers<[1], [0], [0], [1], [0, 0, 1, 1], [], []>} : vector<16x16xbf16>, vector<16x128xbf16>, vector<16x128xf32> -> vector<16x128xf32>
    %66 = vector.extract_strided_slice %35 {offsets = [0, 128], sizes = [16, 128], strides = [1, 1]} : vector<16x768xf32> to vector<16x128xf32>
    %c4 = arith.constant 4 : index
    %c0_23 = arith.constant 0 : index
    %67 = vector.load %arg6[%c4, %c0_23] : memref<29x128xf32, #tpu.memory_space<vmem>>, vector<1x128xf32>
    %68 = vector.broadcast %67 : vector<1x128xf32> to vector<16x128xf32>
    %69 = arith.addf %66, %68 : vector<16x128xf32>
    %70 = vector.extract_strided_slice %35 {offsets = [0, 384], sizes = [16, 128], strides = [1, 1]} : vector<16x768xf32> to vector<16x128xf32>
    %c6 = arith.constant 6 : index
    %c0_24 = arith.constant 0 : index
    %71 = vector.load %arg6[%c6, %c0_24] : memref<29x128xf32, #tpu.memory_space<vmem>>, vector<1x128xf32>
    %72 = vector.broadcast %71 : vector<1x128xf32> to vector<16x128xf32>
    %73 = arith.addf %70, %72 : vector<16x128xf32>
    %74 = vector.extract_strided_slice %35 {offsets = [0, 640], sizes = [16, 128], strides = [1, 1]} : vector<16x768xf32> to vector<16x128xf32>
    %c8 = arith.constant 8 : index
    %c0_25 = arith.constant 0 : index
    %75 = vector.load %arg6[%c8, %c0_25] : memref<29x128xf32, #tpu.memory_space<vmem>>, vector<1x128xf32>
    %76 = vector.broadcast %75 : vector<1x128xf32> to vector<16x128xf32>
    %77 = arith.addf %74, %76 : vector<16x128xf32>
    %78 = arith.truncf %69 : vector<16x128xf32> to vector<16x128xbf16>
    %79 = arith.truncf %73 : vector<16x128xf32> to vector<16x128xbf16>
    %cst_26 = arith.constant dense<0.000000e+00> : vector<16x16xf32>
    %80 = tpu.matmul %78, %79, %cst_26 {dimension_numbers = #tpu.dot_dimension_numbers<[1], [1], [0], [0], [0, 0, 1, 0], [], []>} : vector<16x128xbf16>, vector<16x128xbf16>, vector<16x16xf32> -> vector<16x16xf32>
    %cst_27 = arith.constant 2.500000e-01 : f32
    %81 = vector.broadcast %cst_27 : f32 to vector<16x16xf32>
    %82 = arith.mulf %80, %81 : vector<16x16xf32>
    %83 = arith.addf %82, %7 : vector<16x16xf32>
    %cst_28 = arith.constant dense<0xFF800000> : vector<16xf32>
    %84 = vector.multi_reduction <maximumf>, %83, %cst_28 [1] : vector<16x16xf32> to vector<16xf32>
    %85 = vector.shape_cast %84 : vector<16xf32> to vector<16x1xf32>
    %86 = vector.broadcast %85 : vector<16x1xf32> to vector<16x16xf32>
    %87 = arith.subf %83, %86 : vector<16x16xf32>
    %88 = math.exp %87 : vector<16x16xf32>
    %cst_29 = arith.constant dense<0.000000e+00> : vector<16xf32>
    %89 = vector.multi_reduction <add>, %88, %cst_29 [1] : vector<16x16xf32> to vector<16xf32>
    %90 = vector.shape_cast %89 : vector<16xf32> to vector<16x1xf32>
    %91 = vector.broadcast %90 : vector<16x1xf32> to vector<16x16xf32>
    %92 = arith.divf %88, %91 : vector<16x16xf32>
    %93 = arith.truncf %92 : vector<16x16xf32> to vector<16x16xbf16>
    %94 = arith.truncf %77 : vector<16x128xf32> to vector<16x128xbf16>
    %cst_30 = arith.constant dense<0.000000e+00> : vector<16x128xf32>
    %95 = tpu.matmul %93, %94, %cst_30 {dimension_numbers = #tpu.dot_dimension_numbers<[1], [0], [0], [1], [0, 0, 1, 1], [], []>} : vector<16x16xbf16>, vector<16x128xbf16>, vector<16x128xf32> -> vector<16x128xf32>
    %96 = tpu.concatenate %65, %95 in 1 : vector<16x128xf32>, vector<16x128xf32> -> vector<16x256xf32>
    %c0_31 = arith.constant 0 : index
    %c0_32 = arith.constant 0 : index
    %c0_33 = arith.constant 0 : index
    %97 = vector.load %arg4[%c0_31, %c0_32, %c0_33] : memref<2x256x128xbf16, #tpu.memory_space<vmem>>, vector<1x256x128xbf16>
    %98 = vector.shape_cast %97 : vector<1x256x128xbf16> to vector<256x128xbf16>
    %99 = arith.truncf %96 : vector<16x256xf32> to vector<16x256xbf16>
    %cst_34 = arith.constant dense<0.000000e+00> : vector<16x128xf32>
    %100 = tpu.matmul %99, %98, %cst_34 {dimension_numbers = #tpu.dot_dimension_numbers<[1], [0], [0], [1], [0, 0, 1, 1], [], []>} : vector<16x256xbf16>, vector<256x128xbf16>, vector<16x128xf32> -> vector<16x128xf32>
    %c9 = arith.constant 9 : index
    %c0_35 = arith.constant 0 : index
    %101 = vector.load %arg6[%c9, %c0_35] : memref<29x128xf32, #tpu.memory_space<vmem>>, vector<1x128xf32>
    %102 = vector.broadcast %101 : vector<1x128xf32> to vector<16x128xf32>
    %103 = arith.addf %100, %102 : vector<16x128xf32>
    %104 = arith.addf %103, %31 : vector<16x128xf32>
    %cst_36 = arith.constant dense<0.000000e+00> : vector<16xf32>
    %105 = vector.multi_reduction <add>, %104, %cst_36 [1] : vector<16x128xf32> to vector<16xf32>
    %106 = vector.shape_cast %105 : vector<16xf32> to vector<16x1xf32>
    %cst_37 = arith.constant 3.125000e-02 : f32
    %107 = vector.broadcast %cst_37 : f32 to vector<16x1xf32>
    %108 = arith.mulf %106, %107 : vector<16x1xf32>
    %109 = vector.broadcast %108 : vector<16x1xf32> to vector<16x128xf32>
    %110 = arith.subf %104, %109 : vector<16x128xf32>
    %111 = vector.broadcast %4 : vector<1x128xf32> to vector<16x128xf32>
    %112 = arith.mulf %110, %111 : vector<16x128xf32>
    %113 = arith.mulf %112, %112 : vector<16x128xf32>
    %cst_38 = arith.constant dense<0.000000e+00> : vector<16xf32>
    %114 = vector.multi_reduction <add>, %113, %cst_38 [1] : vector<16x128xf32> to vector<16xf32>
    %115 = vector.shape_cast %114 : vector<16xf32> to vector<16x1xf32>
    %cst_39 = arith.constant 3.125000e-02 : f32
    %116 = vector.broadcast %cst_39 : f32 to vector<16x1xf32>
    %117 = arith.mulf %115, %116 : vector<16x1xf32>
    %cst_40 = arith.constant 9.99999996E-13 : f32
    %118 = vector.broadcast %cst_40 : f32 to vector<16x1xf32>
    %119 = arith.addf %117, %118 : vector<16x1xf32>
    %120 = math.rsqrt %119 : vector<16x1xf32>
    %121 = vector.broadcast %120 : vector<16x1xf32> to vector<16x128xf32>
    %122 = arith.mulf %112, %121 : vector<16x128xf32>
    %c10 = arith.constant 10 : index
    %c0_41 = arith.constant 0 : index
    %123 = vector.load %arg6[%c10, %c0_41] : memref<29x128xf32, #tpu.memory_space<vmem>>, vector<1x128xf32>
    %124 = vector.broadcast %123 : vector<1x128xf32> to vector<16x128xf32>
    %125 = arith.mulf %122, %124 : vector<16x128xf32>
    %c11 = arith.constant 11 : index
    %c0_42 = arith.constant 0 : index
    %126 = vector.load %arg6[%c11, %c0_42] : memref<29x128xf32, #tpu.memory_space<vmem>>, vector<1x128xf32>
    %127 = vector.broadcast %126 : vector<1x128xf32> to vector<16x128xf32>
    %128 = arith.addf %125, %127 : vector<16x128xf32>
    %c0_43 = arith.constant 0 : index
    %c0_44 = arith.constant 0 : index
    %c0_45 = arith.constant 0 : index
    %129 = vector.load %arg5[%c0_43, %c0_44, %c0_45] : memref<5x128x128xbf16, #tpu.memory_space<vmem>>, vector<1x128x128xbf16>
    %130 = vector.shape_cast %129 : vector<1x128x128xbf16> to vector<128x128xbf16>
    %131 = arith.truncf %128 : vector<16x128xf32> to vector<16x128xbf16>
    %cst_46 = arith.constant dense<0.000000e+00> : vector<16x128xf32>
    %132 = tpu.matmul %131, %130, %cst_46 {dimension_numbers = #tpu.dot_dimension_numbers<[1], [0], [0], [1], [0, 0, 1, 1], [], []>} : vector<16x128xbf16>, vector<128x128xbf16>, vector<16x128xf32> -> vector<16x128xf32>
    %c12 = arith.constant 12 : index
    %c0_47 = arith.constant 0 : index
    %133 = vector.load %arg6[%c12, %c0_47] : memref<29x128xf32, #tpu.memory_space<vmem>>, vector<1x128xf32>
    %134 = vector.broadcast %133 : vector<1x128xf32> to vector<16x128xf32>
    %135 = arith.addf %132, %134 : vector<16x128xf32>
    %cst_48 = arith.constant 5.000000e-01 : f32
    %136 = vector.broadcast %cst_48 : f32 to vector<16x128xf32>
    %137 = arith.mulf %136, %135 : vector<16x128xf32>
    %cst_49 = arith.constant 4.471500e-02 : f32
    %138 = vector.broadcast %cst_49 : f32 to vector<16x128xf32>
    %139 = arith.mulf %138, %135 : vector<16x128xf32>
    %140 = arith.mulf %139, %135 : vector<16x128xf32>
    %141 = arith.mulf %140, %135 : vector<16x128xf32>
    %142 = arith.addf %135, %141 : vector<16x128xf32>
    %cst_50 = arith.constant 0.797884583 : f32
    %143 = vector.broadcast %cst_50 : f32 to vector<16x128xf32>
    %144 = arith.mulf %143, %142 : vector<16x128xf32>
    %145 = math.tanh %144 : vector<16x128xf32>
    %cst_51 = arith.constant 1.000000e+00 : f32
    %146 = vector.broadcast %cst_51 : f32 to vector<16x128xf32>
    %147 = arith.addf %146, %145 : vector<16x128xf32>
    %148 = arith.mulf %137, %147 : vector<16x128xf32>
    %c1_52 = arith.constant 1 : index
    %c0_53 = arith.constant 0 : index
    %c0_54 = arith.constant 0 : index
    %149 = vector.load %arg5[%c1_52, %c0_53, %c0_54] : memref<5x128x128xbf16, #tpu.memory_space<vmem>>, vector<1x128x128xbf16>
    %150 = vector.shape_cast %149 : vector<1x128x128xbf16> to vector<128x128xbf16>
    %151 = arith.truncf %148 : vector<16x128xf32> to vector<16x128xbf16>
    %cst_55 = arith.constant dense<0.000000e+00> : vector<16x128xf32>
    %152 = tpu.matmul %151, %150, %cst_55 {dimension_numbers = #tpu.dot_dimension_numbers<[1], [0], [0], [1], [0, 0, 1, 1], [], []>} : vector<16x128xbf16>, vector<128x128xbf16>, vector<16x128xf32> -> vector<16x128xf32>
    %c13 = arith.constant 13 : index
    %c0_56 = arith.constant 0 : index
    %153 = vector.load %arg6[%c13, %c0_56] : memref<29x128xf32, #tpu.memory_space<vmem>>, vector<1x128xf32>
    %154 = vector.broadcast %153 : vector<1x128xf32> to vector<16x128xf32>
    %155 = arith.addf %152, %154 : vector<16x128xf32>
    %156 = arith.addf %155, %128 : vector<16x128xf32>
    %cst_57 = arith.constant dense<0.000000e+00> : vector<16xf32>
    %157 = vector.multi_reduction <add>, %156, %cst_57 [1] : vector<16x128xf32> to vector<16xf32>
    %158 = vector.shape_cast %157 : vector<16xf32> to vector<16x1xf32>
    %cst_58 = arith.constant 3.125000e-02 : f32
    %159 = vector.broadcast %cst_58 : f32 to vector<16x1xf32>
    %160 = arith.mulf %158, %159 : vector<16x1xf32>
    %161 = vector.broadcast %160 : vector<16x1xf32> to vector<16x128xf32>
    %162 = arith.subf %156, %161 : vector<16x128xf32>
    %163 = vector.broadcast %4 : vector<1x128xf32> to vector<16x128xf32>
    %164 = arith.mulf %162, %163 : vector<16x128xf32>
    %165 = arith.mulf %164, %164 : vector<16x128xf32>
    %cst_59 = arith.constant dense<0.000000e+00> : vector<16xf32>
    %166 = vector.multi_reduction <add>, %165, %cst_59 [1] : vector<16x128xf32> to vector<16xf32>
    %167 = vector.shape_cast %166 : vector<16xf32> to vector<16x1xf32>
    %cst_60 = arith.constant 3.125000e-02 : f32
    %168 = vector.broadcast %cst_60 : f32 to vector<16x1xf32>
    %169 = arith.mulf %167, %168 : vector<16x1xf32>
    %cst_61 = arith.constant 9.99999996E-13 : f32
    %170 = vector.broadcast %cst_61 : f32 to vector<16x1xf32>
    %171 = arith.addf %169, %170 : vector<16x1xf32>
    %172 = math.rsqrt %171 : vector<16x1xf32>
    %173 = vector.broadcast %172 : vector<16x1xf32> to vector<16x128xf32>
    %174 = arith.mulf %164, %173 : vector<16x128xf32>
    %c14 = arith.constant 14 : index
    %c0_62 = arith.constant 0 : index
    %175 = vector.load %arg6[%c14, %c0_62] : memref<29x128xf32, #tpu.memory_space<vmem>>, vector<1x128xf32>
    %176 = vector.broadcast %175 : vector<1x128xf32> to vector<16x128xf32>
    %177 = arith.mulf %174, %176 : vector<16x128xf32>
    %c15 = arith.constant 15 : index
    %c0_63 = arith.constant 0 : index
    %178 = vector.load %arg6[%c15, %c0_63] : memref<29x128xf32, #tpu.memory_space<vmem>>, vector<1x128xf32>
    %179 = vector.broadcast %178 : vector<1x128xf32> to vector<16x128xf32>
    %180 = arith.addf %177, %179 : vector<16x128xf32>
    %c1_64 = arith.constant 1 : index
    %c0_65 = arith.constant 0 : index
    %c0_66 = arith.constant 0 : index
    %181 = vector.load %arg3[%c1_64, %c0_65, %c0_66] : memref<2x128x768xbf16, #tpu.memory_space<vmem>>, vector<1x128x768xbf16>
    %182 = vector.shape_cast %181 : vector<1x128x768xbf16> to vector<128x768xbf16>
    %183 = arith.truncf %180 : vector<16x128xf32> to vector<16x128xbf16>
    %cst_67 = arith.constant dense<0.000000e+00> : vector<16x768xf32>
    %184 = tpu.matmul %183, %182, %cst_67 {dimension_numbers = #tpu.dot_dimension_numbers<[1], [0], [0], [1], [0, 0, 1, 1], [], []>} : vector<16x128xbf16>, vector<128x768xbf16>, vector<16x768xf32> -> vector<16x768xf32>
    %185 = vector.extract_strided_slice %184 {offsets = [0, 0], sizes = [16, 128], strides = [1, 1]} : vector<16x768xf32> to vector<16x128xf32>
    %c16 = arith.constant 16 : index
    %c0_68 = arith.constant 0 : index
    %186 = vector.load %arg6[%c16, %c0_68] : memref<29x128xf32, #tpu.memory_space<vmem>>, vector<1x128xf32>
    %187 = vector.broadcast %186 : vector<1x128xf32> to vector<16x128xf32>
    %188 = arith.addf %185, %187 : vector<16x128xf32>
    %189 = vector.extract_strided_slice %184 {offsets = [0, 256], sizes = [16, 128], strides = [1, 1]} : vector<16x768xf32> to vector<16x128xf32>
    %c18 = arith.constant 18 : index
    %c0_69 = arith.constant 0 : index
    %190 = vector.load %arg6[%c18, %c0_69] : memref<29x128xf32, #tpu.memory_space<vmem>>, vector<1x128xf32>
    %191 = vector.broadcast %190 : vector<1x128xf32> to vector<16x128xf32>
    %192 = arith.addf %189, %191 : vector<16x128xf32>
    %193 = vector.extract_strided_slice %184 {offsets = [0, 512], sizes = [16, 128], strides = [1, 1]} : vector<16x768xf32> to vector<16x128xf32>
    %c20 = arith.constant 20 : index
    %c0_70 = arith.constant 0 : index
    %194 = vector.load %arg6[%c20, %c0_70] : memref<29x128xf32, #tpu.memory_space<vmem>>, vector<1x128xf32>
    %195 = vector.broadcast %194 : vector<1x128xf32> to vector<16x128xf32>
    %196 = arith.addf %193, %195 : vector<16x128xf32>
    %197 = arith.truncf %188 : vector<16x128xf32> to vector<16x128xbf16>
    %198 = arith.truncf %192 : vector<16x128xf32> to vector<16x128xbf16>
    %cst_71 = arith.constant dense<0.000000e+00> : vector<16x16xf32>
    %199 = tpu.matmul %197, %198, %cst_71 {dimension_numbers = #tpu.dot_dimension_numbers<[1], [1], [0], [0], [0, 0, 1, 0], [], []>} : vector<16x128xbf16>, vector<16x128xbf16>, vector<16x16xf32> -> vector<16x16xf32>
    %cst_72 = arith.constant 2.500000e-01 : f32
    %200 = vector.broadcast %cst_72 : f32 to vector<16x16xf32>
    %201 = arith.mulf %199, %200 : vector<16x16xf32>
    %202 = arith.addf %201, %7 : vector<16x16xf32>
    %cst_73 = arith.constant dense<0xFF800000> : vector<16xf32>
    %203 = vector.multi_reduction <maximumf>, %202, %cst_73 [1] : vector<16x16xf32> to vector<16xf32>
    %204 = vector.shape_cast %203 : vector<16xf32> to vector<16x1xf32>
    %205 = vector.broadcast %204 : vector<16x1xf32> to vector<16x16xf32>
    %206 = arith.subf %202, %205 : vector<16x16xf32>
    %207 = math.exp %206 : vector<16x16xf32>
    %cst_74 = arith.constant dense<0.000000e+00> : vector<16xf32>
    %208 = vector.multi_reduction <add>, %207, %cst_74 [1] : vector<16x16xf32> to vector<16xf32>
    %209 = vector.shape_cast %208 : vector<16xf32> to vector<16x1xf32>
    %210 = vector.broadcast %209 : vector<16x1xf32> to vector<16x16xf32>
    %211 = arith.divf %207, %210 : vector<16x16xf32>
    %212 = arith.truncf %211 : vector<16x16xf32> to vector<16x16xbf16>
    %213 = arith.truncf %196 : vector<16x128xf32> to vector<16x128xbf16>
    %cst_75 = arith.constant dense<0.000000e+00> : vector<16x128xf32>
    %214 = tpu.matmul %212, %213, %cst_75 {dimension_numbers = #tpu.dot_dimension_numbers<[1], [0], [0], [1], [0, 0, 1, 1], [], []>} : vector<16x16xbf16>, vector<16x128xbf16>, vector<16x128xf32> -> vector<16x128xf32>
    %215 = vector.extract_strided_slice %184 {offsets = [0, 128], sizes = [16, 128], strides = [1, 1]} : vector<16x768xf32> to vector<16x128xf32>
    %c17 = arith.constant 17 : index
    %c0_76 = arith.constant 0 : index
    %216 = vector.load %arg6[%c17, %c0_76] : memref<29x128xf32, #tpu.memory_space<vmem>>, vector<1x128xf32>
    %217 = vector.broadcast %216 : vector<1x128xf32> to vector<16x128xf32>
    %218 = arith.addf %215, %217 : vector<16x128xf32>
    %219 = vector.extract_strided_slice %184 {offsets = [0, 384], sizes = [16, 128], strides = [1, 1]} : vector<16x768xf32> to vector<16x128xf32>
    %c19 = arith.constant 19 : index
    %c0_77 = arith.constant 0 : index
    %220 = vector.load %arg6[%c19, %c0_77] : memref<29x128xf32, #tpu.memory_space<vmem>>, vector<1x128xf32>
    %221 = vector.broadcast %220 : vector<1x128xf32> to vector<16x128xf32>
    %222 = arith.addf %219, %221 : vector<16x128xf32>
    %223 = vector.extract_strided_slice %184 {offsets = [0, 640], sizes = [16, 128], strides = [1, 1]} : vector<16x768xf32> to vector<16x128xf32>
    %c21 = arith.constant 21 : index
    %c0_78 = arith.constant 0 : index
    %224 = vector.load %arg6[%c21, %c0_78] : memref<29x128xf32, #tpu.memory_space<vmem>>, vector<1x128xf32>
    %225 = vector.broadcast %224 : vector<1x128xf32> to vector<16x128xf32>
    %226 = arith.addf %223, %225 : vector<16x128xf32>
    %227 = arith.truncf %218 : vector<16x128xf32> to vector<16x128xbf16>
    %228 = arith.truncf %222 : vector<16x128xf32> to vector<16x128xbf16>
    %cst_79 = arith.constant dense<0.000000e+00> : vector<16x16xf32>
    %229 = tpu.matmul %227, %228, %cst_79 {dimension_numbers = #tpu.dot_dimension_numbers<[1], [1], [0], [0], [0, 0, 1, 0], [], []>} : vector<16x128xbf16>, vector<16x128xbf16>, vector<16x16xf32> -> vector<16x16xf32>
    %cst_80 = arith.constant 2.500000e-01 : f32
    %230 = vector.broadcast %cst_80 : f32 to vector<16x16xf32>
    %231 = arith.mulf %229, %230 : vector<16x16xf32>
    %232 = arith.addf %231, %7 : vector<16x16xf32>
    %cst_81 = arith.constant dense<0xFF800000> : vector<16xf32>
    %233 = vector.multi_reduction <maximumf>, %232, %cst_81 [1] : vector<16x16xf32> to vector<16xf32>
    %234 = vector.shape_cast %233 : vector<16xf32> to vector<16x1xf32>
    %235 = vector.broadcast %234 : vector<16x1xf32> to vector<16x16xf32>
    %236 = arith.subf %232, %235 : vector<16x16xf32>
    %237 = math.exp %236 : vector<16x16xf32>
    %cst_82 = arith.constant dense<0.000000e+00> : vector<16xf32>
    %238 = vector.multi_reduction <add>, %237, %cst_82 [1] : vector<16x16xf32> to vector<16xf32>
    %239 = vector.shape_cast %238 : vector<16xf32> to vector<16x1xf32>
    %240 = vector.broadcast %239 : vector<16x1xf32> to vector<16x16xf32>
    %241 = arith.divf %237, %240 : vector<16x16xf32>
    %242 = arith.truncf %241 : vector<16x16xf32> to vector<16x16xbf16>
    %243 = arith.truncf %226 : vector<16x128xf32> to vector<16x128xbf16>
    %cst_83 = arith.constant dense<0.000000e+00> : vector<16x128xf32>
    %244 = tpu.matmul %242, %243, %cst_83 {dimension_numbers = #tpu.dot_dimension_numbers<[1], [0], [0], [1], [0, 0, 1, 1], [], []>} : vector<16x16xbf16>, vector<16x128xbf16>, vector<16x128xf32> -> vector<16x128xf32>
    %245 = tpu.concatenate %214, %244 in 1 : vector<16x128xf32>, vector<16x128xf32> -> vector<16x256xf32>
    %c1_84 = arith.constant 1 : index
    %c0_85 = arith.constant 0 : index
    %c0_86 = arith.constant 0 : index
    %246 = vector.load %arg4[%c1_84, %c0_85, %c0_86] : memref<2x256x128xbf16, #tpu.memory_space<vmem>>, vector<1x256x128xbf16>
    %247 = vector.shape_cast %246 : vector<1x256x128xbf16> to vector<256x128xbf16>
    %248 = arith.truncf %245 : vector<16x256xf32> to vector<16x256xbf16>
    %cst_87 = arith.constant dense<0.000000e+00> : vector<16x128xf32>
    %249 = tpu.matmul %248, %247, %cst_87 {dimension_numbers = #tpu.dot_dimension_numbers<[1], [0], [0], [1], [0, 0, 1, 1], [], []>} : vector<16x256xbf16>, vector<256x128xbf16>, vector<16x128xf32> -> vector<16x128xf32>
    %c22 = arith.constant 22 : index
    %c0_88 = arith.constant 0 : index
    %250 = vector.load %arg6[%c22, %c0_88] : memref<29x128xf32, #tpu.memory_space<vmem>>, vector<1x128xf32>
    %251 = vector.broadcast %250 : vector<1x128xf32> to vector<16x128xf32>
    %252 = arith.addf %249, %251 : vector<16x128xf32>
    %253 = arith.addf %252, %180 : vector<16x128xf32>
    %cst_89 = arith.constant dense<0.000000e+00> : vector<16xf32>
    %254 = vector.multi_reduction <add>, %253, %cst_89 [1] : vector<16x128xf32> to vector<16xf32>
    %255 = vector.shape_cast %254 : vector<16xf32> to vector<16x1xf32>
    %cst_90 = arith.constant 3.125000e-02 : f32
    %256 = vector.broadcast %cst_90 : f32 to vector<16x1xf32>
    %257 = arith.mulf %255, %256 : vector<16x1xf32>
    %258 = vector.broadcast %257 : vector<16x1xf32> to vector<16x128xf32>
    %259 = arith.subf %253, %258 : vector<16x128xf32>
    %260 = vector.broadcast %4 : vector<1x128xf32> to vector<16x128xf32>
    %261 = arith.mulf %259, %260 : vector<16x128xf32>
    %262 = arith.mulf %261, %261 : vector<16x128xf32>
    %cst_91 = arith.constant dense<0.000000e+00> : vector<16xf32>
    %263 = vector.multi_reduction <add>, %262, %cst_91 [1] : vector<16x128xf32> to vector<16xf32>
    %264 = vector.shape_cast %263 : vector<16xf32> to vector<16x1xf32>
    %cst_92 = arith.constant 3.125000e-02 : f32
    %265 = vector.broadcast %cst_92 : f32 to vector<16x1xf32>
    %266 = arith.mulf %264, %265 : vector<16x1xf32>
    %cst_93 = arith.constant 9.99999996E-13 : f32
    %267 = vector.broadcast %cst_93 : f32 to vector<16x1xf32>
    %268 = arith.addf %266, %267 : vector<16x1xf32>
    %269 = math.rsqrt %268 : vector<16x1xf32>
    %270 = vector.broadcast %269 : vector<16x1xf32> to vector<16x128xf32>
    %271 = arith.mulf %261, %270 : vector<16x128xf32>
    %c23 = arith.constant 23 : index
    %c0_94 = arith.constant 0 : index
    %272 = vector.load %arg6[%c23, %c0_94] : memref<29x128xf32, #tpu.memory_space<vmem>>, vector<1x128xf32>
    %273 = vector.broadcast %272 : vector<1x128xf32> to vector<16x128xf32>
    %274 = arith.mulf %271, %273 : vector<16x128xf32>
    %c24 = arith.constant 24 : index
    %c0_95 = arith.constant 0 : index
    %275 = vector.load %arg6[%c24, %c0_95] : memref<29x128xf32, #tpu.memory_space<vmem>>, vector<1x128xf32>
    %276 = vector.broadcast %275 : vector<1x128xf32> to vector<16x128xf32>
    %277 = arith.addf %274, %276 : vector<16x128xf32>
    %c2 = arith.constant 2 : index
    %c0_96 = arith.constant 0 : index
    %c0_97 = arith.constant 0 : index
    %278 = vector.load %arg5[%c2, %c0_96, %c0_97] : memref<5x128x128xbf16, #tpu.memory_space<vmem>>, vector<1x128x128xbf16>
    %279 = vector.shape_cast %278 : vector<1x128x128xbf16> to vector<128x128xbf16>
    %280 = arith.truncf %277 : vector<16x128xf32> to vector<16x128xbf16>
    %cst_98 = arith.constant dense<0.000000e+00> : vector<16x128xf32>
    %281 = tpu.matmul %280, %279, %cst_98 {dimension_numbers = #tpu.dot_dimension_numbers<[1], [0], [0], [1], [0, 0, 1, 1], [], []>} : vector<16x128xbf16>, vector<128x128xbf16>, vector<16x128xf32> -> vector<16x128xf32>
    %c25 = arith.constant 25 : index
    %c0_99 = arith.constant 0 : index
    %282 = vector.load %arg6[%c25, %c0_99] : memref<29x128xf32, #tpu.memory_space<vmem>>, vector<1x128xf32>
    %283 = vector.broadcast %282 : vector<1x128xf32> to vector<16x128xf32>
    %284 = arith.addf %281, %283 : vector<16x128xf32>
    %cst_100 = arith.constant 5.000000e-01 : f32
    %285 = vector.broadcast %cst_100 : f32 to vector<16x128xf32>
    %286 = arith.mulf %285, %284 : vector<16x128xf32>
    %cst_101 = arith.constant 4.471500e-02 : f32
    %287 = vector.broadcast %cst_101 : f32 to vector<16x128xf32>
    %288 = arith.mulf %287, %284 : vector<16x128xf32>
    %289 = arith.mulf %288, %284 : vector<16x128xf32>
    %290 = arith.mulf %289, %284 : vector<16x128xf32>
    %291 = arith.addf %284, %290 : vector<16x128xf32>
    %cst_102 = arith.constant 0.797884583 : f32
    %292 = vector.broadcast %cst_102 : f32 to vector<16x128xf32>
    %293 = arith.mulf %292, %291 : vector<16x128xf32>
    %294 = math.tanh %293 : vector<16x128xf32>
    %cst_103 = arith.constant 1.000000e+00 : f32
    %295 = vector.broadcast %cst_103 : f32 to vector<16x128xf32>
    %296 = arith.addf %295, %294 : vector<16x128xf32>
    %297 = arith.mulf %286, %296 : vector<16x128xf32>
    %c3_104 = arith.constant 3 : index
    %c0_105 = arith.constant 0 : index
    %c0_106 = arith.constant 0 : index
    %298 = vector.load %arg5[%c3_104, %c0_105, %c0_106] : memref<5x128x128xbf16, #tpu.memory_space<vmem>>, vector<1x128x128xbf16>
    %299 = vector.shape_cast %298 : vector<1x128x128xbf16> to vector<128x128xbf16>
    %300 = arith.truncf %297 : vector<16x128xf32> to vector<16x128xbf16>
    %cst_107 = arith.constant dense<0.000000e+00> : vector<16x128xf32>
    %301 = tpu.matmul %300, %299, %cst_107 {dimension_numbers = #tpu.dot_dimension_numbers<[1], [0], [0], [1], [0, 0, 1, 1], [], []>} : vector<16x128xbf16>, vector<128x128xbf16>, vector<16x128xf32> -> vector<16x128xf32>
    %c26 = arith.constant 26 : index
    %c0_108 = arith.constant 0 : index
    %302 = vector.load %arg6[%c26, %c0_108] : memref<29x128xf32, #tpu.memory_space<vmem>>, vector<1x128xf32>
    %303 = vector.broadcast %302 : vector<1x128xf32> to vector<16x128xf32>
    %304 = arith.addf %301, %303 : vector<16x128xf32>
    %305 = arith.addf %304, %277 : vector<16x128xf32>
    %cst_109 = arith.constant dense<0.000000e+00> : vector<16xf32>
    %306 = vector.multi_reduction <add>, %305, %cst_109 [1] : vector<16x128xf32> to vector<16xf32>
    %307 = vector.shape_cast %306 : vector<16xf32> to vector<16x1xf32>
    %cst_110 = arith.constant 3.125000e-02 : f32
    %308 = vector.broadcast %cst_110 : f32 to vector<16x1xf32>
    %309 = arith.mulf %307, %308 : vector<16x1xf32>
    %310 = vector.broadcast %309 : vector<16x1xf32> to vector<16x128xf32>
    %311 = arith.subf %305, %310 : vector<16x128xf32>
    %312 = vector.broadcast %4 : vector<1x128xf32> to vector<16x128xf32>
    %313 = arith.mulf %311, %312 : vector<16x128xf32>
    %314 = arith.mulf %313, %313 : vector<16x128xf32>
    %cst_111 = arith.constant dense<0.000000e+00> : vector<16xf32>
    %315 = vector.multi_reduction <add>, %314, %cst_111 [1] : vector<16x128xf32> to vector<16xf32>
    %316 = vector.shape_cast %315 : vector<16xf32> to vector<16x1xf32>
    %cst_112 = arith.constant 3.125000e-02 : f32
    %317 = vector.broadcast %cst_112 : f32 to vector<16x1xf32>
    %318 = arith.mulf %316, %317 : vector<16x1xf32>
    %cst_113 = arith.constant 9.99999996E-13 : f32
    %319 = vector.broadcast %cst_113 : f32 to vector<16x1xf32>
    %320 = arith.addf %318, %319 : vector<16x1xf32>
    %321 = math.rsqrt %320 : vector<16x1xf32>
    %322 = vector.broadcast %321 : vector<16x1xf32> to vector<16x128xf32>
    %323 = arith.mulf %313, %322 : vector<16x128xf32>
    %c27 = arith.constant 27 : index
    %c0_114 = arith.constant 0 : index
    %324 = vector.load %arg6[%c27, %c0_114] : memref<29x128xf32, #tpu.memory_space<vmem>>, vector<1x128xf32>
    %325 = vector.broadcast %324 : vector<1x128xf32> to vector<16x128xf32>
    %326 = arith.mulf %323, %325 : vector<16x128xf32>
    %c28 = arith.constant 28 : index
    %c0_115 = arith.constant 0 : index
    %327 = vector.load %arg6[%c28, %c0_115] : memref<29x128xf32, #tpu.memory_space<vmem>>, vector<1x128xf32>
    %328 = vector.broadcast %327 : vector<1x128xf32> to vector<16x128xf32>
    %329 = arith.addf %326, %328 : vector<16x128xf32>
    %c4_116 = arith.constant 4 : index
    %c0_117 = arith.constant 0 : index
    %c0_118 = arith.constant 0 : index
    %330 = vector.load %arg5[%c4_116, %c0_117, %c0_118] : memref<5x128x128xbf16, #tpu.memory_space<vmem>>, vector<1x128x128xbf16>
    %331 = vector.shape_cast %330 : vector<1x128x128xbf16> to vector<128x128xbf16>
    %332 = arith.truncf %329 : vector<16x128xf32> to vector<16x128xbf16>
    %cst_119 = arith.constant dense<0.000000e+00> : vector<16x128xf32>
    %333 = tpu.matmul %332, %331, %cst_119 {dimension_numbers = #tpu.dot_dimension_numbers<[1], [0], [0], [1], [0, 0, 1, 1], [], []>} : vector<16x128xbf16>, vector<128x128xbf16>, vector<16x128xf32> -> vector<16x128xf32>
    %c2_120 = arith.constant 2 : index
    %c0_121 = arith.constant 0 : index
    %334 = vector.load %arg6[%c2_120, %c0_121] : memref<29x128xf32, #tpu.memory_space<vmem>>, vector<1x128xf32>
    %335 = vector.broadcast %334 : vector<1x128xf32> to vector<16x128xf32>
    %336 = arith.addf %333, %335 : vector<16x128xf32>
    %c0_122 = arith.constant 0 : index
    %c0_123 = arith.constant 0 : index
    %337 = vector.load %arg7[%c0_122, %c0_123] : memref<16x128xf32, #tpu.memory_space<vmem>>, vector<16x128xf32>
    tpu.vector_store %arg7[%c0_122, %c0_123], %336 {strides = array<i32>} : memref<16x128xf32, #tpu.memory_space<vmem>>, vector<16x128xf32>,
    return
  }
  func.func @transform_0(%arg0: i32) -> (i32, i32) {
    %c0_i32 = arith.constant 0 : i32
    %c0_i32_0 = arith.constant 0 : i32
    return %arg0, %c0_i32 : i32, i32
  }
  func.func @transform_1(%arg0: i32) -> (i32, i32, i32) {
    %c0_i32 = arith.constant 0 : i32
    %c0_i32_0 = arith.constant 0 : i32
    %c0_i32_1 = arith.constant 0 : i32
    return %arg0, %c0_i32, %c0_i32_0 : i32, i32, i32
  }
  func.func @transform_2(%arg0: i32) -> (i32, i32, i32) {
    %c0_i32 = arith.constant 0 : i32
    %c0_i32_0 = arith.constant 0 : i32
    %c0_i32_1 = arith.constant 0 : i32
    %c0_i32_2 = arith.constant 0 : i32
    return %c0_i32, %c0_i32_0, %c0_i32_1 : i32, i32, i32
  }
  func.func @transform_3(%arg0: i32) -> (i32, i32, i32) {
    %c0_i32 = arith.constant 0 : i32
    %c0_i32_0 = arith.constant 0 : i32
    %c0_i32_1 = arith.constant 0 : i32
    %c0_i32_2 = arith.constant 0 : i32
    return %c0_i32, %c0_i32_0, %c0_i32_1 : i32, i32, i32
  }
  func.func @transform_4(%arg0: i32) -> (i32, i32, i32) {
    %c0_i32 = arith.constant 0 : i32
    %c0_i32_0 = arith.constant 0 : i32
    %c0_i32_1 = arith.constant 0 : i32
    %c0_i32_2 = arith.constant 0 : i32
    return %c0_i32, %c0_i32_0, %c0_i32_1 : i32, i32, i32
  }
  func.func @transform_5(%arg0: i32) -> (i32, i32) {
    %c0_i32 = arith.constant 0 : i32
    %c0_i32_0 = arith.constant 0 : i32
    %c0_i32_1 = arith.constant 0 : i32
    return %c0_i32, %c0_i32_0 : i32, i32
  }
  func.func @transform_6(%arg0: i32) -> (i32, i32) {
    %c0_i32 = arith.constant 0 : i32
    %c0_i32_0 = arith.constant 0 : i32
    return %arg0, %c0_i32 : i32, i32
  }
}

</mosaic_0001>

<llo_original>
// kernel: bert_forward.1
$region0: #{bert_forward.1}
  #allocation0 [shape = 'u32[]', space=smem, size = 0x4, offset = 0x4, fixed_abs, tag = 'smem constant byte address 0x4 - core index']
  #allocation1 [shape = 'u32[144,128]{1,0:T(1,128)}', space=vmem, size = 0x12000, scoped, tag = 'internal scratch']
  %s0 = inlined_call_operand.vmem [shape: f32[16,128], index: 0, kind: input, shape index: {}]
  %s1 = inlined_call_operand.vmem [shape: f32[1,16,16], index: 1, kind: input, shape index: {}]
  %s2 = inlined_call_operand.hbm [shape: bf16[2,128,768], index: 2, kind: input, shape index: {}]
  %s3 = inlined_call_operand.vmem [shape: bf16[2,256,128], index: 3, kind: input, shape index: {}]
  %s4 = inlined_call_operand.hbm [shape: bf16[5,128,128], index: 4, kind: input, shape index: {}]
  %s5 = inlined_call_operand.hbm [shape: f32[29,128], index: 5, kind: input, shape index: {}]
  %s6 = inlined_call_operand.vmem [shape: f32[16,128], index: 6, kind: output, shape index: {}]
  %s7 = sld [smem:[#allocation0]]
  $region46: #{bert_forward.1} parent=0
    _
  %s9 = ssub.s32 1, %s7
  %s10 = scalar_select 0, %s9, %s7
  $region1: #{bert_forward.1} parent=0
    #allocation2 [shape = 'u8[393216]{0}', space=vmem, size = 0x60000, scoped, tag = 'input window, operand 2, single buffered']
    #allocation3 [shape = 's32[1]{0}', space=sflag, size = 0x4, scoped, tag = 'scoped memory for bert_forward.1']
    #allocation4 [shape = 'u8[163840]{0}', space=vmem, size = 0x28000, scoped, tag = 'input window, operand 4, single buffered']
    #allocation5 [shape = 's32[1]{0}', space=sflag, size = 0x4, scoped, tag = 'scoped memory for bert_forward.1']
    #allocation6 [shape = 'u8[16384]{0}', space=vmem, size = 0x4000, scoped, tag = 'input window, operand 5, single buffered']
    %11 = vsyncpa [#allocation3], 0
    %12 = vsyncpa [#allocation5], 0
    // Predicated region
    $region2: #{bert_forward.1} parent=1 // pred_check
      _
    $region3: #{bert_forward.1} parent=1 // pred_check_branch
      %14 = sbr.rel (0) target = $region5
    $region4: #{bert_forward.1} parent=1 // pred_region
      _
    $region5: #{bert_forward.1} parent=1 // pred_fallthru
      _
    // Predicated region
    $region6: #{bert_forward.1} parent=1 // pred_check
      _
    $region7: #{bert_forward.1} parent=1 // pred_check_branch
      %16 = sbr.rel (0) target = $region9
    $region8: #{bert_forward.1} parent=1 // pred_region
      _
    $region9: #{bert_forward.1} parent=1 // pred_fallthru
      _
    // Predicated region
    $region10: #{bert_forward.1} parent=1 // pred_check
      _
    $region11: #{bert_forward.1} parent=1 // pred_check_branch
      %18 = sbr.rel (0) target = $region13
    $region12: #{bert_forward.1} parent=1 // pred_region
      %s20 = ssub.s32 12288, 12288
      %21 = vsyncadd [#allocation3], %s20
      %s22 = sshll.u32 [#allocation2], 4
      %s23 = int_to_ptr.vmem [resolvable:$true] %s22
      %28 = dma.hbm_to_vmem [thread:$0]  %s2, 12288, %s23, [#allocation3], 384, 384, 24
    $region13: #{bert_forward.1} parent=1 // pred_fallthru
      _
    // Predicated region
    $region14: #{bert_forward.1} parent=1 // pred_check
      _
    $region15: #{bert_forward.1} parent=1 // pred_check_branch
      %30 = sbr.rel (0) target = $region17
    $region16: #{bert_forward.1} parent=1 // pred_region
      _
    $region17: #{bert_forward.1} parent=1 // pred_fallthru
      _
    // Predicated region
    $region18: #{bert_forward.1} parent=1 // pred_check
      _
    $region19: #{bert_forward.1} parent=1 // pred_check_branch
      %32 = sbr.rel (0) target = $region21
    $region20: #{bert_forward.1} parent=1 // pred_region
      %s34 = ssub.s32 5120, 5120
      %35 = vsyncadd [#allocation5], %s34
      %s36 = sshll.u32 [#allocation4], 4
      %s37 = int_to_ptr.vmem [resolvable:$true] %s36
      %42 = dma.hbm_to_vmem [thread:$0]  %s4, 5120, %s37, [#allocation5], 64, 64, 4
    $region21: #{bert_forward.1} parent=1 // pred_fallthru
      _
    // Predicated region
    $region22: #{bert_forward.1} parent=1 // pred_check
      _
    $region23: #{bert_forward.1} parent=1 // pred_check_branch
      %44 = sbr.rel (0) target = $region25
    $region24: #{bert_forward.1} parent=1 // pred_region
      %s46 = ssub.s32 512, 512
      %47 = vsyncadd [#allocation5], %s46
      %s48 = sshll.u32 [#allocation6], 4
      %s49 = int_to_ptr.vmem [resolvable:$true] %s48
      %54 = dma.hbm_to_vmem [thread:$0]  %s5, 512, %s49, [#allocation5], 128, 128, 8
    $region25: #{bert_forward.1} parent=1 // pred_fallthru
      _
    // Predicated region
    $region26: #{bert_forward.1} parent=1 // pred_check
      _
    $region27: #{bert_forward.1} parent=1 // pred_check_branch
      %56 = sbr.rel (0) target = $region29
    $region28: #{bert_forward.1} parent=1 // pred_region
      %57 = dma.done [#allocation3], 12288
    $region29: #{bert_forward.1} parent=1 // pred_fallthru
      _
    // Predicated region
    $region30: #{bert_forward.1} parent=1 // pred_check
      _
    $region31: #{bert_forward.1} parent=1 // pred_check_branch
      %59 = sbr.rel (0) target = $region33
    $region32: #{bert_forward.1} parent=1 // pred_region
      %60 = dma.done [#allocation5], 5120
    $region33: #{bert_forward.1} parent=1 // pred_fallthru
      _
    // Predicated region
    $region34: #{bert_forward.1} parent=1 // pred_check
      _
    $region35: #{bert_forward.1} parent=1 // pred_check_branch
      %62 = sbr.rel (0) target = $region37
    $region36: #{bert_forward.1} parent=1 // pred_region
      %63 = dma.done [#allocation5], 512
    $region37: #{bert_forward.1} parent=1 // pred_fallthru
      _
    %v65 = vlaneseq
    %v66 = vand.u32 %v65, 127
    %vm67 = vcmp.lt.s32.totalorder %v66, 32
    %v68 = vsel %vm67, 1, 0
    %v69 = vcvt.s32.f32 %v68
    %v70 = vld [vmem:[%s0] sm:$0xff]
    %v71 = vld [vmem:[%s0 + $0x8] sm:$0xff]
    %v72 = vld [vmem:[%s1] sm:$0xff]
    %v73 = vld [vmem:[%s1 + $0x8] sm:$0xff]
    %74 = vadd.xlane.f32.xlu0 %v70
    %v75 = vpop.xlane.xlu0 %74
    %76 = vadd.xlane.f32.xlu0 %v71
    %v77 = vpop.xlane.xlu0 %76
    %v78 = vmul.f32 %v75, 0.03125
    %v79 = vmul.f32 %v77, 0.03125
    %v80 = vsub.f32 %v70, %v78
    %v81 = vsub.f32 %v71, %v79
    %v82 = vmul.f32 %v80, %v69
    %v83 = vmul.f32 %v81, %v69
    %v84 = vmul.f32 %v82, %v82
    %v85 = vmul.f32 %v83, %v83
    %86 = vadd.xlane.f32.xlu0 %v84
    %v87 = vpop.xlane.xlu0 %86
    %88 = vadd.xlane.f32.xlu0 %v85
    %v89 = vpop.xlane.xlu0 %88
    %v90 = vmul.f32 %v87, 0.03125
    %v91 = vmul.f32 %v89, 0.03125
    %v92 = vadd.f32 %v90, 1e-12
    %v93 = vadd.f32 %v91, 1e-12
    %v94 = vrsqrt.pop %v92
    %v95 = vrsqrt.pop %v93
    %v96 = vmul.f32 %v82, %v94
    %v97 = vmul.f32 %v83, %v95
    %v98 = vld [vmem:[#allocation6] sm:$0x1]
    %v99 = vlaneseq
    %v100 = vshrl.u32 %v99, 7
    %v101 = vsub.s32 0, %v100
    %v102 = vrot.slane %v98, %v101
    %v103 = vmul.f32 %v96, %v102
    %v104 = vmul.f32 %v97, %v102
    %v105 = vld [vmem:[#allocation6 + $0x1] sm:$0x1]
    %v106 = vlaneseq
    %v107 = vshrl.u32 %v106, 7
    %v108 = vsub.s32 0, %v107
    %v109 = vrot.slane %v105, %v108
    %v110 = vadd.f32 %v103, %v109
    %v111 = vadd.f32 %v104, %v109
    %v112 = vld [vmem:[#allocation2] sm:$0xff]
    %v113 = vld [vmem:[#allocation2 + $0x8] sm:$0xff]
    %v114 = vld [vmem:[#allocation2 + $0x10] sm:$0xff]
    %v115 = vld [vmem:[#allocation2 + $0x18] sm:$0xff]
    %v116 = vld [vmem:[#allocation2 + $0x20] sm:$0xff]
    %v117 = vld [vmem:[#allocation2 + $0x28] sm:$0xff]
    %v118 = vld [vmem:[#allocation2 + $0x30] sm:$0xff]
    %v119 = vld [vmem:[#allocation2 + $0x38] sm:$0xff]
    %v120 = vld [vmem:[#allocation2 + $0x40] sm:$0xff]
    %v121 = vld [vmem:[#allocation2 + $0x48] sm:$0xff]
    %v122 = vld [vmem:[#allocation2 + $0x50] sm:$0xff]
    %v123 = vld [vmem:[#allocation2 + $0x58] sm:$0xff]
    %v124 = vld [vmem:[#allocation2 + $0x60] sm:$0xff]
    %v125 = vld [vmem:[#allocation2 + $0x68] sm:$0xff]
    %v126 = vld [vmem:[#allocation2 + $0x70] sm:$0xff]
    %v127 = vld [vmem:[#allocation2 + $0x78] sm:$0xff]
    %v128 = vld [vmem:[#allocation2 + $0x80] sm:$0xff]
    %v129 = vld [vmem:[#allocation2 + $0x88] sm:$0xff]
    %v130 = vld [vmem:[#allocation2 + $0x90] sm:$0xff]
    %v131 = vld [vmem:[#allocation2 + $0x98] sm:$0xff]
    %v132 = vld [vmem:[#allocation2 + $0xa0] sm:$0xff]
    %v133 = vld [vmem:[#allocation2 + $0xa8] sm:$0xff]
    %v134 = vld [vmem:[#allocation2 + $0xb0] sm:$0xff]
    %v135 = vld [vmem:[#allocation2 + $0xb8] sm:$0xff]
    %v136 = vld [vmem:[#allocation2 + $0xc0] sm:$0xff]
    %v137 = vld [vmem:[#allocation2 + $0xc8] sm:$0xff]
    %v138 = vld [vmem:[#allocation2 + $0xd0] sm:$0xff]
    %v139 = vld [vmem:[#allocation2 + $0xd8] sm:$0xff]
    %v140 = vld [vmem:[#allocation2 + $0xe0] sm:$0xff]
    %v141 = vld [vmem:[#allocation2 + $0xe8] sm:$0xff]
    %v142 = vld [vmem:[#allocation2 + $0xf0] sm:$0xff]
    %v143 = vld [vmem:[#allocation2 + $0xf8] sm:$0xff]
    %v144 = vld [vmem:[#allocation2 + $0x100] sm:$0xff]
    %v145 = vld [vmem:[#allocation2 + $0x108] sm:$0xff]
    %v146 = vld [vmem:[#allocation2 + $0x110] sm:$0xff]
    %v147 = vld [vmem:[#allocation2 + $0x118] sm:$0xff]
    %v148 = vld [vmem:[#allocation2 + $0x120] sm:$0xff]
    %v149 = vld [vmem:[#allocation2 + $0x128] sm:$0xff]
    %v150 = vld [vmem:[#allocation2 + $0x130] sm:$0xff]
    %v151 = vld [vmem:[#allocation2 + $0x138] sm:$0xff]
    %v152 = vld [vmem:[#allocation2 + $0x140] sm:$0xff]
    %v153 = vld [vmem:[#allocation2 + $0x148] sm:$0xff]
    %v154 = vld [vmem:[#allocation2 + $0x150] sm:$0xff]
    %v155 = vld [vmem:[#allocation2 + $0x158] sm:$0xff]
    %v156 = vld [vmem:[#allocation2 + $0x160] sm:$0xff]
    %v157 = vld [vmem:[#allocation2 + $0x168] sm:$0xff]
    %v158 = vld [vmem:[#allocation2 + $0x170] sm:$0xff]
    %v159 = vld [vmem:[#allocation2 + $0x178] sm:$0xff]
    %v160 = vpack.c.bf16 %v111, %v110
    %v209 = vunpack.c.l.b16 %v112
    %v210 = vunpack.c.h.b16 %v112
    %v211 = vunpack.c.l.b16 %v113
    %v212 = vunpack.c.h.b16 %v113
    %v213 = vunpack.c.l.b16 %v114
    %v214 = vunpack.c.h.b16 %v114
    %v215 = vunpack.c.l.b16 %v115
    %v216 = vunpack.c.h.b16 %v115
    %v217 = vunpack.c.l.b16 %v116
    %v218 = vunpack.c.h.b16 %v116
    %v219 = vunpack.c.l.b16 %v117
    %v220 = vunpack.c.h.b16 %v117
    %v221 = vunpack.c.l.b16 %v118
    %v222 = vunpack.c.h.b16 %v118
    %v223 = vunpack.c.l.b16 %v119
    %v224 = vunpack.c.h.b16 %v119
    %v225 = vunpack.c.l.b16 %v120
    %v226 = vunpack.c.h.b16 %v120
    %v227 = vunpack.c.l.b16 %v121
    %v228 = vunpack.c.h.b16 %v121
    %v229 = vunpack.c.l.b16 %v122
    %v230 = vunpack.c.h.b16 %v122
    %v231 = vunpack.c.l.b16 %v123
    %v232 = vunpack.c.h.b16 %v123
    %v233 = vunpack.c.l.b16 %v124
    %v234 = vunpack.c.h.b16 %v124
    %v235 = vunpack.c.l.b16 %v125
    %v236 = vunpack.c.h.b16 %v125
    %v237 = vunpack.c.l.b16 %v126
    %v238 = vunpack.c.h.b16 %v126
    %v239 = vunpack.c.l.b16 %v127
    %v240 = vunpack.c.h.b16 %v127
    %v241 = vunpack.c.l.b16 %v128
    %v242 = vunpack.c.h.b16 %v128
    %v243 = vunpack.c.l.b16 %v129
    %v244 = vunpack.c.h.b16 %v129
    %v245 = vunpack.c.l.b16 %v130
    %v246 = vunpack.c.h.b16 %v130
    %v247 = vunpack.c.l.b16 %v131
    %v248 = vunpack.c.h.b16 %v131
    %v249 = vunpack.c.l.b16 %v132
    %v250 = vunpack.c.h.b16 %v132
    %v251 = vunpack.c.l.b16 %v133
    %v252 = vunpack.c.h.b16 %v133
    %v253 = vunpack.c.l.b16 %v134
    %v254 = vunpack.c.h.b16 %v134
    %v255 = vunpack.c.l.b16 %v135
    %v256 = vunpack.c.h.b16 %v135
    %v257 = vunpack.c.l.b16 %v136
    %v258 = vunpack.c.h.b16 %v136
    %v259 = vunpack.c.l.b16 %v137
    %v260 = vunpack.c.h.b16 %v137
    %v261 = vunpack.c.l.b16 %v138
    %v262 = vunpack.c.h.b16 %v138
    %v263 = vunpack.c.l.b16 %v139
    %v264 = vunpack.c.h.b16 %v139
    %v265 = vunpack.c.l.b16 %v140
    %v266 = vunpack.c.h.b16 %v140
    %v267 = vunpack.c.l.b16 %v141
    %v268 = vunpack.c.h.b16 %v141
    %v269 = vunpack.c.l.b16 %v142
    %v270 = vunpack.c.h.b16 %v142
    %v271 = vunpack.c.l.b16 %v143
    %v272 = vunpack.c.h.b16 %v143
    %v273 = vunpack.c.l.b16 %v144
    %v274 = vunpack.c.h.b16 %v144
    %v275 = vunpack.c.l.b16 %v145
    %v276 = vunpack.c.h.b16 %v145
    %v277 = vunpack.c.l.b16 %v146
    %v278 = vunpack.c.h.b16 %v146
    %v279 = vunpack.c.l.b16 %v147
    %v280 = vunpack.c.h.b16 %v147
    %v281 = vunpack.c.l.b16 %v148
    %v282 = vunpack.c.h.b16 %v148
    %v283 = vunpack.c.l.b16 %v149
    %v284 = vunpack.c.h.b16 %v149
    %v285 = vunpack.c.l.b16 %v150
    %v286 = vunpack.c.h.b16 %v150
    %v287 = vunpack.c.l.b16 %v151
    %v288 = vunpack.c.h.b16 %v151
    %v289 = vunpack.c.l.b16 %v152
    %v290 = vunpack.c.h.b16 %v152
    %v291 = vunpack.c.l.b16 %v153
    %v292 = vunpack.c.h.b16 %v153
    %v293 = vunpack.c.l.b16 %v154
    %v294 = vunpack.c.h.b16 %v154
    %v295 = vunpack.c.l.b16 %v155
    %v296 = vunpack.c.h.b16 %v155
    %v297 = vunpack.c.l.b16 %v156
    %v298 = vunpack.c.h.b16 %v156
    %v299 = vunpack.c.l.b16 %v157
    %v300 = vunpack.c.h.b16 %v157
    %v301 = vunpack.c.l.b16 %v158
    %v302 = vunpack.c.h.b16 %v158
    %v303 = vunpack.c.l.b16 %v159
    %v304 = vunpack.c.h.b16 %v159
    %v305 = vpack.c.b16 %v215, %v209
    %v306 = vpack.c.b16 %v216, %v210
    %v307 = vpack.c.b16 %v217, %v211
    %v308 = vpack.c.b16 %v218, %v212
    %v309 = vpack.c.b16 %v219, %v213
    %v310 = vpack.c.b16 %v220, %v214
    %v311 = vpack.c.b16 %v227, %v221
    %v312 = vpack.c.b16 %v228, %v222
    %v313 = vpack.c.b16 %v229, %v223
    %v314 = vpack.c.b16 %v230, %v224
    %v315 = vpack.c.b16 %v231, %v225
    %v316 = vpack.c.b16 %v232, %v226
    %v317 = vpack.c.b16 %v239, %v233
    %v318 = vpack.c.b16 %v240, %v234
    %v319 = vpack.c.b16 %v241, %v235
    %v320 = vpack.c.b16 %v242, %v236
    %v321 = vpack.c.b16 %v243, %v237
    %v322 = vpack.c.b16 %v244, %v238
    %v323 = vpack.c.b16 %v251, %v245
    %v324 = vpack.c.b16 %v252, %v246
    %v325 = vpack.c.b16 %v253, %v247
    %v326 = vpack.c.b16 %v254, %v248
    %v327 = vpack.c.b16 %v255, %v249
    %v328 = vpack.c.b16 %v256, %v250
    %v329 = vpack.c.b16 %v263, %v257
    %v330 = vpack.c.b16 %v264, %v258
    %v331 = vpack.c.b16 %v265, %v259
    %v332 = vpack.c.b16 %v266, %v260
    %v333 = vpack.c.b16 %v267, %v261
    %v334 = vpack.c.b16 %v268, %v262
    %v335 = vpack.c.b16 %v275, %v269
    %v336 = vpack.c.b16 %v276, %v270
    %v337 = vpack.c.b16 %v277, %v271
    %v338 = vpack.c.b16 %v278, %v272
    %v339 = vpack.c.b16 %v279, %v273
    %v340 = vpack.c.b16 %v280, %v274
    %v341 = vpack.c.b16 %v287, %v281
    %v342 = vpack.c.b16 %v288, %v282
    %v343 = vpack.c.b16 %v289, %v283
    %v344 = vpack.c.b16 %v290, %v284
    %v345 = vpack.c.b16 %v291, %v285
    %v346 = vpack.c.b16 %v292, %v286
    %v347 = vpack.c.b16 %v299, %v293
    %v348 = vpack.c.b16 %v300, %v294
    %v349 = vpack.c.b16 %v301, %v295
    %v350 = vpack.c.b16 %v302, %v296
    %v351 = vpack.c.b16 %v303, %v297
    %v352 = vpack.c.b16 %v304, %v298
    %401 = vmatprep.subr.bf16.mxu0 %v306
    %402 = vmatpush1.bf16.msra.mxu0 %v305
    %403 = vmatprep.subr.bf16.mxu0 %v312
    %404 = vmatpush1.bf16.msra.mxu0 %v311
    %405 = vmatprep.subr.bf16.mxu0 %v318
    %406 = vmatpush1.bf16.msra.mxu0 %v317
    %407 = vmatprep.subr.bf16.mxu0 %v324
    %408 = vmatpush1.bf16.msra.mxu0 %v323
    %409 = vmatprep.subr.bf16.mxu0 %v330
    %410 = vmatpush1.bf16.msra.mxu0 %v329
    %411 = vmatprep.subr.bf16.mxu0 %v336
    %412 = vmatpush1.bf16.msra.mxu0 %v335
    %413 = vmatprep.subr.bf16.mxu0 %v342
    %414 = vmatpush1.bf16.msra.mxu0 %v341
    %415 = vmatprep.subr.bf16.mxu0 %v348
    %416 = vmatpush1.bf16.msra.mxu0 %v347
    %417 = vmatprep.subr.bf16.mxu0 0
    %418 = vmatpush1.bf16.msra.mxu0 0
    %419 = vmatprep.subr.bf16.mxu0 0
    %420 = vmatpush1.bf16.msra.mxu0 0
    %421 = vmatprep.subr.bf16.mxu0 0
    %422 = vmatpush1.bf16.msra.mxu0 0
    %423 = vmatprep.subr.bf16.mxu0 0
    %424 = vmatpush1.bf16.msra.mxu0 0
    %425 = vmatprep.subr.bf16.mxu0 0
    %426 = vmatpush1.bf16.msra.mxu0 0
    %427 = vmatprep.subr.bf16.mxu0 0
    %428 = vmatpush1.bf16.msra.mxu0 0
    %429 = vmatprep.subr.bf16.mxu0 0
    %430 = vmatpush1.bf16.msra.mxu0 0
    %431 = vmatprep.subr.bf16.mxu0 0
    %432 = vmatpush1.bf16.msra.mxu0 0
    %433 = vmatprep.mubr.bf16.mxu0 0
    %434 = vmatmul.mubr.bf16.gmra.mrb[0].mxu0 %v160
    %v435 = vpop.f32.mrb[0].mxu0
    %v436 = vadd.f32 0.0, %v435
    %v437 = vpop.f32.mrb[0].mxu0
    %v438 = vadd.f32 0.0, %v437
    %v439 = vpop.f32.mrb[0].mxu0
    %v440 = vadd.f32 0.0, %v439
    %v441 = vpop.f32.mrb[0].mxu0
    %v442 = vadd.f32 0.0, %v441
    %443 = vdwg.mxu0
    %444 = vmatprep.subr.bf16.mxu0 %v308
    %445 = vmatpush1.bf16.msra.mxu0 %v307
    %446 = vmatprep.subr.bf16.mxu0 %v314
    %447 = vmatpush1.bf16.msra.mxu0 %v313
    %448 = vmatprep.subr.bf16.mxu0 %v320
    %449 = vmatpush1.bf16.msra.mxu0 %v319
    %450 = vmatprep.subr.bf16.mxu0 %v326
    %451 = vmatpush1.bf16.msra.mxu0 %v325
    %452 = vmatprep.subr.bf16.mxu0 %v332
    %453 = vmatpush1.bf16.msra.mxu0 %v331
    %454 = vmatprep.subr.bf16.mxu0 %v338
    %455 = vmatpush1.bf16.msra.mxu0 %v337
    %456 = vmatprep.subr.bf16.mxu0 %v344
    %457 = vmatpush1.bf16.msra.mxu0 %v343
    %458 = vmatprep.subr.bf16.mxu0 %v350
    %459 = vmatpush1.bf16.msra.mxu0 %v349
    %460 = vmatprep.subr.bf16.mxu0 0
    %461 = vmatpush1.bf16.msra.mxu0 0
    %462 = vmatprep.subr.bf16.mxu0 0
    %463 = vmatpush1.bf16.msra.mxu0 0
    %464 = vmatprep.subr.bf16.mxu0 0
    %465 = vmatpush1.bf16.msra.mxu0 0
    %466 = vmatprep.subr.bf16.mxu0 0
    %467 = vmatpush1.bf16.msra.mxu0 0
    %468 = vmatprep.subr.bf16.mxu0 0
    %469 = vmatpush1.bf16.msra.mxu0 0
    %470 = vmatprep.subr.bf16.mxu0 0
    %471 = vmatpush1.bf16.msra.mxu0 0
    %472 = vmatprep.subr.bf16.mxu0 0
    %473 = vmatpush1.bf16.msra.mxu0 0
    %474 = vmatprep.subr.bf16.mxu0 0
    %475 = vmatpush1.bf16.msra.mxu0 0
    %476 = vmatprep.mubr.bf16.mxu0 0
    %477 = vmatmul.mubr.bf16.gmra.mrb[0].mxu0 %v160
    %v478 = vpop.f32.mrb[0].mxu0
    %v479 = vadd.f32 0.0, %v478
    %v480 = vpop.f32.mrb[0].mxu0
    %v481 = vadd.f32 0.0, %v480
    %v482 = vpop.f32.mrb[0].mxu0
    %v483 = vadd.f32 0.0, %v482
    %v484 = vpop.f32.mrb[0].mxu0
    %v485 = vadd.f32 0.0, %v484
    %486 = vdwg.mxu0
    %487 = vmatprep.subr.bf16.mxu0 %v310
    %488 = vmatpush1.bf16.msra.mxu0 %v309
    %489 = vmatprep.subr.bf16.mxu0 %v316
    %490 = vmatpush1.bf16.msra.mxu0 %v315
    %491 = vmatprep.subr.bf16.mxu0 %v322
    %492 = vmatpush1.bf16.msra.mxu0 %v321
    %493 = vmatprep.subr.bf16.mxu0 %v328
    %494 = vmatpush1.bf16.msra.mxu0 %v327
    %495 = vmatprep.subr.bf16.mxu0 %v334
    %496 = vmatpush1.bf16.msra.mxu0 %v333
    %497 = vmatprep.subr.bf16.mxu0 %v340
    %498 = vmatpush1.bf16.msra.mxu0 %v339
    %499 = vmatprep.subr.bf16.mxu0 %v346
    %500 = vmatpush1.bf16.msra.mxu0 %v345
    %501 = vmatprep.subr.bf16.mxu0 %v352
    %502 = vmatpush1.bf16.msra.mxu0 %v351
    %503 = vmatprep.subr.bf16.mxu0 0
    %504 = vmatpush1.bf16.msra.mxu0 0
    %505 = vmatprep.subr.bf16.mxu0 0
    %506 = vmatpush1.bf16.msra.mxu0 0
    %507 = vmatprep.subr.bf16.mxu0 0
    %508 = vmatpush1.bf16.msra.mxu0 0
    %509 = vmatprep.subr.bf16.mxu0 0
    %510 = vmatpush1.bf16.msra.mxu0 0
    %511 = vmatprep.subr.bf16.mxu0 0
    %512 = vmatpush1.bf16.msra.mxu0 0
    %513 = vmatprep.subr.bf16.mxu0 0
    %514 = vmatpush1.bf16.msra.mxu0 0
    %515 = vmatprep.subr.bf16.mxu0 0
    %516 = vmatpush1.bf16.msra.mxu0 0
    %517 = vmatprep.subr.bf16.mxu0 0
    %518 = vmatpush1.bf16.msra.mxu0 0
    %519 = vmatprep.mubr.bf16.mxu0 0
    %520 = vmatmul.mubr.bf16.gmra.mrb[0].mxu0 %v160
    %v521 = vpop.f32.mrb[0].mxu0
    %v522 = vadd.f32 0.0, %v521
    %v523 = vpop.f32.mrb[0].mxu0
    %v524 = vadd.f32 0.0, %v523
    %v525 = vpop.f32.mrb[0].mxu0
    %v526 = vadd.f32 0.0, %v525
    %v527 = vpop.f32.mrb[0].mxu0
    %v528 = vadd.f32 0.0, %v527
    %529 = vdwg.mxu0
    %v530 = vld [vmem:[#allocation6 + $0x3] sm:$0x1]
    %v531 = vlaneseq
    %v532 = vshrl.u32 %v531, 7
    %v533 = vsub.s32 0, %v532
    %v534 = vrot.slane %v530, %v533
    %v535 = vadd.f32 %v436, %v534
    %v536 = vadd.f32 %v440, %v534
    %v537 = vld [vmem:[#allocation6 + $0x5] sm:$0x1]
    %v538 = vlaneseq
    %v539 = vshrl.u32 %v538, 7
    %v540 = vsub.s32 0, %v539
    %v541 = vrot.slane %v537, %v540
    %v542 = vadd.f32 %v479, %v541
    %v543 = vadd.f32 %v483, %v541
    %v544 = vld [vmem:[#allocation6 + $0x7] sm:$0x1]
    %v545 = vlaneseq
    %v546 = vshrl.u32 %v545, 7
    %v547 = vsub.s32 0, %v546
    %v548 = vrot.slane %v544, %v547
    %v549 = vadd.f32 %v522, %v548
    %v550 = vadd.f32 %v526, %v548
    %v551 = vpack.c.bf16 %v536, %v535
    %v552 = vpack.c.bf16 %v543, %v542
    %553 = vmatprep.subr.bf16.mxu0 0
    %554 = vmatpush1.bf16.xpose.msra.mxu0 %v552
    %555 = vmatprep.subr.bf16.mxu0 0
    %556 = vmatpush1.bf16.xpose.msra.mxu0 0
    %557 = vmatprep.subr.bf16.mxu0 0
    %558 = vmatpush1.bf16.xpose.msra.mxu0 0
    %559 = vmatprep.subr.bf16.mxu0 0
    %560 = vmatpush1.bf16.xpose.msra.mxu0 0
    %561 = vmatprep.subr.bf16.mxu0 0
    %562 = vmatpush1.bf16.xpose.msra.mxu0 0
    %563 = vmatprep.subr.bf16.mxu0 0
    %564 = vmatpush1.bf16.xpose.msra.mxu0 0
    %565 = vmatprep.subr.bf16.mxu0 0
    %566 = vmatpush1.bf16.xpose.msra.mxu0 0
    %567 = vmatprep.subr.bf16.mxu0 0
    %568 = vmatpush1.bf16.xpose.msra.mxu0 0
    %569 = vmatprep.subr.bf16.mxu0 0
    %570 = vmatpush1.bf16.xpose.msra.mxu0 0
    %571 = vmatprep.subr.bf16.mxu0 0
    %572 = vmatpush1.bf16.xpose.msra.mxu0 0
    %573 = vmatprep.subr.bf16.mxu0 0
    %574 = vmatpush1.bf16.xpose.msra.mxu0 0
    %575 = vmatprep.subr.bf16.mxu0 0
    %576 = vmatpush1.bf16.xpose.msra.mxu0 0
    %577 = vmatprep.subr.bf16.mxu0 0
    %578 = vmatpush1.bf16.xpose.msra.mxu0 0
    %579 = vmatprep.subr.bf16.mxu0 0
    %580 = vmatpush1.bf16.xpose.msra.mxu0 0
    %581 = vmatprep.subr.bf16.mxu0 0
    %582 = vmatpush1.bf16.xpose.msra.mxu0 0
    %583 = vmatprep.subr.bf16.mxu0 0
    %584 = vmatpush1.bf16.xpose.msra.mxu0 0
    %585 = vmatprep.mubr.bf16.mxu0 0
    %586 = vmatmul.mubr.bf16.gmra.mrb[0].mxu0 %v551
    %v587 = vpop.f32.mrb[0].mxu0
    %v588 = vadd.f32 0.0, %v587
    %v589 = vpop.f32.mrb[0].mxu0
    %v590 = vpop.f32.mrb[0].mxu0
    %v591 = vadd.f32 0.0, %v590
    %v592 = vpop.f32.mrb[0].mxu0
    %593 = vdwg.mxu0
    %v594 = vmul.f32 %v588, 0.25
    %v595 = vmul.f32 %v591, 0.25
    %v596 = vadd.f32 %v594, %v72
    %v597 = vadd.f32 %v595, %v73
    %vm598 = vcmask 130048
    %v599 = vsel %vm598, %v596, -inf
    %600 = vmax.xlane.f32.xlu0 %v599
    %v601 = vpop.xlane.xlu0 %600
    %v602 = vsel %vm598, %v597, -inf
    %603 = vmax.xlane.f32.xlu0 %v602
    %v604 = vpop.xlane.xlu0 %603
    %v605 = vsub.f32 %v596, %v601
    %v606 = vsub.f32 %v597, %v604
    %v607 = vmul.f32 %v605, 1.442695
    %v608 = vpow.pop %v607
    %v609 = vmul.f32 %v606, 1.442695
    %v610 = vpow.pop %v609
    %v611 = vsel %vm598, %v608, 0.0
    %612 = vadd.xlane.f32.xlu0 %v611
    %v613 = vpop.xlane.xlu0 %612
    %v614 = vsel %vm598, %v610, 0.0
    %615 = vadd.xlane.f32.xlu0 %v614
    %v616 = vpop.xlane.xlu0 %615
    %v617 = vrcp.pop %v613
    %v618 = vmul.f32 %v608, %v617
    %v619 = vrcp.pop %v616
    %v620 = vmul.f32 %v610, %v619
    %v621 = vpack.c.bf16 %v620, %v618
    %v622 = vpack.c.bf16 %v550, %v549
    %v624 = vsel %vm598, %v621, 0
    %626 = vmatprep.subr.bf16.mxu0 0
    %627 = vmatpush1.bf16.msra.mxu0 %v622
    %628 = vmatprep.subr.bf16.mxu0 0
    %629 = vmatpush1.bf16.msra.mxu0 0
    %630 = vmatprep.subr.bf16.mxu0 0
    %631 = vmatpush1.bf16.msra.mxu0 0
    %632 = vmatprep.subr.bf16.mxu0 0
    %633 = vmatpush1.bf16.msra.mxu0 0
    %634 = vmatprep.subr.bf16.mxu0 0
    %635 = vmatpush1.bf16.msra.mxu0 0
    %636 = vmatprep.subr.bf16.mxu0 0
    %637 = vmatpush1.bf16.msra.mxu0 0
    %638 = vmatprep.subr.bf16.mxu0 0
    %639 = vmatpush1.bf16.msra.mxu0 0
    %640 = vmatprep.subr.bf16.mxu0 0
    %641 = vmatpush1.bf16.msra.mxu0 0
    %642 = vmatprep.subr.bf16.mxu0 0
    %643 = vmatpush1.bf16.msra.mxu0 0
    %644 = vmatprep.subr.bf16.mxu0 0
    %645 = vmatpush1.bf16.msra.mxu0 0
    %646 = vmatprep.subr.bf16.mxu0 0
    %647 = vmatpush1.bf16.msra.mxu0 0
    %648 = vmatprep.subr.bf16.mxu0 0
    %649 = vmatpush1.bf16.msra.mxu0 0
    %650 = vmatprep.subr.bf16.mxu0 0
    %651 = vmatpush1.bf16.msra.mxu0 0
    %652 = vmatprep.subr.bf16.mxu0 0
    %653 = vmatpush1.bf16.msra.mxu0 0
    %654 = vmatprep.subr.bf16.mxu0 0
    %655 = vmatpush1.bf16.msra.mxu0 0
    %656 = vmatprep.subr.bf16.mxu0 0
    %657 = vmatpush1.bf16.msra.mxu0 0
    %658 = vmatprep.mubr.bf16.mxu0 0
    %659 = vmatmul.mubr.bf16.gmra.mrb[0].mxu0 %v624
    %v660 = vpop.f32.mrb[0].mxu0
    %v661 = vadd.f32 0.0, %v660
    %v662 = vpop.f32.mrb[0].mxu0
    %v663 = vpop.f32.mrb[0].mxu0
    %v664 = vadd.f32 0.0, %v663
    %v665 = vpop.f32.mrb[0].mxu0
    %666 = vdwg.mxu0
    %v667 = vld [vmem:[#allocation6 + $0x4] sm:$0x1]
    %v668 = vlaneseq
    %v669 = vshrl.u32 %v668, 7
    %v670 = vsub.s32 0, %v669
    %v671 = vrot.slane %v667, %v670
    %v672 = vadd.f32 %v438, %v671
    %v673 = vadd.f32 %v442, %v671
    %v674 = vld [vmem:[#allocation6 + $0x6] sm:$0x1]
    %v675 = vlaneseq
    %v676 = vshrl.u32 %v675, 7
    %v677 = vsub.s32 0, %v676
    %v678 = vrot.slane %v674, %v677
    %v679 = vadd.f32 %v481, %v678
    %v680 = vadd.f32 %v485, %v678
    %v681 = vld [vmem:[#allocation6 + $0x8] sm:$0x1]
    %v682 = vlaneseq
    %v683 = vshrl.u32 %v682, 7
    %v684 = vsub.s32 0, %v683
    %v685 = vrot.slane %v681, %v684
    %v686 = vadd.f32 %v524, %v685
    %v687 = vadd.f32 %v528, %v685
    %v688 = vpack.c.bf16 %v673, %v672
    %v689 = vpack.c.bf16 %v680, %v679
    %690 = vmatprep.subr.bf16.mxu0 0
    %691 = vmatpush1.bf16.xpose.msra.mxu0 %v689
    %692 = vmatprep.subr.bf16.mxu0 0
    %693 = vmatpush1.bf16.xpose.msra.mxu0 0
    %694 = vmatprep.subr.bf16.mxu0 0
    %695 = vmatpush1.bf16.xpose.msra.mxu0 0
    %696 = vmatprep.subr.bf16.mxu0 0
    %697 = vmatpush1.bf16.xpose.msra.mxu0 0
    %698 = vmatprep.subr.bf16.mxu0 0
    %699 = vmatpush1.bf16.xpose.msra.mxu0 0
    %700 = vmatprep.subr.bf16.mxu0 0
    %701 = vmatpush1.bf16.xpose.msra.mxu0 0
    %702 = vmatprep.subr.bf16.mxu0 0
    %703 = vmatpush1.bf16.xpose.msra.mxu0 0
    %704 = vmatprep.subr.bf16.mxu0 0
    %705 = vmatpush1.bf16.xpose.msra.mxu0 0
    %706 = vmatprep.subr.bf16.mxu0 0
    %707 = vmatpush1.bf16.xpose.msra.mxu0 0
    %708 = vmatprep.subr.bf16.mxu0 0
    %709 = vmatpush1.bf16.xpose.msra.mxu0 0
    %710 = vmatprep.subr.bf16.mxu0 0
    %711 = vmatpush1.bf16.xpose.msra.mxu0 0
    %712 = vmatprep.subr.bf16.mxu0 0
    %713 = vmatpush1.bf16.xpose.msra.mxu0 0
    %714 = vmatprep.subr.bf16.mxu0 0
    %715 = vmatpush1.bf16.xpose.msra.mxu0 0
    %716 = vmatprep.subr.bf16.mxu0 0
    %717 = vmatpush1.bf16.xpose.msra.mxu0 0
    %718 = vmatprep.subr.bf16.mxu0 0
    %719 = vmatpush1.bf16.xpose.msra.mxu0 0
    %720 = vmatprep.subr.bf16.mxu0 0
    %721 = vmatpush1.bf16.xpose.msra.mxu0 0
    %722 = vmatprep.mubr.bf16.mxu0 0
    %723 = vmatmul.mubr.bf16.gmra.mrb[0].mxu0 %v688
    %v724 = vpop.f32.mrb[0].mxu0
    %v725 = vadd.f32 0.0, %v724
    %v726 = vpop.f32.mrb[0].mxu0
    %v727 = vpop.f32.mrb[0].mxu0
    %v728 = vadd.f32 0.0, %v727
    %v729 = vpop.f32.mrb[0].mxu0
    %730 = vdwg.mxu0
    %v731 = vmul.f32 %v725, 0.25
    %v732 = vmul.f32 %v728, 0.25
    %v733 = vadd.f32 %v731, %v72
    %v734 = vadd.f32 %v732, %v73
    %v735 = vsel %vm598, %v733, -inf
    %736 = vmax.xlane.f32.xlu0 %v735
    %v737 = vpop.xlane.xlu0 %736
    %v738 = vsel %vm598, %v734, -inf
    %739 = vmax.xlane.f32.xlu0 %v738
    %v740 = vpop.xlane.xlu0 %739
    %v741 = vsub.f32 %v733, %v737
    %v742 = vsub.f32 %v734, %v740
    %v743 = vmul.f32 %v741, 1.442695
    %v744 = vpow.pop %v743
    %v745 = vmul.f32 %v742, 1.442695
    %v746 = vpow.pop %v745
    %v747 = vsel %vm598, %v744, 0.0
    %748 = vadd.xlane.f32.xlu0 %v747
    %v749 = vpop.xlane.xlu0 %748
    %v750 = vsel %vm598, %v746, 0.0
    %751 = vadd.xlane.f32.xlu0 %v750
    %v752 = vpop.xlane.xlu0 %751
    %v753 = vrcp.pop %v749
    %v754 = vmul.f32 %v744, %v753
    %v755 = vrcp.pop %v752
    %v756 = vmul.f32 %v746, %v755
    %v757 = vpack.c.bf16 %v756, %v754
    %v758 = vpack.c.bf16 %v687, %v686
    %v760 = vsel %vm598, %v757, 0
    %762 = vmatprep.subr.bf16.mxu0 0
    %763 = vmatpush1.bf16.msra.mxu0 %v758
    %764 = vmatprep.subr.bf16.mxu0 0
    %765 = vmatpush1.bf16.msra.mxu0 0
    %766 = vmatprep.subr.bf16.mxu0 0
    %767 = vmatpush1.bf16.msra.mxu0 0
    %768 = vmatprep.subr.bf16.mxu0 0
    %769 = vmatpush1.bf16.msra.mxu0 0
    %770 = vmatprep.subr.bf16.mxu0 0
    %771 = vmatpush1.bf16.msra.mxu0 0
    %772 = vmatprep.subr.bf16.mxu0 0
    %773 = vmatpush1.bf16.msra.mxu0 0
    %774 = vmatprep.subr.bf16.mxu0 0
    %775 = vmatpush1.bf16.msra.mxu0 0
    %776 = vmatprep.subr.bf16.mxu0 0
    %777 = vmatpush1.bf16.msra.mxu0 0
    %778 = vmatprep.subr.bf16.mxu0 0
    %779 = vmatpush1.bf16.msra.mxu0 0
    %780 = vmatprep.subr.bf16.mxu0 0
    %781 = vmatpush1.bf16.msra.mxu0 0
    %782 = vmatprep.subr.bf16.mxu0 0
    %783 = vmatpush1.bf16.msra.mxu0 0
    %784 = vmatprep.subr.bf16.mxu0 0
    %785 = vmatpush1.bf16.msra.mxu0 0
    %786 = vmatprep.subr.bf16.mxu0 0
    %787 = vmatpush1.bf16.msra.mxu0 0
    %788 = vmatprep.subr.bf16.mxu0 0
    %789 = vmatpush1.bf16.msra.mxu0 0
    %790 = vmatprep.subr.bf16.mxu0 0
    %791 = vmatpush1.bf16.msra.mxu0 0
    %792 = vmatprep.subr.bf16.mxu0 0
    %793 = vmatpush1.bf16.msra.mxu0 0
    %794 = vmatprep.mubr.bf16.mxu0 0
    %795 = vmatmul.mubr.bf16.gmra.mrb[0].mxu0 %v760
    %v796 = vpop.f32.mrb[0].mxu0
    %v797 = vadd.f32 0.0, %v796
    %v798 = vpop.f32.mrb[0].mxu0
    %v799 = vpop.f32.mrb[0].mxu0
    %v800 = vadd.f32 0.0, %v799
    %v801 = vpop.f32.mrb[0].mxu0
    %802 = vdwg.mxu0
    %v803 = vld [vmem:[%s3] sm:$0xf]
    %v804 = vld [vmem:[%s3 + $0x4] sm:$0xf]
    %v805 = vld [vmem:[%s3 + $0x8] sm:$0xf]
    %v806 = vld [vmem:[%s3 + $0xc] sm:$0xf]
    %v807 = vld [vmem:[%s3 + $0x10] sm:$0xf]
    %v808 = vld [vmem:[%s3 + $0x14] sm:$0xf]
    %v809 = vld [vmem:[%s3 + $0x18] sm:$0xf]
    %v810 = vld [vmem:[%s3 + $0x1c] sm:$0xf]
    %v811 = vld [vmem:[%s3 + $0x20] sm:$0xf]
    %v812 = vld [vmem:[%s3 + $0x24] sm:$0xf]
    %v813 = vld [vmem:[%s3 + $0x28] sm:$0xf]
    %v814 = vld [vmem:[%s3 + $0x2c] sm:$0xf]
    %v815 = vld [vmem:[%s3 + $0x30] sm:$0xf]
    %v816 = vld [vmem:[%s3 + $0x34] sm:$0xf]
    %v817 = vld [vmem:[%s3 + $0x38] sm:$0xf]
    %v818 = vld [vmem:[%s3 + $0x3c] sm:$0xf]
    %v819 = vld [vmem:[%s3 + $0x40] sm:$0xf]
    %v820 = vld [vmem:[%s3 + $0x44] sm:$0xf]
    %v821 = vld [vmem:[%s3 + $0x48] sm:$0xf]
    %v822 = vld [vmem:[%s3 + $0x4c] sm:$0xf]
    %v823 = vld [vmem:[%s3 + $0x50] sm:$0xf]
    %v824 = vld [vmem:[%s3 + $0x54] sm:$0xf]
    %v825 = vld [vmem:[%s3 + $0x58] sm:$0xf]
    %v826 = vld [vmem:[%s3 + $0x5c] sm:$0xf]
    %v827 = vld [vmem:[%s3 + $0x60] sm:$0xf]
    %v828 = vld [vmem:[%s3 + $0x64] sm:$0xf]
    %v829 = vld [vmem:[%s3 + $0x68] sm:$0xf]
    %v830 = vld [vmem:[%s3 + $0x6c] sm:$0xf]
    %v831 = vld [vmem:[%s3 + $0x70] sm:$0xf]
    %v832 = vld [vmem:[%s3 + $0x74] sm:$0xf]
    %v833 = vld [vmem:[%s3 + $0x78] sm:$0xf]
    %v834 = vld [vmem:[%s3 + $0x7c] sm:$0xf]
    %v835 = vpack.c.bf16 %v664, %v661
    %v836 = vpack.c.bf16 %v800, %v797
    %v837 = vld [vmem:[#allocation6 + $0x9] sm:$0x1]
    %v838 = vlaneseq
    %v839 = vshrl.u32 %v838, 7
    %v840 = vsub.s32 0, %v839
    %v841 = vrot.slane %v837, %v840
    %v874 = vunpack.c.l.b16 %v803
    %v875 = vunpack.c.l.b16 %v804
    %v876 = vunpack.c.l.b16 %v805
    %v877 = vunpack.c.l.b16 %v806
    %v878 = vunpack.c.l.b16 %v807
    %v879 = vunpack.c.l.b16 %v808
    %v880 = vunpack.c.l.b16 %v809
    %v881 = vunpack.c.l.b16 %v810
    %v882 = vunpack.c.l.b16 %v811
    %v883 = vunpack.c.l.b16 %v812
    %v884 = vunpack.c.l.b16 %v813
    %v885 = vunpack.c.l.b16 %v814
    %v886 = vunpack.c.l.b16 %v815
    %v887 = vunpack.c.l.b16 %v816
    %v888 = vunpack.c.l.b16 %v817
    %v889 = vunpack.c.l.b16 %v818
    %v890 = vunpack.c.l.b16 %v819
    %v891 = vunpack.c.l.b16 %v820
    %v892 = vunpack.c.l.b16 %v821
    %v893 = vunpack.c.l.b16 %v822
    %v894 = vunpack.c.l.b16 %v823
    %v895 = vunpack.c.l.b16 %v824
    %v896 = vunpack.c.l.b16 %v825
    %v897 = vunpack.c.l.b16 %v826
    %v898 = vunpack.c.l.b16 %v827
    %v899 = vunpack.c.l.b16 %v828
    %v900 = vunpack.c.l.b16 %v829
    %v901 = vunpack.c.l.b16 %v830
    %v902 = vunpack.c.l.b16 %v831
    %v903 = vunpack.c.l.b16 %v832
    %v904 = vunpack.c.l.b16 %v833
    %v905 = vunpack.c.l.b16 %v834
    %v906 = vpack.c.b16 %v875, %v874
    %v907 = vpack.c.b16 %v877, %v876
    %v908 = vpack.c.b16 %v879, %v878
    %v909 = vpack.c.b16 %v881, %v880
    %v910 = vpack.c.b16 %v883, %v882
    %v911 = vpack.c.b16 %v885, %v884
    %v912 = vpack.c.b16 %v887, %v886
    %v913 = vpack.c.b16 %v889, %v888
    %v914 = vpack.c.b16 %v891, %v890
    %v915 = vpack.c.b16 %v893, %v892
    %v916 = vpack.c.b16 %v895, %v894
    %v917 = vpack.c.b16 %v897, %v896
    %v918 = vpack.c.b16 %v899, %v898
    %v919 = vpack.c.b16 %v901, %v900
    %v920 = vpack.c.b16 %v903, %v902
    %v921 = vpack.c.b16 %v905, %v904
    %938 = vmatprep.subr.bf16.mxu0 0
    %939 = vmatpush1.bf16.msra.mxu0 %v906
    %940 = vmatprep.subr.bf16.mxu0 0
    %941 = vmatpush1.bf16.msra.mxu0 %v907
    %942 = vmatprep.subr.bf16.mxu0 0
    %943 = vmatpush1.bf16.msra.mxu0 %v908
    %944 = vmatprep.subr.bf16.mxu0 0
    %945 = vmatpush1.bf16.msra.mxu0 %v909
    %946 = vmatprep.subr.bf16.mxu0 0
    %947 = vmatpush1.bf16.msra.mxu0 %v910
    %948 = vmatprep.subr.bf16.mxu0 0
    %949 = vmatpush1.bf16.msra.mxu0 %v911
    %950 = vmatprep.subr.bf16.mxu0 0
    %951 = vmatpush1.bf16.msra.mxu0 %v912
    %952 = vmatprep.subr.bf16.mxu0 0
    %953 = vmatpush1.bf16.msra.mxu0 %v913
    %954 = vmatprep.subr.bf16.mxu0 0
    %955 = vmatpush1.bf16.msra.mxu0 %v914
    %956 = vmatprep.subr.bf16.mxu0 0
    %957 = vmatpush1.bf16.msra.mxu0 %v915
    %958 = vmatprep.subr.bf16.mxu0 0
    %959 = vmatpush1.bf16.msra.mxu0 %v916
    %960 = vmatprep.subr.bf16.mxu0 0
    %961 = vmatpush1.bf16.msra.mxu0 %v917
    %962 = vmatprep.subr.bf16.mxu0 0
    %963 = vmatpush1.bf16.msra.mxu0 %v918
    %964 = vmatprep.subr.bf16.mxu0 0
    %965 = vmatpush1.bf16.msra.mxu0 %v919
    %966 = vmatprep.subr.bf16.mxu0 0
    %967 = vmatpush1.bf16.msra.mxu0 %v920
    %968 = vmatprep.subr.bf16.mxu0 0
    %969 = vmatpush1.bf16.msra.mxu0 %v921
    %970 = vmatprep.mubr.bf16.mxu0 %v836
    %971 = vmatmul.mubr.bf16.gmra.mrb[0].mxu0 %v835
    %v972 = vpop.f32.mrb[0].mxu0
    %v973 = vadd.f32 %v841, %v972
    %v974 = vpop.f32.mrb[0].mxu0
    %v975 = vpop.f32.mrb[0].mxu0
    %v976 = vadd.f32 %v841, %v975
    %v977 = vpop.f32.mrb[0].mxu0
    %978 = vdwg.mxu0
    %v979 = vadd.f32 %v973, %v110
    %v980 = vadd.f32 %v976, %v111
    %981 = vadd.xlane.f32.xlu0 %v979
    %v982 = vpop.xlane.xlu0 %981
    %983 = vadd.xlane.f32.xlu0 %v980
    %v984 = vpop.xlane.xlu0 %983
    %v985 = vmul.f32 %v982, 0.03125
    %v986 = vmul.f32 %v984, 0.03125
    %v987 = vsub.f32 %v979, %v985
    %v988 = vsub.f32 %v980, %v986
    %v989 = vmul.f32 %v987, %v69
    %v990 = vmul.f32 %v988, %v69
    %v991 = vmul.f32 %v989, %v989
    %v992 = vmul.f32 %v990, %v990
    %993 = vadd.xlane.f32.xlu0 %v991
    %v994 = vpop.xlane.xlu0 %993
    %995 = vadd.xlane.f32.xlu0 %v992
    %v996 = vpop.xlane.xlu0 %995
    %v997 = vmul.f32 %v994, 0.03125
    %v998 = vmul.f32 %v996, 0.03125
    %v999 = vadd.f32 %v997, 1e-12
    %v1000 = vadd.f32 %v998, 1e-12
    %v1001 = vrsqrt.pop %v999
    %v1002 = vrsqrt.pop %v1000
    %v1003 = vmul.f32 %v989, %v1001
    %v1004 = vmul.f32 %v990, %v1002
    %v1005 = vld [vmem:[#allocation6 + $0xa] sm:$0x1]
    %v1006 = vlaneseq
    %v1007 = vshrl.u32 %v1006, 7
    %v1008 = vsub.s32 0, %v1007
    %v1009 = vrot.slane %v1005, %v1008
    %v1010 = vmul.f32 %v1003, %v1009
    %v1011 = vmul.f32 %v1004, %v1009
    %v1012 = vld [vmem:[#allocation6 + $0xb] sm:$0x1]
    %v1013 = vlaneseq
    %v1014 = vshrl.u32 %v1013, 7
    %v1015 = vsub.s32 0, %v1014
    %v1016 = vrot.slane %v1012, %v1015
    %v1017 = vadd.f32 %v1010, %v1016
    %v1018 = vadd.f32 %v1011, %v1016
    %v1019 = vld [vmem:[#allocation4] sm:$0xf]
    %v1020 = vld [vmem:[#allocation4 + $0x4] sm:$0xf]
    %v1021 = vld [vmem:[#allocation4 + $0x8] sm:$0xf]
    %v1022 = vld [vmem:[#allocation4 + $0xc] sm:$0xf]
    %v1023 = vld [vmem:[#allocation4 + $0x10] sm:$0xf]
    %v1024 = vld [vmem:[#allocation4 + $0x14] sm:$0xf]
    %v1025 = vld [vmem:[#allocation4 + $0x18] sm:$0xf]
    %v1026 = vld [vmem:[#allocation4 + $0x1c] sm:$0xf]
    %v1027 = vld [vmem:[#allocation4 + $0x20] sm:$0xf]
    %v1028 = vld [vmem:[#allocation4 + $0x24] sm:$0xf]
    %v1029 = vld [vmem:[#allocation4 + $0x28] sm:$0xf]
    %v1030 = vld [vmem:[#allocation4 + $0x2c] sm:$0xf]
    %v1031 = vld [vmem:[#allocation4 + $0x30] sm:$0xf]
    %v1032 = vld [vmem:[#allocation4 + $0x34] sm:$0xf]
    %v1033 = vld [vmem:[#allocation4 + $0x38] sm:$0xf]
    %v1034 = vld [vmem:[#allocation4 + $0x3c] sm:$0xf]
    %v1035 = vpack.c.bf16 %v1018, %v1017
    %v1036 = vld [vmem:[#allocation6 + $0xc] sm:$0x1]
    %v1037 = vlaneseq
    %v1038 = vshrl.u32 %v1037, 7
    %v1039 = vsub.s32 0, %v1038
    %v1040 = vrot.slane %v1036, %v1039
    %v1057 = vunpack.c.l.b16 %v1019
    %v1058 = vunpack.c.l.b16 %v1020
    %v1059 = vunpack.c.l.b16 %v1021
    %v1060 = vunpack.c.l.b16 %v1022
    %v1061 = vunpack.c.l.b16 %v1023
    %v1062 = vunpack.c.l.b16 %v1024
    %v1063 = vunpack.c.l.b16 %v1025
    %v1064 = vunpack.c.l.b16 %v1026
    %v1065 = vunpack.c.l.b16 %v1027
    %v1066 = vunpack.c.l.b16 %v1028
    %v1067 = vunpack.c.l.b16 %v1029
    %v1068 = vunpack.c.l.b16 %v1030
    %v1069 = vunpack.c.l.b16 %v1031
    %v1070 = vunpack.c.l.b16 %v1032
    %v1071 = vunpack.c.l.b16 %v1033
    %v1072 = vunpack.c.l.b16 %v1034
    %v1073 = vpack.c.b16 %v1058, %v1057
    %v1074 = vpack.c.b16 %v1060, %v1059
    %v1075 = vpack.c.b16 %v1062, %v1061
    %v1076 = vpack.c.b16 %v1064, %v1063
    %v1077 = vpack.c.b16 %v1066, %v1065
    %v1078 = vpack.c.b16 %v1068, %v1067
    %v1079 = vpack.c.b16 %v1070, %v1069
    %v1080 = vpack.c.b16 %v1072, %v1071
    %1089 = vmatprep.subr.bf16.mxu0 0
    %1090 = vmatpush1.bf16.msra.mxu0 %v1073
    %1091 = vmatprep.subr.bf16.mxu0 0
    %1092 = vmatpush1.bf16.msra.mxu0 %v1074
    %1093 = vmatprep.subr.bf16.mxu0 0
    %1094 = vmatpush1.bf16.msra.mxu0 %v1075
    %1095 = vmatprep.subr.bf16.mxu0 0
    %1096 = vmatpush1.bf16.msra.mxu0 %v1076
    %1097 = vmatprep.subr.bf16.mxu0 0
    %1098 = vmatpush1.bf16.msra.mxu0 %v1077
    %1099 = vmatprep.subr.bf16.mxu0 0
    %1100 = vmatpush1.bf16.msra.mxu0 %v1078
    %1101 = vmatprep.subr.bf16.mxu0 0
    %1102 = vmatpush1.bf16.msra.mxu0 %v1079
    %1103 = vmatprep.subr.bf16.mxu0 0
    %1104 = vmatpush1.bf16.msra.mxu0 %v1080
    %1105 = vmatprep.subr.bf16.mxu0 0
    %1106 = vmatpush1.bf16.msra.mxu0 0
    %1107 = vmatprep.subr.bf16.mxu0 0
    %1108 = vmatpush1.bf16.msra.mxu0 0
    %1109 = vmatprep.subr.bf16.mxu0 0
    %1110 = vmatpush1.bf16.msra.mxu0 0
    %1111 = vmatprep.subr.bf16.mxu0 0
    %1112 = vmatpush1.bf16.msra.mxu0 0
    %1113 = vmatprep.subr.bf16.mxu0 0
    %1114 = vmatpush1.bf16.msra.mxu0 0
    %1115 = vmatprep.subr.bf16.mxu0 0
    %1116 = vmatpush1.bf16.msra.mxu0 0
    %1117 = vmatprep.subr.bf16.mxu0 0
    %1118 = vmatpush1.bf16.msra.mxu0 0
    %1119 = vmatprep.subr.bf16.mxu0 0
    %1120 = vmatpush1.bf16.msra.mxu0 0
    %1121 = vmatprep.mubr.bf16.mxu0 0
    %1122 = vmatmul.mubr.bf16.gmra.mrb[0].mxu0 %v1035
    %v1123 = vpop.f32.mrb[0].mxu0
    %v1124 = vadd.f32 %v1040, %v1123
    %v1125 = vpop.f32.mrb[0].mxu0
    %v1126 = vpop.f32.mrb[0].mxu0
    %v1127 = vadd.f32 %v1040, %v1126
    %v1128 = vpop.f32.mrb[0].mxu0
    %1129 = vdwg.mxu0
    %v1130 = vmul.f32 %v1124, 0.5
    %v1131 = vmul.f32 %v1127, 0.5
    %v1132 = vmul.f32 %v1124, 0.044715
    %v1133 = vmul.f32 %v1127, 0.044715
    %v1134 = vmul.f32 %v1132, %v1124
    %v1135 = vmul.f32 %v1133, %v1127
    %v1136 = vmul.f32 %v1134, %v1124
    %v1137 = vmul.f32 %v1135, %v1127
    %v1138 = vadd.f32 %v1124, %v1136
    %v1139 = vadd.f32 %v1127, %v1137
    %v1140 = vmul.f32 %v1138, 0.7978846
    %v1141 = vmul.f32 %v1139, 0.7978846
    %v1142 = vtanh.pop %v1140
    %v1143 = vtanh.pop %v1141
    %v1144 = vadd.f32 %v1142, 1.0
    %v1145 = vadd.f32 %v1143, 1.0
    %v1146 = vmul.f32 %v1130, %v1144
    %v1147 = vmul.f32 %v1131, %v1145
    %s1148 = scalar_lea.vmem [#allocation4], 64
    %v1149 = vld [vmem:[%s1148] sm:$0xf]
    %v1150 = vld [vmem:[%s1148 + $0x4] sm:$0xf]
    %v1151 = vld [vmem:[%s1148 + $0x8] sm:$0xf]
    %v1152 = vld [vmem:[%s1148 + $0xc] sm:$0xf]
    %v1153 = vld [vmem:[%s1148 + $0x10] sm:$0xf]
    %v1154 = vld [vmem:[%s1148 + $0x14] sm:$0xf]
    %v1155 = vld [vmem:[%s1148 + $0x18] sm:$0xf]
    %v1156 = vld [vmem:[%s1148 + $0x1c] sm:$0xf]
    %v1157 = vld [vmem:[%s1148 + $0x20] sm:$0xf]
    %v1158 = vld [vmem:[%s1148 + $0x24] sm:$0xf]
    %v1159 = vld [vmem:[%s1148 + $0x28] sm:$0xf]
    %v1160 = vld [vmem:[%s1148 + $0x2c] sm:$0xf]
    %v1161 = vld [vmem:[%s1148 + $0x30] sm:$0xf]
    %v1162 = vld [vmem:[%s1148 + $0x34] sm:$0xf]
    %v1163 = vld [vmem:[%s1148 + $0x38] sm:$0xf]
    %v1164 = vld [vmem:[%s1148 + $0x3c] sm:$0xf]
    %v1165 = vpack.c.bf16 %v1147, %v1146
    %v1166 = vld [vmem:[#allocation6 + $0xd] sm:$0x1]
    %v1167 = vlaneseq
    %v1168 = vshrl.u32 %v1167, 7
    %v1169 = vsub.s32 0, %v1168
    %v1170 = vrot.slane %v1166, %v1169
    %v1187 = vunpack.c.l.b16 %v1149
    %v1188 = vunpack.c.l.b16 %v1150
    %v1189 = vunpack.c.l.b16 %v1151
    %v1190 = vunpack.c.l.b16 %v1152
    %v1191 = vunpack.c.l.b16 %v1153
    %v1192 = vunpack.c.l.b16 %v1154
    %v1193 = vunpack.c.l.b16 %v1155
    %v1194 = vunpack.c.l.b16 %v1156
    %v1195 = vunpack.c.l.b16 %v1157
    %v1196 = vunpack.c.l.b16 %v1158
    %v1197 = vunpack.c.l.b16 %v1159
    %v1198 = vunpack.c.l.b16 %v1160
    %v1199 = vunpack.c.l.b16 %v1161
    %v1200 = vunpack.c.l.b16 %v1162
    %v1201 = vunpack.c.l.b16 %v1163
    %v1202 = vunpack.c.l.b16 %v1164
    %v1203 = vpack.c.b16 %v1188, %v1187
    %v1204 = vpack.c.b16 %v1190, %v1189
    %v1205 = vpack.c.b16 %v1192, %v1191
    %v1206 = vpack.c.b16 %v1194, %v1193
    %v1207 = vpack.c.b16 %v1196, %v1195
    %v1208 = vpack.c.b16 %v1198, %v1197
    %v1209 = vpack.c.b16 %v1200, %v1199
    %v1210 = vpack.c.b16 %v1202, %v1201
    %1219 = vmatprep.subr.bf16.mxu0 0
    %1220 = vmatpush1.bf16.msra.mxu0 %v1203
    %1221 = vmatprep.subr.bf16.mxu0 0
    %1222 = vmatpush1.bf16.msra.mxu0 %v1204
    %1223 = vmatprep.subr.bf16.mxu0 0
    %1224 = vmatpush1.bf16.msra.mxu0 %v1205
    %1225 = vmatprep.subr.bf16.mxu0 0
    %1226 = vmatpush1.bf16.msra.mxu0 %v1206
    %1227 = vmatprep.subr.bf16.mxu0 0
    %1228 = vmatpush1.bf16.msra.mxu0 %v1207
    %1229 = vmatprep.subr.bf16.mxu0 0
    %1230 = vmatpush1.bf16.msra.mxu0 %v1208
    %1231 = vmatprep.subr.bf16.mxu0 0
    %1232 = vmatpush1.bf16.msra.mxu0 %v1209
    %1233 = vmatprep.subr.bf16.mxu0 0
    %1234 = vmatpush1.bf16.msra.mxu0 %v1210
    %1235 = vmatprep.subr.bf16.mxu0 0
    %1236 = vmatpush1.bf16.msra.mxu0 0
    %1237 = vmatprep.subr.bf16.mxu0 0
    %1238 = vmatpush1.bf16.msra.mxu0 0
    %1239 = vmatprep.subr.bf16.mxu0 0
    %1240 = vmatpush1.bf16.msra.mxu0 0
    %1241 = vmatprep.subr.bf16.mxu0 0
    %1242 = vmatpush1.bf16.msra.mxu0 0
    %1243 = vmatprep.subr.bf16.mxu0 0
    %1244 = vmatpush1.bf16.msra.mxu0 0
    %1245 = vmatprep.subr.bf16.mxu0 0
    %1246 = vmatpush1.bf16.msra.mxu0 0
    %1247 = vmatprep.subr.bf16.mxu0 0
    %1248 = vmatpush1.bf16.msra.mxu0 0
    %1249 = vmatprep.subr.bf16.mxu0 0
    %1250 = vmatpush1.bf16.msra.mxu0 0
    %1251 = vmatprep.mubr.bf16.mxu0 0
    %1252 = vmatmul.mubr.bf16.gmra.mrb[0].mxu0 %v1165
    %v1253 = vpop.f32.mrb[0].mxu0
    %v1254 = vadd.f32 %v1170, %v1253
    %v1255 = vpop.f32.mrb[0].mxu0
    %v1256 = vpop.f32.mrb[0].mxu0
    %v1257 = vadd.f32 %v1170, %v1256
    %v1258 = vpop.f32.mrb[0].mxu0
    %1259 = vdwg.mxu0
    %v1260 = vadd.f32 %v1254, %v1017
    %v1261 = vadd.f32 %v1257, %v1018
    %1262 = vadd.xlane.f32.xlu0 %v1260
    %v1263 = vpop.xlane.xlu0 %1262
    %1264 = vadd.xlane.f32.xlu0 %v1261
    %v1265 = vpop.xlane.xlu0 %1264
    %v1266 = vmul.f32 %v1263, 0.03125
    %v1267 = vmul.f32 %v1265, 0.03125
    %v1268 = vsub.f32 %v1260, %v1266
    %v1269 = vsub.f32 %v1261, %v1267
    %v1270 = vmul.f32 %v1268, %v69
    %v1271 = vmul.f32 %v1269, %v69
    %v1272 = vmul.f32 %v1270, %v1270
    %v1273 = vmul.f32 %v1271, %v1271
    %1274 = vadd.xlane.f32.xlu0 %v1272
    %v1275 = vpop.xlane.xlu0 %1274
    %1276 = vadd.xlane.f32.xlu0 %v1273
    %v1277 = vpop.xlane.xlu0 %1276
    %v1278 = vmul.f32 %v1275, 0.03125
    %v1279 = vmul.f32 %v1277, 0.03125
    %v1280 = vadd.f32 %v1278, 1e-12
    %v1281 = vadd.f32 %v1279, 1e-12
    %v1282 = vrsqrt.pop %v1280
    %v1283 = vrsqrt.pop %v1281
    %v1284 = vmul.f32 %v1270, %v1282
    %v1285 = vmul.f32 %v1271, %v1283
    %v1286 = vld [vmem:[#allocation6 + $0xe] sm:$0x1]
    %v1287 = vlaneseq
    %v1288 = vshrl.u32 %v1287, 7
    %v1289 = vsub.s32 0, %v1288
    %v1290 = vrot.slane %v1286, %v1289
    %v1291 = vmul.f32 %v1284, %v1290
    %v1292 = vmul.f32 %v1285, %v1290
    %v1293 = vld [vmem:[#allocation6 + $0xf] sm:$0x1]
    %v1294 = vlaneseq
    %v1295 = vshrl.u32 %v1294, 7
    %v1296 = vsub.s32 0, %v1295
    %v1297 = vrot.slane %v1293, %v1296
    %v1298 = vadd.f32 %v1291, %v1297
    %v1299 = vadd.f32 %v1292, %v1297
    %s1300 = scalar_lea.vmem [#allocation2], 384
    %v1301 = vld [vmem:[%s1300] sm:$0xff]
    %v1302 = vld [vmem:[%s1300 + $0x8] sm:$0xff]
    %v1303 = vld [vmem:[%s1300 + $0x10] sm:$0xff]
    %v1304 = vld [vmem:[%s1300 + $0x18] sm:$0xff]
    %v1305 = vld [vmem:[%s1300 + $0x20] sm:$0xff]
    %v1306 = vld [vmem:[%s1300 + $0x28] sm:$0xff]
    %v1307 = vld [vmem:[%s1300 + $0x30] sm:$0xff]
    %v1308 = vld [vmem:[%s1300 + $0x38] sm:$0xff]
    %v1309 = vld [vmem:[%s1300 + $0x40] sm:$0xff]
    %v1310 = vld [vmem:[%s1300 + $0x48] sm:$0xff]
    %v1311 = vld [vmem:[%s1300 + $0x50] sm:$0xff]
    %v1312 = vld [vmem:[%s1300 + $0x58] sm:$0xff]
    %v1313 = vld [vmem:[%s1300 + $0x60] sm:$0xff]
    %v1314 = vld [vmem:[%s1300 + $0x68] sm:$0xff]
    %v1315 = vld [vmem:[%s1300 + $0x70] sm:$0xff]
    %v1316 = vld [vmem:[%s1300 + $0x78] sm:$0xff]
    %v1317 = vld [vmem:[%s1300 + $0x80] sm:$0xff]
    %v1318 = vld [vmem:[%s1300 + $0x88] sm:$0xff]
    %v1319 = vld [vmem:[%s1300 + $0x90] sm:$0xff]
    %v1320 = vld [vmem:[%s1300 + $0x98] sm:$0xff]
    %v1321 = vld [vmem:[%s1300 + $0xa0] sm:$0xff]
    %v1322 = vld [vmem:[%s1300 + $0xa8] sm:$0xff]
    %v1323 = vld [vmem:[%s1300 + $0xb0] sm:$0xff]
    %v1324 = vld [vmem:[%s1300 + $0xb8] sm:$0xff]
    %v1325 = vld [vmem:[%s1300 + $0xc0] sm:$0xff]
    %v1326 = vld [vmem:[%s1300 + $0xc8] sm:$0xff]
    %v1327 = vld [vmem:[%s1300 + $0xd0] sm:$0xff]
    %v1328 = vld [vmem:[%s1300 + $0xd8] sm:$0xff]
    %v1329 = vld [vmem:[%s1300 + $0xe0] sm:$0xff]
    %v1330 = vld [vmem:[%s1300 + $0xe8] sm:$0xff]
    %v1331 = vld [vmem:[%s1300 + $0xf0] sm:$0xff]
    %v1332 = vld [vmem:[%s1300 + $0xf8] sm:$0xff]
    %v1333 = vld [vmem:[%s1300 + $0x100] sm:$0xff]
    %v1334 = vld [vmem:[%s1300 + $0x108] sm:$0xff]
    %v1335 = vld [vmem:[%s1300 + $0x110] sm:$0xff]
    %v1336 = vld [vmem:[%s1300 + $0x118] sm:$0xff]
    %v1337 = vld [vmem:[%s1300 + $0x120] sm:$0xff]
    %v1338 = vld [vmem:[%s1300 + $0x128] sm:$0xff]
    %v1339 = vld [vmem:[%s1300 + $0x130] sm:$0xff]
    %v1340 = vld [vmem:[%s1300 + $0x138] sm:$0xff]
    %v1341 = vld [vmem:[%s1300 + $0x140] sm:$0xff]
    %v1342 = vld [vmem:[%s1300 + $0x148] sm:$0xff]
    %v1343 = vld [vmem:[%s1300 + $0x150] sm:$0xff]
    %v1344 = vld [vmem:[%s1300 + $0x158] sm:$0xff]
    %v1345 = vld [vmem:[%s1300 + $0x160] sm:$0xff]
    %v1346 = vld [vmem:[%s1300 + $0x168] sm:$0xff]
    %v1347 = vld [vmem:[%s1300 + $0x170] sm:$0xff]
    %v1348 = vld [vmem:[%s1300 + $0x178] sm:$0xff]
    %v1349 = vpack.c.bf16 %v1299, %v1298
    %v1398 = vunpack.c.l.b16 %v1301
    %v1399 = vunpack.c.h.b16 %v1301
    %v1400 = vunpack.c.l.b16 %v1302
    %v1401 = vunpack.c.h.b16 %v1302
    %v1402 = vunpack.c.l.b16 %v1303
    %v1403 = vunpack.c.h.b16 %v1303
    %v1404 = vunpack.c.l.b16 %v1304
    %v1405 = vunpack.c.h.b16 %v1304
    %v1406 = vunpack.c.l.b16 %v1305
    %v1407 = vunpack.c.h.b16 %v1305
    %v1408 = vunpack.c.l.b16 %v1306
    %v1409 = vunpack.c.h.b16 %v1306
    %v1410 = vunpack.c.l.b16 %v1307
    %v1411 = vunpack.c.h.b16 %v1307
    %v1412 = vunpack.c.l.b16 %v1308
    %v1413 = vunpack.c.h.b16 %v1308
    %v1414 = vunpack.c.l.b16 %v1309
    %v1415 = vunpack.c.h.b16 %v1309
    %v1416 = vunpack.c.l.b16 %v1310
    %v1417 = vunpack.c.h.b16 %v1310
    %v1418 = vunpack.c.l.b16 %v1311
    %v1419 = vunpack.c.h.b16 %v1311
    %v1420 = vunpack.c.l.b16 %v1312
    %v1421 = vunpack.c.h.b16 %v1312
    %v1422 = vunpack.c.l.b16 %v1313
    %v1423 = vunpack.c.h.b16 %v1313
    %v1424 = vunpack.c.l.b16 %v1314
    %v1425 = vunpack.c.h.b16 %v1314
    %v1426 = vunpack.c.l.b16 %v1315
    %v1427 = vunpack.c.h.b16 %v1315
    %v1428 = vunpack.c.l.b16 %v1316
    %v1429 = vunpack.c.h.b16 %v1316
    %v1430 = vunpack.c.l.b16 %v1317
    %v1431 = vunpack.c.h.b16 %v1317
    %v1432 = vunpack.c.l.b16 %v1318
    %v1433 = vunpack.c.h.b16 %v1318
    %v1434 = vunpack.c.l.b16 %v1319
    %v1435 = vunpack.c.h.b16 %v1319
    %v1436 = vunpack.c.l.b16 %v1320
    %v1437 = vunpack.c.h.b16 %v1320
    %v1438 = vunpack.c.l.b16 %v1321
    %v1439 = vunpack.c.h.b16 %v1321
    %v1440 = vunpack.c.l.b16 %v1322
    %v1441 = vunpack.c.h.b16 %v1322
    %v1442 = vunpack.c.l.b16 %v1323
    %v1443 = vunpack.c.h.b16 %v1323
    %v1444 = vunpack.c.l.b16 %v1324
    %v1445 = vunpack.c.h.b16 %v1324
    %v1446 = vunpack.c.l.b16 %v1325
    %v1447 = vunpack.c.h.b16 %v1325
    %v1448 = vunpack.c.l.b16 %v1326
    %v1449 = vunpack.c.h.b16 %v1326
    %v1450 = vunpack.c.l.b16 %v1327
    %v1451 = vunpack.c.h.b16 %v1327
    %v1452 = vunpack.c.l.b16 %v1328
    %v1453 = vunpack.c.h.b16 %v1328
    %v1454 = vunpack.c.l.b16 %v1329
    %v1455 = vunpack.c.h.b16 %v1329
    %v1456 = vunpack.c.l.b16 %v1330
    %v1457 = vunpack.c.h.b16 %v1330
    %v1458 = vunpack.c.l.b16 %v1331
    %v1459 = vunpack.c.h.b16 %v1331
    %v1460 = vunpack.c.l.b16 %v1332
    %v1461 = vunpack.c.h.b16 %v1332
    %v1462 = vunpack.c.l.b16 %v1333
    %v1463 = vunpack.c.h.b16 %v1333
    %v1464 = vunpack.c.l.b16 %v1334
    %v1465 = vunpack.c.h.b16 %v1334
    %v1466 = vunpack.c.l.b16 %v1335
    %v1467 = vunpack.c.h.b16 %v1335
    %v1468 = vunpack.c.l.b16 %v1336
    %v1469 = vunpack.c.h.b16 %v1336
    %v1470 = vunpack.c.l.b16 %v1337
    %v1471 = vunpack.c.h.b16 %v1337
    %v1472 = vunpack.c.l.b16 %v1338
    %v1473 = vunpack.c.h.b16 %v1338
    %v1474 = vunpack.c.l.b16 %v1339
    %v1475 = vunpack.c.h.b16 %v1339
    %v1476 = vunpack.c.l.b16 %v1340
    %v1477 = vunpack.c.h.b16 %v1340
    %v1478 = vunpack.c.l.b16 %v1341
    %v1479 = vunpack.c.h.b16 %v1341
    %v1480 = vunpack.c.l.b16 %v1342
    %v1481 = vunpack.c.h.b16 %v1342
    %v1482 = vunpack.c.l.b16 %v1343
    %v1483 = vunpack.c.h.b16 %v1343
    %v1484 = vunpack.c.l.b16 %v1344
    %v1485 = vunpack.c.h.b16 %v1344
    %v1486 = vunpack.c.l.b16 %v1345
    %v1487 = vunpack.c.h.b16 %v1345
    %v1488 = vunpack.c.l.b16 %v1346
    %v1489 = vunpack.c.h.b16 %v1346
    %v1490 = vunpack.c.l.b16 %v1347
    %v1491 = vunpack.c.h.b16 %v1347
    %v1492 = vunpack.c.l.b16 %v1348
    %v1493 = vunpack.c.h.b16 %v1348
    %v1494 = vpack.c.b16 %v1404, %v1398
    %v1495 = vpack.c.b16 %v1405, %v1399
    %v1496 = vpack.c.b16 %v1406, %v1400
    %v1497 = vpack.c.b16 %v1407, %v1401
    %v1498 = vpack.c.b16 %v1408, %v1402
    %v1499 = vpack.c.b16 %v1409, %v1403
    %v1500 = vpack.c.b16 %v1416, %v1410
    %v1501 = vpack.c.b16 %v1417, %v1411
    %v1502 = vpack.c.b16 %v1418, %v1412
    %v1503 = vpack.c.b16 %v1419, %v1413
    %v1504 = vpack.c.b16 %v1420, %v1414
    %v1505 = vpack.c.b16 %v1421, %v1415
    %v1506 = vpack.c.b16 %v1428, %v1422
    %v1507 = vpack.c.b16 %v1429, %v1423
    %v1508 = vpack.c.b16 %v1430, %v1424
    %v1509 = vpack.c.b16 %v1431, %v1425
    %v1510 = vpack.c.b16 %v1432, %v1426
    %v1511 = vpack.c.b16 %v1433, %v1427
    %v1512 = vpack.c.b16 %v1440, %v1434
    %v1513 = vpack.c.b16 %v1441, %v1435
    %v1514 = vpack.c.b16 %v1442, %v1436
    %v1515 = vpack.c.b16 %v1443, %v1437
    %v1516 = vpack.c.b16 %v1444, %v1438
    %v1517 = vpack.c.b16 %v1445, %v1439
    %v1518 = vpack.c.b16 %v1452, %v1446
    %v1519 = vpack.c.b16 %v1453, %v1447
    %v1520 = vpack.c.b16 %v1454, %v1448
    %v1521 = vpack.c.b16 %v1455, %v1449
    %v1522 = vpack.c.b16 %v1456, %v1450
    %v1523 = vpack.c.b16 %v1457, %v1451
    %v1524 = vpack.c.b16 %v1464, %v1458
    %v1525 = vpack.c.b16 %v1465, %v1459
    %v1526 = vpack.c.b16 %v1466, %v1460
    %v1527 = vpack.c.b16 %v1467, %v1461
    %v1528 = vpack.c.b16 %v1468, %v1462
    %v1529 = vpack.c.b16 %v1469, %v1463
    %v1530 = vpack.c.b16 %v1476, %v1470
    %v1531 = vpack.c.b16 %v1477, %v1471
    %v1532 = vpack.c.b16 %v1478, %v1472
    %v1533 = vpack.c.b16 %v1479, %v1473
    %v1534 = vpack.c.b16 %v1480, %v1474
    %v1535 = vpack.c.b16 %v1481, %v1475
    %v1536 = vpack.c.b16 %v1488, %v1482
    %v1537 = vpack.c.b16 %v1489, %v1483
    %v1538 = vpack.c.b16 %v1490, %v1484
    %v1539 = vpack.c.b16 %v1491, %v1485
    %v1540 = vpack.c.b16 %v1492, %v1486
    %v1541 = vpack.c.b16 %v1493, %v1487
    %1590 = vmatprep.subr.bf16.mxu0 %v1495
    %1591 = vmatpush1.bf16.msra.mxu0 %v1494
    %1592 = vmatprep.subr.bf16.mxu0 %v1501
    %1593 = vmatpush1.bf16.msra.mxu0 %v1500
    %1594 = vmatprep.subr.bf16.mxu0 %v1507
    %1595 = vmatpush1.bf16.msra.mxu0 %v1506
    %1596 = vmatprep.subr.bf16.mxu0 %v1513
    %1597 = vmatpush1.bf16.msra.mxu0 %v1512
    %1598 = vmatprep.subr.bf16.mxu0 %v1519
    %1599 = vmatpush1.bf16.msra.mxu0 %v1518
    %1600 = vmatprep.subr.bf16.mxu0 %v1525
    %1601 = vmatpush1.bf16.msra.mxu0 %v1524
    %1602 = vmatprep.subr.bf16.mxu0 %v1531
    %1603 = vmatpush1.bf16.msra.mxu0 %v1530
    %1604 = vmatprep.subr.bf16.mxu0 %v1537
    %1605 = vmatpush1.bf16.msra.mxu0 %v1536
    %1606 = vmatprep.subr.bf16.mxu0 0
    %1607 = vmatpush1.bf16.msra.mxu0 0
    %1608 = vmatprep.subr.bf16.mxu0 0
    %1609 = vmatpush1.bf16.msra.mxu0 0
    %1610 = vmatprep.subr.bf16.mxu0 0
    %1611 = vmatpush1.bf16.msra.mxu0 0
    %1612 = vmatprep.subr.bf16.mxu0 0
    %1613 = vmatpush1.bf16.msra.mxu0 0
    %1614 = vmatprep.subr.bf16.mxu0 0
    %1615 = vmatpush1.bf16.msra.mxu0 0
    %1616 = vmatprep.subr.bf16.mxu0 0
    %1617 = vmatpush1.bf16.msra.mxu0 0
    %1618 = vmatprep.subr.bf16.mxu0 0
    %1619 = vmatpush1.bf16.msra.mxu0 0
    %1620 = vmatprep.subr.bf16.mxu0 0
    %1621 = vmatpush1.bf16.msra.mxu0 0
    %1622 = vmatprep.mubr.bf16.mxu0 0
    %1623 = vmatmul.mubr.bf16.gmra.mrb[0].mxu0 %v1349
    %v1624 = vpop.f32.mrb[0].mxu0
    %v1625 = vadd.f32 0.0, %v1624
    %v1626 = vpop.f32.mrb[0].mxu0
    %v1627 = vadd.f32 0.0, %v1626
    %v1628 = vpop.f32.mrb[0].mxu0
    %v1629 = vadd.f32 0.0, %v1628
    %v1630 = vpop.f32.mrb[0].mxu0
    %v1631 = vadd.f32 0.0, %v1630
    %1632 = vdwg.mxu0
    %1633 = vmatprep.subr.bf16.mxu0 %v1497
    %1634 = vmatpush1.bf16.msra.mxu0 %v1496
    %1635 = vmatprep.subr.bf16.mxu0 %v1503
    %1636 = vmatpush1.bf16.msra.mxu0 %v1502
    %1637 = vmatprep.subr.bf16.mxu0 %v1509
    %1638 = vmatpush1.bf16.msra.mxu0 %v1508
    %1639 = vmatprep.subr.bf16.mxu0 %v1515
    %1640 = vmatpush1.bf16.msra.mxu0 %v1514
    %1641 = vmatprep.subr.bf16.mxu0 %v1521
    %1642 = vmatpush1.bf16.msra.mxu0 %v1520
    %1643 = vmatprep.subr.bf16.mxu0 %v1527
    %1644 = vmatpush1.bf16.msra.mxu0 %v1526
    %1645 = vmatprep.subr.bf16.mxu0 %v1533
    %1646 = vmatpush1.bf16.msra.mxu0 %v1532
    %1647 = vmatprep.subr.bf16.mxu0 %v1539
    %1648 = vmatpush1.bf16.msra.mxu0 %v1538
    %1649 = vmatprep.subr.bf16.mxu0 0
    %1650 = vmatpush1.bf16.msra.mxu0 0
    %1651 = vmatprep.subr.bf16.mxu0 0
    %1652 = vmatpush1.bf16.msra.mxu0 0
    %1653 = vmatprep.subr.bf16.mxu0 0
    %1654 = vmatpush1.bf16.msra.mxu0 0
    %1655 = vmatprep.subr.bf16.mxu0 0
    %1656 = vmatpush1.bf16.msra.mxu0 0
    %1657 = vmatprep.subr.bf16.mxu0 0
    %1658 = vmatpush1.bf16.msra.mxu0 0
    %1659 = vmatprep.subr.bf16.mxu0 0
    %1660 = vmatpush1.bf16.msra.mxu0 0
    %1661 = vmatprep.subr.bf16.mxu0 0
    %1662 = vmatpush1.bf16.msra.mxu0 0
    %1663 = vmatprep.subr.bf16.mxu0 0
    %1664 = vmatpush1.bf16.msra.mxu0 0
    %1665 = vmatprep.mubr.bf16.mxu0 0
    %1666 = vmatmul.mubr.bf16.gmra.mrb[0].mxu0 %v1349
    %v1667 = vpop.f32.mrb[0].mxu0
    %v1668 = vadd.f32 0.0, %v1667
    %v1669 = vpop.f32.mrb[0].mxu0
    %v1670 = vadd.f32 0.0, %v1669
    %v1671 = vpop.f32.mrb[0].mxu0
    %v1672 = vadd.f32 0.0, %v1671
    %v1673 = vpop.f32.mrb[0].mxu0
    %v1674 = vadd.f32 0.0, %v1673
    %1675 = vdwg.mxu0
    %1676 = vmatprep.subr.bf16.mxu0 %v1499
    %1677 = vmatpush1.bf16.msra.mxu0 %v1498
    %1678 = vmatprep.subr.bf16.mxu0 %v1505
    %1679 = vmatpush1.bf16.msra.mxu0 %v1504
    %1680 = vmatprep.subr.bf16.mxu0 %v1511
    %1681 = vmatpush1.bf16.msra.mxu0 %v1510
    %1682 = vmatprep.subr.bf16.mxu0 %v1517
    %1683 = vmatpush1.bf16.msra.mxu0 %v1516
    %1684 = vmatprep.subr.bf16.mxu0 %v1523
    %1685 = vmatpush1.bf16.msra.mxu0 %v1522
    %1686 = vmatprep.subr.bf16.mxu0 %v1529
    %1687 = vmatpush1.bf16.msra.mxu0 %v1528
    %1688 = vmatprep.subr.bf16.mxu0 %v1535
    %1689 = vmatpush1.bf16.msra.mxu0 %v1534
    %1690 = vmatprep.subr.bf16.mxu0 %v1541
    %1691 = vmatpush1.bf16.msra.mxu0 %v1540
    %1692 = vmatprep.subr.bf16.mxu0 0
    %1693 = vmatpush1.bf16.msra.mxu0 0
    %1694 = vmatprep.subr.bf16.mxu0 0
    %1695 = vmatpush1.bf16.msra.mxu0 0
    %1696 = vmatprep.subr.bf16.mxu0 0
    %1697 = vmatpush1.bf16.msra.mxu0 0
    %1698 = vmatprep.subr.bf16.mxu0 0
    %1699 = vmatpush1.bf16.msra.mxu0 0
    %1700 = vmatprep.subr.bf16.mxu0 0
    %1701 = vmatpush1.bf16.msra.mxu0 0
    %1702 = vmatprep.subr.bf16.mxu0 0
    %1703 = vmatpush1.bf16.msra.mxu0 0
    %1704 = vmatprep.subr.bf16.mxu0 0
    %1705 = vmatpush1.bf16.msra.mxu0 0
    %1706 = vmatprep.subr.bf16.mxu0 0
    %1707 = vmatpush1.bf16.msra.mxu0 0
    %1708 = vmatprep.mubr.bf16.mxu0 0
    %1709 = vmatmul.mubr.bf16.gmra.mrb[0].mxu0 %v1349
    %v1710 = vpop.f32.mrb[0].mxu0
    %v1711 = vadd.f32 0.0, %v1710
    %v1712 = vpop.f32.mrb[0].mxu0
    %v1713 = vadd.f32 0.0, %v1712
    %v1714 = vpop.f32.mrb[0].mxu0
    %v1715 = vadd.f32 0.0, %v1714
    %v1716 = vpop.f32.mrb[0].mxu0
    %v1717 = vadd.f32 0.0, %v1716
    %1718 = vdwg.mxu0
    %v1719 = vld [vmem:[#allocation6 + $0x10] sm:$0x1]
    %v1720 = vlaneseq
    %v1721 = vshrl.u32 %v1720, 7
    %v1722 = vsub.s32 0, %v1721
    %v1723 = vrot.slane %v1719, %v1722
    %v1724 = vadd.f32 %v1625, %v1723
    %v1725 = vadd.f32 %v1629, %v1723
    %v1726 = vld [vmem:[#allocation6 + $0x12] sm:$0x1]
    %v1727 = vlaneseq
    %v1728 = vshrl.u32 %v1727, 7
    %v1729 = vsub.s32 0, %v1728
    %v1730 = vrot.slane %v1726, %v1729
    %v1731 = vadd.f32 %v1668, %v1730
    %v1732 = vadd.f32 %v1672, %v1730
    %v1733 = vld [vmem:[#allocation6 + $0x14] sm:$0x1]
    %v1734 = vlaneseq
    %v1735 = vshrl.u32 %v1734, 7
    %v1736 = vsub.s32 0, %v1735
    %v1737 = vrot.slane %v1733, %v1736
    %v1738 = vadd.f32 %v1711, %v1737
    %v1739 = vadd.f32 %v1715, %v1737
    %v1740 = vpack.c.bf16 %v1725, %v1724
    %v1741 = vpack.c.bf16 %v1732, %v1731
    %1742 = vmatprep.subr.bf16.mxu0 0
    %1743 = vmatpush1.bf16.xpose.msra.mxu0 %v1741
    %1744 = vmatprep.subr.bf16.mxu0 0
    %1745 = vmatpush1.bf16.xpose.msra.mxu0 0
    %1746 = vmatprep.subr.bf16.mxu0 0
    %1747 = vmatpush1.bf16.xpose.msra.mxu0 0
    %1748 = vmatprep.subr.bf16.mxu0 0
    %1749 = vmatpush1.bf16.xpose.msra.mxu0 0
    %1750 = vmatprep.subr.bf16.mxu0 0
    %1751 = vmatpush1.bf16.xpose.msra.mxu0 0
    %1752 = vmatprep.subr.bf16.mxu0 0
    %1753 = vmatpush1.bf16.xpose.msra.mxu0 0
    %1754 = vmatprep.subr.bf16.mxu0 0
    %1755 = vmatpush1.bf16.xpose.msra.mxu0 0
    %1756 = vmatprep.subr.bf16.mxu0 0
    %1757 = vmatpush1.bf16.xpose.msra.mxu0 0
    %1758 = vmatprep.subr.bf16.mxu0 0
    %1759 = vmatpush1.bf16.xpose.msra.mxu0 0
    %1760 = vmatprep.subr.bf16.mxu0 0
    %1761 = vmatpush1.bf16.xpose.msra.mxu0 0
    %1762 = vmatprep.subr.bf16.mxu0 0
    %1763 = vmatpush1.bf16.xpose.msra.mxu0 0
    %1764 = vmatprep.subr.bf16.mxu0 0
    %1765 = vmatpush1.bf16.xpose.msra.mxu0 0
    %1766 = vmatprep.subr.bf16.mxu0 0
    %1767 = vmatpush1.bf16.xpose.msra.mxu0 0
    %1768 = vmatprep.subr.bf16.mxu0 0
    %1769 = vmatpush1.bf16.xpose.msra.mxu0 0
    %1770 = vmatprep.subr.bf16.mxu0 0
    %1771 = vmatpush1.bf16.xpose.msra.mxu0 0
    %1772 = vmatprep.subr.bf16.mxu0 0
    %1773 = vmatpush1.bf16.xpose.msra.mxu0 0
    %1774 = vmatprep.mubr.bf16.mxu0 0
    %1775 = vmatmul.mubr.bf16.gmra.mrb[0].mxu0 %v1740
    %v1776 = vpop.f32.mrb[0].mxu0
    %v1777 = vadd.f32 0.0, %v1776
    %v1778 = vpop.f32.mrb[0].mxu0
    %v1779 = vpop.f32.mrb[0].mxu0
    %v1780 = vadd.f32 0.0, %v1779
    %v1781 = vpop.f32.mrb[0].mxu0
    %1782 = vdwg.mxu0
    %v1783 = vmul.f32 %v1777, 0.25
    %v1784 = vmul.f32 %v1780, 0.25
    %v1785 = vadd.f32 %v1783, %v72
    %v1786 = vadd.f32 %v1784, %v73
    %v1787 = vsel %vm598, %v1785, -inf
    %1788 = vmax.xlane.f32.xlu0 %v1787
    %v1789 = vpop.xlane.xlu0 %1788
    %v1790 = vsel %vm598, %v1786, -inf
    %1791 = vmax.xlane.f32.xlu0 %v1790
    %v1792 = vpop.xlane.xlu0 %1791
    %v1793 = vsub.f32 %v1785, %v1789
    %v1794 = vsub.f32 %v1786, %v1792
    %v1795 = vmul.f32 %v1793, 1.442695
    %v1796 = vpow.pop %v1795
    %v1797 = vmul.f32 %v1794, 1.442695
    %v1798 = vpow.pop %v1797
    %v1799 = vsel %vm598, %v1796, 0.0
    %1800 = vadd.xlane.f32.xlu0 %v1799
    %v1801 = vpop.xlane.xlu0 %1800
    %v1802 = vsel %vm598, %v1798, 0.0
    %1803 = vadd.xlane.f32.xlu0 %v1802
    %v1804 = vpop.xlane.xlu0 %1803
    %v1805 = vrcp.pop %v1801
    %v1806 = vmul.f32 %v1796, %v1805
    %v1807 = vrcp.pop %v1804
    %v1808 = vmul.f32 %v1798, %v1807
    %v1809 = vpack.c.bf16 %v1808, %v1806
    %v1810 = vpack.c.bf16 %v1739, %v1738
    %v1812 = vsel %vm598, %v1809, 0
    %1814 = vmatprep.subr.bf16.mxu0 0
    %1815 = vmatpush1.bf16.msra.mxu0 %v1810
    %1816 = vmatprep.subr.bf16.mxu0 0
    %1817 = vmatpush1.bf16.msra.mxu0 0
    %1818 = vmatprep.subr.bf16.mxu0 0
    %1819 = vmatpush1.bf16.msra.mxu0 0
    %1820 = vmatprep.subr.bf16.mxu0 0
    %1821 = vmatpush1.bf16.msra.mxu0 0
    %1822 = vmatprep.subr.bf16.mxu0 0
    %1823 = vmatpush1.bf16.msra.mxu0 0
    %1824 = vmatprep.subr.bf16.mxu0 0
    %1825 = vmatpush1.bf16.msra.mxu0 0
    %1826 = vmatprep.subr.bf16.mxu0 0
    %1827 = vmatpush1.bf16.msra.mxu0 0
    %1828 = vmatprep.subr.bf16.mxu0 0
    %1829 = vmatpush1.bf16.msra.mxu0 0
    %1830 = vmatprep.subr.bf16.mxu0 0
    %1831 = vmatpush1.bf16.msra.mxu0 0
    %1832 = vmatprep.subr.bf16.mxu0 0
    %1833 = vmatpush1.bf16.msra.mxu0 0
    %1834 = vmatprep.subr.bf16.mxu0 0
    %1835 = vmatpush1.bf16.msra.mxu0 0
    %1836 = vmatprep.subr.bf16.mxu0 0
    %1837 = vmatpush1.bf16.msra.mxu0 0
    %1838 = vmatprep.subr.bf16.mxu0 0
    %1839 = vmatpush1.bf16.msra.mxu0 0
    %1840 = vmatprep.subr.bf16.mxu0 0
    %1841 = vmatpush1.bf16.msra.mxu0 0
    %1842 = vmatprep.subr.bf16.mxu0 0
    %1843 = vmatpush1.bf16.msra.mxu0 0
    %1844 = vmatprep.subr.bf16.mxu0 0
    %1845 = vmatpush1.bf16.msra.mxu0 0
    %1846 = vmatprep.mubr.bf16.mxu0 0
    %1847 = vmatmul.mubr.bf16.gmra.mrb[0].mxu0 %v1812
    %v1848 = vpop.f32.mrb[0].mxu0
    %v1849 = vadd.f32 0.0, %v1848
    %v1850 = vpop.f32.mrb[0].mxu0
    %v1851 = vpop.f32.mrb[0].mxu0
    %v1852 = vadd.f32 0.0, %v1851
    %v1853 = vpop.f32.mrb[0].mxu0
    %1854 = vdwg.mxu0
    %v1855 = vld [vmem:[#allocation6 + $0x11] sm:$0x1]
    %v1856 = vlaneseq
    %v1857 = vshrl.u32 %v1856, 7
    %v1858 = vsub.s32 0, %v1857
    %v1859 = vrot.slane %v1855, %v1858
    %v1860 = vadd.f32 %v1627, %v1859
    %v1861 = vadd.f32 %v1631, %v1859
    %v1862 = vld [vmem:[#allocation6 + $0x13] sm:$0x1]
    %v1863 = vlaneseq
    %v1864 = vshrl.u32 %v1863, 7
    %v1865 = vsub.s32 0, %v1864
    %v1866 = vrot.slane %v1862, %v1865
    %v1867 = vadd.f32 %v1670, %v1866
    %v1868 = vadd.f32 %v1674, %v1866
    %v1869 = vld [vmem:[#allocation6 + $0x15] sm:$0x1]
    %v1870 = vlaneseq
    %v1871 = vshrl.u32 %v1870, 7
    %v1872 = vsub.s32 0, %v1871
    %v1873 = vrot.slane %v1869, %v1872
    %v1874 = vadd.f32 %v1713, %v1873
    %v1875 = vadd.f32 %v1717, %v1873
    %v1876 = vpack.c.bf16 %v1861, %v1860
    %v1877 = vpack.c.bf16 %v1868, %v1867
    %1878 = vmatprep.subr.bf16.mxu0 0
    %1879 = vmatpush1.bf16.xpose.msra.mxu0 %v1877
    %1880 = vmatprep.subr.bf16.mxu0 0
    %1881 = vmatpush1.bf16.xpose.msra.mxu0 0
    %1882 = vmatprep.subr.bf16.mxu0 0
    %1883 = vmatpush1.bf16.xpose.msra.mxu0 0
    %1884 = vmatprep.subr.bf16.mxu0 0
    %1885 = vmatpush1.bf16.xpose.msra.mxu0 0
    %1886 = vmatprep.subr.bf16.mxu0 0
    %1887 = vmatpush1.bf16.xpose.msra.mxu0 0
    %1888 = vmatprep.subr.bf16.mxu0 0
    %1889 = vmatpush1.bf16.xpose.msra.mxu0 0
    %1890 = vmatprep.subr.bf16.mxu0 0
    %1891 = vmatpush1.bf16.xpose.msra.mxu0 0
    %1892 = vmatprep.subr.bf16.mxu0 0
    %1893 = vmatpush1.bf16.xpose.msra.mxu0 0
    %1894 = vmatprep.subr.bf16.mxu0 0
    %1895 = vmatpush1.bf16.xpose.msra.mxu0 0
    %1896 = vmatprep.subr.bf16.mxu0 0
    %1897 = vmatpush1.bf16.xpose.msra.mxu0 0
    %1898 = vmatprep.subr.bf16.mxu0 0
    %1899 = vmatpush1.bf16.xpose.msra.mxu0 0
    %1900 = vmatprep.subr.bf16.mxu0 0
    %1901 = vmatpush1.bf16.xpose.msra.mxu0 0
    %1902 = vmatprep.subr.bf16.mxu0 0
    %1903 = vmatpush1.bf16.xpose.msra.mxu0 0
    %1904 = vmatprep.subr.bf16.mxu0 0
    %1905 = vmatpush1.bf16.xpose.msra.mxu0 0
    %1906 = vmatprep.subr.bf16.mxu0 0
    %1907 = vmatpush1.bf16.xpose.msra.mxu0 0
    %1908 = vmatprep.subr.bf16.mxu0 0
    %1909 = vmatpush1.bf16.xpose.msra.mxu0 0
    %1910 = vmatprep.mubr.bf16.mxu0 0
    %1911 = vmatmul.mubr.bf16.gmra.mrb[0].mxu0 %v1876
    %v1912 = vpop.f32.mrb[0].mxu0
    %v1913 = vadd.f32 0.0, %v1912
    %v1914 = vpop.f32.mrb[0].mxu0
    %v1915 = vpop.f32.mrb[0].mxu0
    %v1916 = vadd.f32 0.0, %v1915
    %v1917 = vpop.f32.mrb[0].mxu0
    %1918 = vdwg.mxu0
    %v1919 = vmul.f32 %v1913, 0.25
    %v1920 = vmul.f32 %v1916, 0.25
    %v1921 = vadd.f32 %v1919, %v72
    %v1922 = vadd.f32 %v1920, %v73
    %v1923 = vsel %vm598, %v1921, -inf
    %1924 = vmax.xlane.f32.xlu0 %v1923
    %v1925 = vpop.xlane.xlu0 %1924
    %v1926 = vsel %vm598, %v1922, -inf
    %1927 = vmax.xlane.f32.xlu0 %v1926
    %v1928 = vpop.xlane.xlu0 %1927
    %v1929 = vsub.f32 %v1921, %v1925
    %v1930 = vsub.f32 %v1922, %v1928
    %v1931 = vmul.f32 %v1929, 1.442695
    %v1932 = vpow.pop %v1931
    %v1933 = vmul.f32 %v1930, 1.442695
    %v1934 = vpow.pop %v1933
    %v1935 = vsel %vm598, %v1932, 0.0
    %1936 = vadd.xlane.f32.xlu0 %v1935
    %v1937 = vpop.xlane.xlu0 %1936
    %v1938 = vsel %vm598, %v1934, 0.0
    %1939 = vadd.xlane.f32.xlu0 %v1938
    %v1940 = vpop.xlane.xlu0 %1939
    %v1941 = vrcp.pop %v1937
    %v1942 = vmul.f32 %v1932, %v1941
    %v1943 = vrcp.pop %v1940
    %v1944 = vmul.f32 %v1934, %v1943
    %v1945 = vpack.c.bf16 %v1944, %v1942
    %v1946 = vpack.c.bf16 %v1875, %v1874
    %v1948 = vsel %vm598, %v1945, 0
    %1950 = vmatprep.subr.bf16.mxu0 0
    %1951 = vmatpush1.bf16.msra.mxu0 %v1946
    %1952 = vmatprep.subr.bf16.mxu0 0
    %1953 = vmatpush1.bf16.msra.mxu0 0
    %1954 = vmatprep.subr.bf16.mxu0 0
    %1955 = vmatpush1.bf16.msra.mxu0 0
    %1956 = vmatprep.subr.bf16.mxu0 0
    %1957 = vmatpush1.bf16.msra.mxu0 0
    %1958 = vmatprep.subr.bf16.mxu0 0
    %1959 = vmatpush1.bf16.msra.mxu0 0
    %1960 = vmatprep.subr.bf16.mxu0 0
    %1961 = vmatpush1.bf16.msra.mxu0 0
    %1962 = vmatprep.subr.bf16.mxu0 0
    %1963 = vmatpush1.bf16.msra.mxu0 0
    %1964 = vmatprep.subr.bf16.mxu0 0
    %1965 = vmatpush1.bf16.msra.mxu0 0
    %1966 = vmatprep.subr.bf16.mxu0 0
    %1967 = vmatpush1.bf16.msra.mxu0 0
    %1968 = vmatprep.subr.bf16.mxu0 0
    %1969 = vmatpush1.bf16.msra.mxu0 0
    %1970 = vmatprep.subr.bf16.mxu0 0
    %1971 = vmatpush1.bf16.msra.mxu0 0
    %1972 = vmatprep.subr.bf16.mxu0 0
    %1973 = vmatpush1.bf16.msra.mxu0 0
    %1974 = vmatprep.subr.bf16.mxu0 0
    %1975 = vmatpush1.bf16.msra.mxu0 0
    %1976 = vmatprep.subr.bf16.mxu0 0
    %1977 = vmatpush1.bf16.msra.mxu0 0
    %1978 = vmatprep.subr.bf16.mxu0 0
    %1979 = vmatpush1.bf16.msra.mxu0 0
    %1980 = vmatprep.subr.bf16.mxu0 0
    %1981 = vmatpush1.bf16.msra.mxu0 0
    %1982 = vmatprep.mubr.bf16.mxu0 0
    %1983 = vmatmul.mubr.bf16.gmra.mrb[0].mxu0 %v1948
    %v1984 = vpop.f32.mrb[0].mxu0
    %v1985 = vadd.f32 0.0, %v1984
    %v1986 = vpop.f32.mrb[0].mxu0
    %v1987 = vpop.f32.mrb[0].mxu0
    %v1988 = vadd.f32 0.0, %v1987
    %v1989 = vpop.f32.mrb[0].mxu0
    %1990 = vdwg.mxu0
    %s1991 = scalar_lea.vmem %s3, 128
    %v1992 = vld [vmem:[%s1991] sm:$0xf]
    %v1993 = vld [vmem:[%s1991 + $0x4] sm:$0xf]
    %v1994 = vld [vmem:[%s1991 + $0x8] sm:$0xf]
    %v1995 = vld [vmem:[%s1991 + $0xc] sm:$0xf]
    %v1996 = vld [vmem:[%s1991 + $0x10] sm:$0xf]
    %v1997 = vld [vmem:[%s1991 + $0x14] sm:$0xf]
    %v1998 = vld [vmem:[%s1991 + $0x18] sm:$0xf]
    %v1999 = vld [vmem:[%s1991 + $0x1c] sm:$0xf]
    %v2000 = vld [vmem:[%s1991 + $0x20] sm:$0xf]
    %v2001 = vld [vmem:[%s1991 + $0x24] sm:$0xf]
    %v2002 = vld [vmem:[%s1991 + $0x28] sm:$0xf]
    %v2003 = vld [vmem:[%s1991 + $0x2c] sm:$0xf]
    %v2004 = vld [vmem:[%s1991 + $0x30] sm:$0xf]
    %v2005 = vld [vmem:[%s1991 + $0x34] sm:$0xf]
    %v2006 = vld [vmem:[%s1991 + $0x38] sm:$0xf]
    %v2007 = vld [vmem:[%s1991 + $0x3c] sm:$0xf]
    %v2008 = vld [vmem:[%s1991 + $0x40] sm:$0xf]
    %v2009 = vld [vmem:[%s1991 + $0x44] sm:$0xf]
    %v2010 = vld [vmem:[%s1991 + $0x48] sm:$0xf]
    %v2011 = vld [vmem:[%s1991 + $0x4c] sm:$0xf]
    %v2012 = vld [vmem:[%s1991 + $0x50] sm:$0xf]
    %v2013 = vld [vmem:[%s1991 + $0x54] sm:$0xf]
    %v2014 = vld [vmem:[%s1991 + $0x58] sm:$0xf]
    %v2015 = vld [vmem:[%s1991 + $0x5c] sm:$0xf]
    %v2016 = vld [vmem:[%s1991 + $0x60] sm:$0xf]
    %v2017 = vld [vmem:[%s1991 + $0x64] sm:$0xf]
    %v2018 = vld [vmem:[%s1991 + $0x68] sm:$0xf]
    %v2019 = vld [vmem:[%s1991 + $0x6c] sm:$0xf]
    %v2020 = vld [vmem:[%s1991 + $0x70] sm:$0xf]
    %v2021 = vld [vmem:[%s1991 + $0x74] sm:$0xf]
    %v2022 = vld [vmem:[%s1991 + $0x78] sm:$0xf]
    %v2023 = vld [vmem:[%s1991 + $0x7c] sm:$0xf]
    %v2024 = vpack.c.bf16 %v1852, %v1849
    %v2025 = vpack.c.bf16 %v1988, %v1985
    %v2026 = vld [vmem:[#allocation6 + $0x16] sm:$0x1]
    %v2027 = vlaneseq
    %v2028 = vshrl.u32 %v2027, 7
    %v2029 = vsub.s32 0, %v2028
    %v2030 = vrot.slane %v2026, %v2029
    %v2063 = vunpack.c.l.b16 %v1992
    %v2064 = vunpack.c.l.b16 %v1993
    %v2065 = vunpack.c.l.b16 %v1994
    %v2066 = vunpack.c.l.b16 %v1995
    %v2067 = vunpack.c.l.b16 %v1996
    %v2068 = vunpack.c.l.b16 %v1997
    %v2069 = vunpack.c.l.b16 %v1998
    %v2070 = vunpack.c.l.b16 %v1999
    %v2071 = vunpack.c.l.b16 %v2000
    %v2072 = vunpack.c.l.b16 %v2001
    %v2073 = vunpack.c.l.b16 %v2002
    %v2074 = vunpack.c.l.b16 %v2003
    %v2075 = vunpack.c.l.b16 %v2004
    %v2076 = vunpack.c.l.b16 %v2005
    %v2077 = vunpack.c.l.b16 %v2006
    %v2078 = vunpack.c.l.b16 %v2007
    %v2079 = vunpack.c.l.b16 %v2008
    %v2080 = vunpack.c.l.b16 %v2009
    %v2081 = vunpack.c.l.b16 %v2010
    %v2082 = vunpack.c.l.b16 %v2011
    %v2083 = vunpack.c.l.b16 %v2012
    %v2084 = vunpack.c.l.b16 %v2013
    %v2085 = vunpack.c.l.b16 %v2014
    %v2086 = vunpack.c.l.b16 %v2015
    %v2087 = vunpack.c.l.b16 %v2016
    %v2088 = vunpack.c.l.b16 %v2017
    %v2089 = vunpack.c.l.b16 %v2018
    %v2090 = vunpack.c.l.b16 %v2019
    %v2091 = vunpack.c.l.b16 %v2020
    %v2092 = vunpack.c.l.b16 %v2021
    %v2093 = vunpack.c.l.b16 %v2022
    %v2094 = vunpack.c.l.b16 %v2023
    %v2095 = vpack.c.b16 %v2064, %v2063
    %v2096 = vpack.c.b16 %v2066, %v2065
    %v2097 = vpack.c.b16 %v2068, %v2067
    %v2098 = vpack.c.b16 %v2070, %v2069
    %v2099 = vpack.c.b16 %v2072, %v2071
    %v2100 = vpack.c.b16 %v2074, %v2073
    %v2101 = vpack.c.b16 %v2076, %v2075
    %v2102 = vpack.c.b16 %v2078, %v2077
    %v2103 = vpack.c.b16 %v2080, %v2079
    %v2104 = vpack.c.b16 %v2082, %v2081
    %v2105 = vpack.c.b16 %v2084, %v2083
    %v2106 = vpack.c.b16 %v2086, %v2085
    %v2107 = vpack.c.b16 %v2088, %v2087
    %v2108 = vpack.c.b16 %v2090, %v2089
    %v2109 = vpack.c.b16 %v2092, %v2091
    %v2110 = vpack.c.b16 %v2094, %v2093
    %2127 = vmatprep.subr.bf16.mxu0 0
    %2128 = vmatpush1.bf16.msra.mxu0 %v2095
    %2129 = vmatprep.subr.bf16.mxu0 0
    %2130 = vmatpush1.bf16.msra.mxu0 %v2096
    %2131 = vmatprep.subr.bf16.mxu0 0
    %2132 = vmatpush1.bf16.msra.mxu0 %v2097
    %2133 = vmatprep.subr.bf16.mxu0 0
    %2134 = vmatpush1.bf16.msra.mxu0 %v2098
    %2135 = vmatprep.subr.bf16.mxu0 0
    %2136 = vmatpush1.bf16.msra.mxu0 %v2099
    %2137 = vmatprep.subr.bf16.mxu0 0
    %2138 = vmatpush1.bf16.msra.mxu0 %v2100
    %2139 = vmatprep.subr.bf16.mxu0 0
    %2140 = vmatpush1.bf16.msra.mxu0 %v2101
    %2141 = vmatprep.subr.bf16.mxu0 0
    %2142 = vmatpush1.bf16.msra.mxu0 %v2102
    %2143 = vmatprep.subr.bf16.mxu0 0
    %2144 = vmatpush1.bf16.msra.mxu0 %v2103
    %2145 = vmatprep.subr.bf16.mxu0 0
    %2146 = vmatpush1.bf16.msra.mxu0 %v2104
    %2147 = vmatprep.subr.bf16.mxu0 0
    %2148 = vmatpush1.bf16.msra.mxu0 %v2105
    %2149 = vmatprep.subr.bf16.mxu0 0
    %2150 = vmatpush1.bf16.msra.mxu0 %v2106
    %2151 = vmatprep.subr.bf16.mxu0 0
    %2152 = vmatpush1.bf16.msra.mxu0 %v2107
    %2153 = vmatprep.subr.bf16.mxu0 0
    %2154 = vmatpush1.bf16.msra.mxu0 %v2108
    %2155 = vmatprep.subr.bf16.mxu0 0
    %2156 = vmatpush1.bf16.msra.mxu0 %v2109
    %2157 = vmatprep.subr.bf16.mxu0 0
    %2158 = vmatpush1.bf16.msra.mxu0 %v2110
    %2159 = vmatprep.mubr.bf16.mxu0 %v2025
    %2160 = vmatmul.mubr.bf16.gmra.mrb[0].mxu0 %v2024
    %v2161 = vpop.f32.mrb[0].mxu0
    %v2162 = vadd.f32 %v2030, %v2161
    %v2163 = vpop.f32.mrb[0].mxu0
    %v2164 = vpop.f32.mrb[0].mxu0
    %v2165 = vadd.f32 %v2030, %v2164
    %v2166 = vpop.f32.mrb[0].mxu0
    %2167 = vdwg.mxu0
    %v2168 = vadd.f32 %v2162, %v1298
    %v2169 = vadd.f32 %v2165, %v1299
    %2170 = vadd.xlane.f32.xlu0 %v2168
    %v2171 = vpop.xlane.xlu0 %2170
    %2172 = vadd.xlane.f32.xlu0 %v2169
    %v2173 = vpop.xlane.xlu0 %2172
    %v2174 = vmul.f32 %v2171, 0.03125
    %v2175 = vmul.f32 %v2173, 0.03125
    %v2176 = vsub.f32 %v2168, %v2174
    %v2177 = vsub.f32 %v2169, %v2175
    %v2178 = vmul.f32 %v2176, %v69
    %v2179 = vmul.f32 %v2177, %v69
    %v2180 = vmul.f32 %v2178, %v2178
    %v2181 = vmul.f32 %v2179, %v2179
    %2182 = vadd.xlane.f32.xlu0 %v2180
    %v2183 = vpop.xlane.xlu0 %2182
    %2184 = vadd.xlane.f32.xlu0 %v2181
    %v2185 = vpop.xlane.xlu0 %2184
    %v2186 = vmul.f32 %v2183, 0.03125
    %v2187 = vmul.f32 %v2185, 0.03125
    %v2188 = vadd.f32 %v2186, 1e-12
    %v2189 = vadd.f32 %v2187, 1e-12
    %v2190 = vrsqrt.pop %v2188
    %v2191 = vrsqrt.pop %v2189
    %v2192 = vmul.f32 %v2178, %v2190
    %v2193 = vmul.f32 %v2179, %v2191
    %v2194 = vld [vmem:[#allocation6 + $0x17] sm:$0x1]
    %v2195 = vlaneseq
    %v2196 = vshrl.u32 %v2195, 7
    %v2197 = vsub.s32 0, %v2196
    %v2198 = vrot.slane %v2194, %v2197
    %v2199 = vmul.f32 %v2192, %v2198
    %v2200 = vmul.f32 %v2193, %v2198
    %v2201 = vld [vmem:[#allocation6 + $0x18] sm:$0x1]
    %v2202 = vlaneseq
    %v2203 = vshrl.u32 %v2202, 7
    %v2204 = vsub.s32 0, %v2203
    %v2205 = vrot.slane %v2201, %v2204
    %v2206 = vadd.f32 %v2199, %v2205
    %v2207 = vadd.f32 %v2200, %v2205
    %s2208 = scalar_lea.vmem [#allocation4], 128
    %v2209 = vld [vmem:[%s2208] sm:$0xf]
    %v2210 = vld [vmem:[%s2208 + $0x4] sm:$0xf]
    %v2211 = vld [vmem:[%s2208 + $0x8] sm:$0xf]
    %v2212 = vld [vmem:[%s2208 + $0xc] sm:$0xf]
    %v2213 = vld [vmem:[%s2208 + $0x10] sm:$0xf]
    %v2214 = vld [vmem:[%s2208 + $0x14] sm:$0xf]
    %v2215 = vld [vmem:[%s2208 + $0x18] sm:$0xf]
    %v2216 = vld [vmem:[%s2208 + $0x1c] sm:$0xf]
    %v2217 = vld [vmem:[%s2208 + $0x20] sm:$0xf]
    %v2218 = vld [vmem:[%s2208 + $0x24] sm:$0xf]
    %v2219 = vld [vmem:[%s2208 + $0x28] sm:$0xf]
    %v2220 = vld [vmem:[%s2208 + $0x2c] sm:$0xf]
    %v2221 = vld [vmem:[%s2208 + $0x30] sm:$0xf]
    %v2222 = vld [vmem:[%s2208 + $0x34] sm:$0xf]
    %v2223 = vld [vmem:[%s2208 + $0x38] sm:$0xf]
    %v2224 = vld [vmem:[%s2208 + $0x3c] sm:$0xf]
    %v2225 = vpack.c.bf16 %v2207, %v2206
    %v2226 = vld [vmem:[#allocation6 + $0x19] sm:$0x1]
    %v2227 = vlaneseq
    %v2228 = vshrl.u32 %v2227, 7
    %v2229 = vsub.s32 0, %v2228
    %v2230 = vrot.slane %v2226, %v2229
    %v2247 = vunpack.c.l.b16 %v2209
    %v2248 = vunpack.c.l.b16 %v2210
    %v2249 = vunpack.c.l.b16 %v2211
    %v2250 = vunpack.c.l.b16 %v2212
    %v2251 = vunpack.c.l.b16 %v2213
    %v2252 = vunpack.c.l.b16 %v2214
    %v2253 = vunpack.c.l.b16 %v2215
    %v2254 = vunpack.c.l.b16 %v2216
    %v2255 = vunpack.c.l.b16 %v2217
    %v2256 = vunpack.c.l.b16 %v2218
    %v2257 = vunpack.c.l.b16 %v2219
    %v2258 = vunpack.c.l.b16 %v2220
    %v2259 = vunpack.c.l.b16 %v2221
    %v2260 = vunpack.c.l.b16 %v2222
    %v2261 = vunpack.c.l.b16 %v2223
    %v2262 = vunpack.c.l.b16 %v2224
    %v2263 = vpack.c.b16 %v2248, %v2247
    %v2264 = vpack.c.b16 %v2250, %v2249
    %v2265 = vpack.c.b16 %v2252, %v2251
    %v2266 = vpack.c.b16 %v2254, %v2253
    %v2267 = vpack.c.b16 %v2256, %v2255
    %v2268 = vpack.c.b16 %v2258, %v2257
    %v2269 = vpack.c.b16 %v2260, %v2259
    %v2270 = vpack.c.b16 %v2262, %v2261
    %2279 = vmatprep.subr.bf16.mxu0 0
    %2280 = vmatpush1.bf16.msra.mxu0 %v2263
    %2281 = vmatprep.subr.bf16.mxu0 0
    %2282 = vmatpush1.bf16.msra.mxu0 %v2264
    %2283 = vmatprep.subr.bf16.mxu0 0
    %2284 = vmatpush1.bf16.msra.mxu0 %v2265
    %2285 = vmatprep.subr.bf16.mxu0 0
    %2286 = vmatpush1.bf16.msra.mxu0 %v2266
    %2287 = vmatprep.subr.bf16.mxu0 0
    %2288 = vmatpush1.bf16.msra.mxu0 %v2267
    %2289 = vmatprep.subr.bf16.mxu0 0
    %2290 = vmatpush1.bf16.msra.mxu0 %v2268
    %2291 = vmatprep.subr.bf16.mxu0 0
    %2292 = vmatpush1.bf16.msra.mxu0 %v2269
    %2293 = vmatprep.subr.bf16.mxu0 0
    %2294 = vmatpush1.bf16.msra.mxu0 %v2270
    %2295 = vmatprep.subr.bf16.mxu0 0
    %2296 = vmatpush1.bf16.msra.mxu0 0
    %2297 = vmatprep.subr.bf16.mxu0 0
    %2298 = vmatpush1.bf16.msra.mxu0 0
    %2299 = vmatprep.subr.bf16.mxu0 0
    %2300 = vmatpush1.bf16.msra.mxu0 0
    %2301 = vmatprep.subr.bf16.mxu0 0
    %2302 = vmatpush1.bf16.msra.mxu0 0
    %2303 = vmatprep.subr.bf16.mxu0 0
    %2304 = vmatpush1.bf16.msra.mxu0 0
    %2305 = vmatprep.subr.bf16.mxu0 0
    %2306 = vmatpush1.bf16.msra.mxu0 0
    %2307 = vmatprep.subr.bf16.mxu0 0
    %2308 = vmatpush1.bf16.msra.mxu0 0
    %2309 = vmatprep.subr.bf16.mxu0 0
    %2310 = vmatpush1.bf16.msra.mxu0 0
    %2311 = vmatprep.mubr.bf16.mxu0 0
    %2312 = vmatmul.mubr.bf16.gmra.mrb[0].mxu0 %v2225
    %v2313 = vpop.f32.mrb[0].mxu0
    %v2314 = vadd.f32 %v2230, %v2313
    %v2315 = vpop.f32.mrb[0].mxu0
    %v2316 = vpop.f32.mrb[0].mxu0
    %v2317 = vadd.f32 %v2230, %v2316
    %v2318 = vpop.f32.mrb[0].mxu0
    %2319 = vdwg.mxu0
    %v2320 = vmul.f32 %v2314, 0.5
    %v2321 = vmul.f32 %v2317, 0.5
    %v2322 = vmul.f32 %v2314, 0.044715
    %v2323 = vmul.f32 %v2317, 0.044715
    %v2324 = vmul.f32 %v2322, %v2314
    %v2325 = vmul.f32 %v2323, %v2317
    %v2326 = vmul.f32 %v2324, %v2314
    %v2327 = vmul.f32 %v2325, %v2317
    %v2328 = vadd.f32 %v2314, %v2326
    %v2329 = vadd.f32 %v2317, %v2327
    %v2330 = vmul.f32 %v2328, 0.7978846
    %v2331 = vmul.f32 %v2329, 0.7978846
    %v2332 = vtanh.pop %v2330
    %v2333 = vtanh.pop %v2331
    %v2334 = vadd.f32 %v2332, 1.0
    %v2335 = vadd.f32 %v2333, 1.0
    %v2336 = vmul.f32 %v2320, %v2334
    %v2337 = vmul.f32 %v2321, %v2335
    %s2338 = scalar_lea.vmem [#allocation4], 192
    %v2339 = vld [vmem:[%s2338] sm:$0xf]
    %v2340 = vld [vmem:[%s2338 + $0x4] sm:$0xf]
    %v2341 = vld [vmem:[%s2338 + $0x8] sm:$0xf]
    %v2342 = vld [vmem:[%s2338 + $0xc] sm:$0xf]
    %v2343 = vld [vmem:[%s2338 + $0x10] sm:$0xf]
    %v2344 = vld [vmem:[%s2338 + $0x14] sm:$0xf]
    %v2345 = vld [vmem:[%s2338 + $0x18] sm:$0xf]
    %v2346 = vld [vmem:[%s2338 + $0x1c] sm:$0xf]
    %v2347 = vld [vmem:[%s2338 + $0x20] sm:$0xf]
    %v2348 = vld [vmem:[%s2338 + $0x24] sm:$0xf]
    %v2349 = vld [vmem:[%s2338 + $0x28] sm:$0xf]
    %v2350 = vld [vmem:[%s2338 + $0x2c] sm:$0xf]
    %v2351 = vld [vmem:[%s2338 + $0x30] sm:$0xf]
    %v2352 = vld [vmem:[%s2338 + $0x34] sm:$0xf]
    %v2353 = vld [vmem:[%s2338 + $0x38] sm:$0xf]
    %v2354 = vld [vmem:[%s2338 + $0x3c] sm:$0xf]
    %v2355 = vpack.c.bf16 %v2337, %v2336
    %v2356 = vld [vmem:[#allocation6 + $0x1a] sm:$0x1]
    %v2357 = vlaneseq
    %v2358 = vshrl.u32 %v2357, 7
    %v2359 = vsub.s32 0, %v2358
    %v2360 = vrot.slane %v2356, %v2359
    %v2377 = vunpack.c.l.b16 %v2339
    %v2378 = vunpack.c.l.b16 %v2340
    %v2379 = vunpack.c.l.b16 %v2341
    %v2380 = vunpack.c.l.b16 %v2342
    %v2381 = vunpack.c.l.b16 %v2343
    %v2382 = vunpack.c.l.b16 %v2344
    %v2383 = vunpack.c.l.b16 %v2345
    %v2384 = vunpack.c.l.b16 %v2346
    %v2385 = vunpack.c.l.b16 %v2347
    %v2386 = vunpack.c.l.b16 %v2348
    %v2387 = vunpack.c.l.b16 %v2349
    %v2388 = vunpack.c.l.b16 %v2350
    %v2389 = vunpack.c.l.b16 %v2351
    %v2390 = vunpack.c.l.b16 %v2352
    %v2391 = vunpack.c.l.b16 %v2353
    %v2392 = vunpack.c.l.b16 %v2354
    %v2393 = vpack.c.b16 %v2378, %v2377
    %v2394 = vpack.c.b16 %v2380, %v2379
    %v2395 = vpack.c.b16 %v2382, %v2381
    %v2396 = vpack.c.b16 %v2384, %v2383
    %v2397 = vpack.c.b16 %v2386, %v2385
    %v2398 = vpack.c.b16 %v2388, %v2387
    %v2399 = vpack.c.b16 %v2390, %v2389
    %v2400 = vpack.c.b16 %v2392, %v2391
    %2409 = vmatprep.subr.bf16.mxu0 0
    %2410 = vmatpush1.bf16.msra.mxu0 %v2393
    %2411 = vmatprep.subr.bf16.mxu0 0
    %2412 = vmatpush1.bf16.msra.mxu0 %v2394
    %2413 = vmatprep.subr.bf16.mxu0 0
    %2414 = vmatpush1.bf16.msra.mxu0 %v2395
    %2415 = vmatprep.subr.bf16.mxu0 0
    %2416 = vmatpush1.bf16.msra.mxu0 %v2396
    %2417 = vmatprep.subr.bf16.mxu0 0
    %2418 = vmatpush1.bf16.msra.mxu0 %v2397
    %2419 = vmatprep.subr.bf16.mxu0 0
    %2420 = vmatpush1.bf16.msra.mxu0 %v2398
    %2421 = vmatprep.subr.bf16.mxu0 0
    %2422 = vmatpush1.bf16.msra.mxu0 %v2399
    %2423 = vmatprep.subr.bf16.mxu0 0
    %2424 = vmatpush1.bf16.msra.mxu0 %v2400
    %2425 = vmatprep.subr.bf16.mxu0 0
    %2426 = vmatpush1.bf16.msra.mxu0 0
    %2427 = vmatprep.subr.bf16.mxu0 0
    %2428 = vmatpush1.bf16.msra.mxu0 0
    %2429 = vmatprep.subr.bf16.mxu0 0
    %2430 = vmatpush1.bf16.msra.mxu0 0
    %2431 = vmatprep.subr.bf16.mxu0 0
    %2432 = vmatpush1.bf16.msra.mxu0 0
    %2433 = vmatprep.subr.bf16.mxu0 0
    %2434 = vmatpush1.bf16.msra.mxu0 0
    %2435 = vmatprep.subr.bf16.mxu0 0
    %2436 = vmatpush1.bf16.msra.mxu0 0
    %2437 = vmatprep.subr.bf16.mxu0 0
    %2438 = vmatpush1.bf16.msra.mxu0 0
    %2439 = vmatprep.subr.bf16.mxu0 0
    %2440 = vmatpush1.bf16.msra.mxu0 0
    %2441 = vmatprep.mubr.bf16.mxu0 0
    %2442 = vmatmul.mubr.bf16.gmra.mrb[0].mxu0 %v2355
    %v2443 = vpop.f32.mrb[0].mxu0
    %v2444 = vadd.f32 %v2360, %v2443
    %v2445 = vpop.f32.mrb[0].mxu0
    %v2446 = vpop.f32.mrb[0].mxu0
    %v2447 = vadd.f32 %v2360, %v2446
    %v2448 = vpop.f32.mrb[0].mxu0
    %2449 = vdwg.mxu0
    %v2450 = vadd.f32 %v2444, %v2206
    %v2451 = vadd.f32 %v2447, %v2207
    %2452 = vadd.xlane.f32.xlu0 %v2450
    %v2453 = vpop.xlane.xlu0 %2452
    %2454 = vadd.xlane.f32.xlu0 %v2451
    %v2455 = vpop.xlane.xlu0 %2454
    %v2456 = vmul.f32 %v2453, 0.03125
    %v2457 = vmul.f32 %v2455, 0.03125
    %v2458 = vsub.f32 %v2450, %v2456
    %v2459 = vsub.f32 %v2451, %v2457
    %v2460 = vmul.f32 %v2458, %v69
    %v2461 = vmul.f32 %v2459, %v69
    %v2462 = vmul.f32 %v2460, %v2460
    %v2463 = vmul.f32 %v2461, %v2461
    %2464 = vadd.xlane.f32.xlu0 %v2462
    %v2465 = vpop.xlane.xlu0 %2464
    %2466 = vadd.xlane.f32.xlu0 %v2463
    %v2467 = vpop.xlane.xlu0 %2466
    %v2468 = vmul.f32 %v2465, 0.03125
    %v2469 = vmul.f32 %v2467, 0.03125
    %v2470 = vadd.f32 %v2468, 1e-12
    %v2471 = vadd.f32 %v2469, 1e-12
    %v2472 = vrsqrt.pop %v2470
    %v2473 = vrsqrt.pop %v2471
    %v2474 = vmul.f32 %v2460, %v2472
    %v2475 = vmul.f32 %v2461, %v2473
    %v2476 = vld [vmem:[#allocation6 + $0x1b] sm:$0x1]
    %v2477 = vlaneseq
    %v2478 = vshrl.u32 %v2477, 7
    %v2479 = vsub.s32 0, %v2478
    %v2480 = vrot.slane %v2476, %v2479
    %v2481 = vmul.f32 %v2474, %v2480
    %v2482 = vmul.f32 %v2475, %v2480
    %v2483 = vld [vmem:[#allocation6 + $0x1c] sm:$0x1]
    %v2484 = vlaneseq
    %v2485 = vshrl.u32 %v2484, 7
    %v2486 = vsub.s32 0, %v2485
    %v2487 = vrot.slane %v2483, %v2486
    %v2488 = vadd.f32 %v2481, %v2487
    %v2489 = vadd.f32 %v2482, %v2487
    %s2490 = scalar_lea.vmem [#allocation4], 256
    %v2491 = vld [vmem:[%s2490] sm:$0xf]
    %v2492 = vld [vmem:[%s2490 + $0x4] sm:$0xf]
    %v2493 = vld [vmem:[%s2490 + $0x8] sm:$0xf]
    %v2494 = vld [vmem:[%s2490 + $0xc] sm:$0xf]
    %v2495 = vld [vmem:[%s2490 + $0x10] sm:$0xf]
    %v2496 = vld [vmem:[%s2490 + $0x14] sm:$0xf]
    %v2497 = vld [vmem:[%s2490 + $0x18] sm:$0xf]
    %v2498 = vld [vmem:[%s2490 + $0x1c] sm:$0xf]
    %v2499 = vld [vmem:[%s2490 + $0x20] sm:$0xf]
    %v2500 = vld [vmem:[%s2490 + $0x24] sm:$0xf]
    %v2501 = vld [vmem:[%s2490 + $0x28] sm:$0xf]
    %v2502 = vld [vmem:[%s2490 + $0x2c] sm:$0xf]
    %v2503 = vld [vmem:[%s2490 + $0x30] sm:$0xf]
    %v2504 = vld [vmem:[%s2490 + $0x34] sm:$0xf]
    %v2505 = vld [vmem:[%s2490 + $0x38] sm:$0xf]
    %v2506 = vld [vmem:[%s2490 + $0x3c] sm:$0xf]
    %v2507 = vpack.c.bf16 %v2489, %v2488
    %v2508 = vld [vmem:[#allocation6 + $0x2] sm:$0x1]
    %v2509 = vlaneseq
    %v2510 = vshrl.u32 %v2509, 7
    %v2511 = vsub.s32 0, %v2510
    %v2512 = vrot.slane %v2508, %v2511
    %v2529 = vunpack.c.l.b16 %v2491
    %v2530 = vunpack.c.l.b16 %v2492
    %v2531 = vunpack.c.l.b16 %v2493
    %v2532 = vunpack.c.l.b16 %v2494
    %v2533 = vunpack.c.l.b16 %v2495
    %v2534 = vunpack.c.l.b16 %v2496
    %v2535 = vunpack.c.l.b16 %v2497
    %v2536 = vunpack.c.l.b16 %v2498
    %v2537 = vunpack.c.l.b16 %v2499
    %v2538 = vunpack.c.l.b16 %v2500
    %v2539 = vunpack.c.l.b16 %v2501
    %v2540 = vunpack.c.l.b16 %v2502
    %v2541 = vunpack.c.l.b16 %v2503
    %v2542 = vunpack.c.l.b16 %v2504
    %v2543 = vunpack.c.l.b16 %v2505
    %v2544 = vunpack.c.l.b16 %v2506
    %v2545 = vpack.c.b16 %v2530, %v2529
    %v2546 = vpack.c.b16 %v2532, %v2531
    %v2547 = vpack.c.b16 %v2534, %v2533
    %v2548 = vpack.c.b16 %v2536, %v2535
    %v2549 = vpack.c.b16 %v2538, %v2537
    %v2550 = vpack.c.b16 %v2540, %v2539
    %v2551 = vpack.c.b16 %v2542, %v2541
    %v2552 = vpack.c.b16 %v2544, %v2543
    %2561 = vmatprep.subr.bf16.mxu0 0
    %2562 = vmatpush1.bf16.msra.mxu0 %v2545
    %2563 = vmatprep.subr.bf16.mxu0 0
    %2564 = vmatpush1.bf16.msra.mxu0 %v2546
    %2565 = vmatprep.subr.bf16.mxu0 0
    %2566 = vmatpush1.bf16.msra.mxu0 %v2547
    %2567 = vmatprep.subr.bf16.mxu0 0
    %2568 = vmatpush1.bf16.msra.mxu0 %v2548
    %2569 = vmatprep.subr.bf16.mxu0 0
    %2570 = vmatpush1.bf16.msra.mxu0 %v2549
    %2571 = vmatprep.subr.bf16.mxu0 0
    %2572 = vmatpush1.bf16.msra.mxu0 %v2550
    %2573 = vmatprep.subr.bf16.mxu0 0
    %2574 = vmatpush1.bf16.msra.mxu0 %v2551
    %2575 = vmatprep.subr.bf16.mxu0 0
    %2576 = vmatpush1.bf16.msra.mxu0 %v2552
    %2577 = vmatprep.subr.bf16.mxu0 0
    %2578 = vmatpush1.bf16.msra.mxu0 0
    %2579 = vmatprep.subr.bf16.mxu0 0
    %2580 = vmatpush1.bf16.msra.mxu0 0
    %2581 = vmatprep.subr.bf16.mxu0 0
    %2582 = vmatpush1.bf16.msra.mxu0 0
    %2583 = vmatprep.subr.bf16.mxu0 0
    %2584 = vmatpush1.bf16.msra.mxu0 0
    %2585 = vmatprep.subr.bf16.mxu0 0
    %2586 = vmatpush1.bf16.msra.mxu0 0
    %2587 = vmatprep.subr.bf16.mxu0 0
    %2588 = vmatpush1.bf16.msra.mxu0 0
    %2589 = vmatprep.subr.bf16.mxu0 0
    %2590 = vmatpush1.bf16.msra.mxu0 0
    %2591 = vmatprep.subr.bf16.mxu0 0
    %2592 = vmatpush1.bf16.msra.mxu0 0
    %2593 = vmatprep.mubr.bf16.mxu0 0
    %2594 = vmatmul.mubr.bf16.gmra.mrb[0].mxu0 %v2507
    %v2595 = vpop.f32.mrb[0].mxu0
    %v2596 = vadd.f32 %v2512, %v2595
    %v2597 = vpop.f32.mrb[0].mxu0
    %v2598 = vpop.f32.mrb[0].mxu0
    %v2599 = vadd.f32 %v2512, %v2598
    %v2600 = vpop.f32.mrb[0].mxu0
    %2601 = vdwg.mxu0
    %2602 = vst [vmem:[%s6] sm:$0xff] %v2596
    %2603 = vst [vmem:[%s6 + $0x8] sm:$0xff] %v2599
    // Predicated region
    $region38: #{bert_forward.1} parent=1 // pred_check
      _
    $region39: #{bert_forward.1} parent=1 // pred_check_branch
      %2605 = sbr.rel (0) target = $region41
    $region40: #{bert_forward.1} parent=1 // pred_region
      _
    $region41: #{bert_forward.1} parent=1 // pred_fallthru
      _
    // Predicated region
    $region42: #{bert_forward.1} parent=1 // pred_check
      _
    $region43: #{bert_forward.1} parent=1 // pred_check_branch
      %2607 = sbr.rel (0) target = $region45
    $region44: #{bert_forward.1} parent=1 // pred_region
      _
    $region45: #{bert_forward.1} parent=1 // pred_fallthru
      _
    %2608 = vsyncpa [#allocation3], 1
    %2609 = vsyncpa [#allocation5], 1

</llo_original>
